<compile_context>
chip_gen: v7x
topology: tpu7x:2x2x1
jax: 0.10.0
libtpu: 0.0.40
codegen_flags: <defaults>
</compile_context>

<pallas_src>
import functools
import math

import jax
import jax.numpy as jnp
import numpy as np
from jax import lax
from jax.experimental import pallas as pl
from jax.experimental.pallas import tpu as pltpu

# nn.RMSNorm(eps=None) uses torch.finfo(dtype).eps; same value for float32 here.
EPS = float(jnp.finfo(jnp.float32).eps)
ACT_TILE = 512   # row tile for the streaming kv-projection / output-head kernels
Q_TILE = 256     # q-side row tile for the fused attention-block kernel


def _row_tile(n, target):
    """Largest tile <= target that divides n (or n itself if small / awkward)."""
    if n <= target:
        return n
    for t in (target, 256, 128, 64, 32, 16, 8):
        if t <= target and n % t == 0:
            return t
    return n


def _head_mask(n_heads, d_head):
    """(HD, HD) block-diagonal ones: 1 iff two features belong to the same head."""
    idx = np.arange(n_heads * d_head) // d_head
    return jnp.asarray(idx[:, None] == idx[None, :], dtype=jnp.float32)


# ----------------------------- Pallas kernels ------------------------------

def _rmsnorm_kv_kernel(x_ref, g_ref, wk_ref, wv_ref, k_ref, v_ref):
    """k, v = rmsnorm(x) * g @ {Wk, Wv}   (kv projection has bias=False)."""
    x = x_ref[...].astype(jnp.float32)
    h = x * lax.rsqrt(jnp.mean(x * x, axis=-1, keepdims=True) + EPS)
    h = (h * g_ref[...]).astype(jnp.bfloat16)
    k_ref[...] = jnp.dot(h, wk_ref[...],
                         preferred_element_type=jnp.float32).astype(k_ref.dtype)
    v_ref[...] = jnp.dot(h, wv_ref[...],
                         preferred_element_type=jnp.float32).astype(v_ref.dtype)


def rmsnorm_kv(x, g, wk, wv):
    """x: (B, M, cd), g: (1, cd), wk/wv: (cd, HD) bf16 -> k, v: (B, M, HD) f32."""
    B, M, cd = x.shape
    HD = wk.shape[1]
    x2 = x.reshape(B * M, cd)
    R = B * M
    tr = _row_tile(R, ACT_TILE)
    k2, v2 = pl.pallas_call(
        _rmsnorm_kv_kernel,
        out_shape=(jax.ShapeDtypeStruct((R, HD), x.dtype),
                   jax.ShapeDtypeStruct((R, HD), x.dtype)),
        grid=(R // tr,),
        in_specs=[pl.BlockSpec((tr, cd), lambda i: (i, 0)),
                  pl.BlockSpec((1, cd), lambda i: (0, 0)),
                  pl.BlockSpec((cd, HD), lambda i: (0, 0)),
                  pl.BlockSpec((cd, HD), lambda i: (0, 0))],
        out_specs=(pl.BlockSpec((tr, HD), lambda i: (i, 0)),
                   pl.BlockSpec((tr, HD), lambda i: (i, 0))),
        compiler_params=pltpu.CompilerParams(dimension_semantics=("parallel",)),
    )(x2, g, wk, wv)
    return k2.reshape(B, M, HD), v2.reshape(B, M, HD)


def _block_kernel(x_ref, k_ref, v_ref, seg_ref, g1_ref, wq_ref, wl_ref, bl_ref,
                  n1_ref, w1_ref, b1_ref, n2_ref, w2_ref, b2_ref, o_ref, *,
                  n_heads, scale):
    """Fused AttentionBlock body for one (batch, q-row-tile) grid step.

    x_ref: (tn, dm) residual/query input, k_ref/v_ref: (M, HD) projected keys
    and values, seg_ref: (HD, HD) block-diagonal head mask.
    """
    x = x_ref[...].astype(jnp.float32)                                   # (tn, dm)

    # --- RMSNorm + Q projection (bf16 weights, f32 accumulation) -------------
    hq = x * lax.rsqrt(jnp.mean(x * x, axis=-1, keepdims=True) + EPS)
    hq = (hq * g1_ref[...]).astype(jnp.bfloat16)
    q = jnp.dot(hq, wq_ref[...], preferred_element_type=jnp.float32)     # (tn, HD)

    k = k_ref[...].astype(jnp.float32)                                   # (M, HD)
    v = v_ref[...].astype(jnp.float32)
    seg = seg_ref[...]

    # --- softmax(q, dim=-1) per head segment (row-max shift is exact) --------
    qe = jnp.exp(q - jnp.max(q, axis=-1, keepdims=True))
    if n_heads == 1:
        qs = qe / jnp.sum(qe, axis=-1, keepdims=True)
    else:
        qs = qe / jnp.dot(qe, seg, preferred_element_type=jnp.float32)

    # --- softmax(k, dim=-2) over the sequence axis (column-wise) -------------
    ke = jnp.exp(k - jnp.max(k, axis=0, keepdims=True))
    ks = ke / jnp.sum(ke, axis=0, keepdims=True)

    # --- ctx = blockdiag_h(k_h^T v_h) * scale as one full-width matmul -------
    ctx = lax.dot_general(ks, v, (((0,), (0,)), ((), ())),
                          preferred_element_type=jnp.float32)            # (HD, HD)
    if n_heads > 1:
        ctx = ctx * seg
    ctx = ctx * scale
    attn = jnp.dot(qs, ctx, preferred_element_type=jnp.float32)          # (tn, HD)

    # --- output projection (single K=HD matmul) + bias + residual ------------
    x1 = x + jnp.dot(attn.astype(jnp.bfloat16), wl_ref[...],
                     preferred_element_type=jnp.float32) + bl_ref[...]

    # --- FFN: RMSNorm -> ReLU -> Linear -> RMSNorm -> ReLU -> Linear + res ---
    h = x1 * lax.rsqrt(jnp.mean(x1 * x1, axis=-1, keepdims=True) + EPS)
    h = jnp.maximum(h * n1_ref[...], 0.0).astype(jnp.bfloat16)
    h = jnp.dot(h, w1_ref[...], preferred_element_type=jnp.float32) + b1_ref[...]
    h = h * lax.rsqrt(jnp.mean(h * h, axis=-1, keepdims=True) + EPS)
    h = jnp.maximum(h * n2_ref[...], 0.0).astype(jnp.bfloat16)
    y = jnp.dot(h, w2_ref[...], preferred_element_type=jnp.float32) + b2_ref[...]

    o_ref[...] = (x1 + y).astype(o_ref.dtype)


def attention_block_core(x, k, v, seg, g1, wq, wl, bl, ff, *, n_heads, scale):
    """x: (Bq, N, dm), k/v: (Bc, M, HD) -> (max(Bq, Bc), N, dm).

    Batch broadcasting (torch semantics) is expressed in the index_maps."""
    Bq, N, dm = x.shape
    Bc, M, HD = k.shape
    B = max(Bq, Bc)
    F = ff['w1'].shape[1]
    tn = _row_tile(N, Q_TILE)

    xmap = (lambda b, i: (b, i, 0)) if Bq > 1 else (lambda b, i: (0, i, 0))
    kmap = (lambda b, i: (b, 0, 0)) if Bc > 1 else (lambda b, i: (0, 0, 0))
    cmap = lambda b, i: (0, 0)

    kernel = functools.partial(_block_kernel, n_heads=n_heads, scale=scale)
    return pl.pallas_call(
        kernel,
        out_shape=jax.ShapeDtypeStruct((B, N, dm), x.dtype),
        grid=(B, N // tn),
        in_specs=[pl.BlockSpec((None, tn, dm), xmap),
                  pl.BlockSpec((None, M, HD), kmap),
                  pl.BlockSpec((None, M, HD), kmap),
                  pl.BlockSpec((HD, HD), cmap),
                  pl.BlockSpec((1, dm), cmap),
                  pl.BlockSpec((dm, HD), cmap),
                  pl.BlockSpec((HD, dm), cmap),
                  pl.BlockSpec((1, dm), cmap),
                  pl.BlockSpec((1, dm), cmap),
                  pl.BlockSpec((dm, F), cmap),
                  pl.BlockSpec((1, F), cmap),
                  pl.BlockSpec((1, F), cmap),
                  pl.BlockSpec((F, dm), cmap),
                  pl.BlockSpec((1, dm), cmap)],
        out_specs=pl.BlockSpec((None, tn, dm), lambda b, i: (b, i, 0)),
        compiler_params=pltpu.CompilerParams(
            dimension_semantics=("parallel", "parallel")),
    )(x, k, v, seg, g1, wq, wl, bl,
      ff['n1'], ff['w1'], ff['b1'], ff['n2'], ff['w2'], ff['b2'])


def _linear_kernel(x_ref, w_ref, b_ref, o_ref):
    y = jnp.dot(x_ref[...].astype(jnp.bfloat16), w_ref[...],
                preferred_element_type=jnp.float32) + b_ref[...]
    o_ref[...] = y.astype(o_ref.dtype)


def linear(x, w, b):
    """Optional output head. x: (R, Din), w: (Din, Dout) bf16, b: (1, Dout)."""
    # TODO(synk): if Dout < 128 the store is lane-sparse; fold the head into the
    # decode block kernel or pad to a lane-dense slab when this path matters.
    R, Din = x.shape
    Dout = w.shape[1]
    tr = _row_tile(R, ACT_TILE)
    return pl.pallas_call(
        _linear_kernel,
        out_shape=jax.ShapeDtypeStruct((R, Dout), x.dtype),
        grid=(R // tr,),
        in_specs=[pl.BlockSpec((tr, Din), lambda i: (i, 0)),
                  pl.BlockSpec((Din, Dout), lambda i: (0, 0)),
                  pl.BlockSpec((1, Dout), lambda i: (0, 0))],
        out_specs=pl.BlockSpec((tr, Dout), lambda i: (i, 0)),
        compiler_params=pltpu.CompilerParams(dimension_semantics=("parallel",)),
    )(x, w, b)


# ------------------------------ Module glue --------------------------------

def attention_block_fwd(p, x, cond=None):
    """AttentionBlock.forward with mask=None, dropout p=0 (identity)."""
    n_heads = p['n_heads']
    d_model = p['d_model']
    d_head = d_model // n_heads
    scale = d_head ** (-0.5)
    ap = p['attn']

    if cond is None:                       # self-attention: kv comes from norm1(x)
        kv_src, g2 = x, p['norm1']
    else:                                  # cross-attention: kv from norm2(cond)
        kv_src, g2 = cond, p['norm2']

    k, v = rmsnorm_kv(kv_src, g2, ap['wk'], ap['wv'])        # (Bc, M, HD) each
    return attention_block_core(x, k, v, ap['seg'], p['norm1'], ap['wq'],
                                ap['wl'], ap['bl'], p['ff'],
                                n_heads=n_heads, scale=scale)


def perceiver_io_fwd(params, x, query, latent=None, mask=None):
    # TODO(synk): masked_fill path for `mask` not implemented; forward exercised with mask=None.
    assert mask is None
    if latent is None:
        latent = params['latent']
    latent = attention_block_fwd(params['encode'], latent, cond=x)
    for blk in params['process']:
        latent = attention_block_fwd(blk, latent)
    if query.ndim == 2:
        query = query[None]
    out = attention_block_fwd(params['decode'], query, cond=latent)
    if 'out' in params:                    # nn.Linear head; Identity otherwise
        B, Nq, D = out.shape
        out = linear(out.reshape(B * Nq, D), params['out']['w'],
                     params['out']['b']).reshape(B, Nq, -1)
    return out, latent


# --------------------------- Parameter creation -----------------------------

def _uniform(key, shape, bound):
    return jax.random.uniform(key, shape, jnp.float32, -bound, bound)


def init_attention(key, query_dim, cond_dim, n_heads, d_head):
    d_model = n_heads * d_head
    kd = cond_dim if cond_dim is not None else query_dim
    kq, kk, kv = jax.random.split(key, 3)
    bq = 1.0 / math.sqrt(query_dim)
    bk = 1.0 / math.sqrt(kd)
    return {
        'wq': _uniform(kq, (query_dim, d_model), bq).astype(jnp.bfloat16),
        'wk': _uniform(kk, (kd, d_model), bk).astype(jnp.bfloat16),
        'wv': _uniform(kv, (kd, d_model), bk).astype(jnp.bfloat16),
        # zero_module(nn.Linear(d_model, d_model)): weight and bias are zero.
        'wl': jnp.zeros((d_model, d_model), jnp.bfloat16),
        'bl': jnp.zeros((1, d_model), jnp.float32),
        'seg': _head_mask(n_heads, d_head),
    }


def init_attention_block(key, d_model, n_heads, cond_dim=None, ff_dim=None):
    if ff_dim is None:
        ff_dim = d_model * 4
    ka, kw, kb = jax.random.split(key, 3)
    b1 = 1.0 / math.sqrt(d_model)
    p = {
        'n_heads': n_heads,
        'd_model': d_model,
        'norm1': jnp.ones((1, d_model), jnp.float32),
        'attn': init_attention(ka, d_model, cond_dim, n_heads, d_model // n_heads),
        'ff': {'n1': jnp.ones((1, d_model), jnp.float32),
               'w1': _uniform(kw, (d_model, ff_dim), b1).astype(jnp.bfloat16),
               'b1': _uniform(kb, (1, ff_dim), b1),
               'n2': jnp.ones((1, ff_dim), jnp.float32),
               # zero_module on the last FF linear.
               'w2': jnp.zeros((ff_dim, d_model), jnp.bfloat16),
               'b2': jnp.zeros((1, d_model), jnp.float32)},
    }
    if cond_dim is not None:
        p['norm2'] = jnp.ones((1, cond_dim), jnp.float32)
    return p


def init_perceiver_io(key, in_dim, query_dim, out_dim=None, depth=12,
                      num_latents=512, latent_dim=512, cross_heads=1, latent_heads=8):
    keys = jax.random.split(key, depth + 4)
    params = {
        'latent': jax.random.normal(keys[0], (1, num_latents, latent_dim), jnp.float32),
        'encode': init_attention_block(keys[1], latent_dim, cross_heads, cond_dim=in_dim),
        'process': [init_attention_block(keys[2 + i], latent_dim, latent_heads)
                    for i in range(depth)],
        'decode': init_attention_block(keys[2 + depth], query_dim, cross_heads,
                                       cond_dim=latent_dim),
    }
    if out_dim is not None:
        kw, kb = jax.random.split(keys[3 + depth])
        bound = 1.0 / math.sqrt(query_dim)
        params['out'] = {'w': _uniform(kw, (query_dim, out_dim), bound).astype(jnp.bfloat16),
                         'b': _uniform(kb, (1, out_dim), bound)}
    return params


# ---------------------------------- Main ------------------------------------

if __name__ == "__main__":
    key = jax.random.PRNGKey(0)
    kp, kx, kq = jax.random.split(key, 3)

    # Small shapes consistent with the module (batch=2, seq=7, small dims).
    B, M, IN_DIM = 2, 7, 32
    QUERY_DIM, NQ = 8, 5
    DEPTH, NUM_LATENTS, LATENT_DIM = 2, 16, 32
    CROSS_HEADS, LATENT_HEADS = 1, 4

    params = init_perceiver_io(kp, IN_DIM, QUERY_DIM, out_dim=None, depth=DEPTH,
                               num_latents=NUM_LATENTS, latent_dim=LATENT_DIM,
                               cross_heads=CROSS_HEADS, latent_heads=LATENT_HEADS)

    x = jax.random.uniform(kx, (B, M, IN_DIM), jnp.float32)        # like torch.rand
    query = jax.random.uniform(kq, (NQ, QUERY_DIM), jnp.float32)   # 2-D -> unsqueezed inside

    fwd = jax.jit(lambda xx, qq: perceiver_io_fwd(params, xx, qq))
    out, latent = fwd(x, query)
    jax.block_until_ready((out, latent))

    # Sanity checks. Because `zero_module` zeroes the attention output projection
    # and the last FF linear (exactly as in the PyTorch module), every residual
    # update is exactly zero, so the output must equal the (broadcast) query and
    # the returned latent must equal the (broadcast) initial latent parameter.
    assert out.shape == (B, NQ, QUERY_DIM)
    assert latent.shape == (B, NUM_LATENTS, LATENT_DIM)
    assert np.allclose(np.asarray(out),
                       np.broadcast_to(np.asarray(query)[None], out.shape))
    assert np.allclose(np.asarray(latent),
                       np.broadcast_to(np.asarray(params['latent']), latent.shape))

    print("KERNEL_OK")
</pallas_src>

<mosaic_0001>
module attributes {stable_mosaic.version = 11 : i64} {
  func.func @_rmsnorm_kv_kernel(%arg0: i32, %arg1: memref<14x32xf32, #tpu.memory_space<vmem>>, %arg2: memref<1x32xf32, #tpu.memory_space<vmem>>, %arg3: memref<32x32xbf16, #tpu.memory_space<vmem>>, %arg4: memref<32x32xbf16, #tpu.memory_space<vmem>>, %arg5: memref<14x32xf32, #tpu.memory_space<vmem>>, %arg6: memref<14x32xf32, #tpu.memory_space<vmem>>) attributes {dimension_semantics = [#tpu.dimension_semantics<parallel>], iteration_bounds = array<i64: 1>, scalar_prefetch = 0 : i64, scratch_operands = 0 : i64, tpu.core_type = #tpu.core_type<tc>, window_params = [{transform_indices = @transform_0, window_bounds = array<i64: 14, 32>}, {pipeline_mode = #tpu.pipeline_mode<synchronous>, transform_indices = @transform_1, window_bounds = array<i64: 1, 32>}, {pipeline_mode = #tpu.pipeline_mode<synchronous>, transform_indices = @transform_2, window_bounds = array<i64: 32, 32>}, {pipeline_mode = #tpu.pipeline_mode<synchronous>, transform_indices = @transform_3, window_bounds = array<i64: 32, 32>}, {transform_indices = @transform_4, window_bounds = array<i64: 14, 32>}, {transform_indices = @transform_5, window_bounds = array<i64: 14, 32>}]} {
    %c0 = arith.constant 0 : index
    %c0_0 = arith.constant 0 : index
    %0 = vector.load %arg1[%c0, %c0_0] : memref<14x32xf32, #tpu.memory_space<vmem>>, vector<14x32xf32>
    %1 = arith.mulf %0, %0 : vector<14x32xf32>
    %cst = arith.constant dense<0.000000e+00> : vector<14xf32>
    %2 = vector.multi_reduction <add>, %1, %cst [1] : vector<14x32xf32> to vector<14xf32>
    %3 = vector.shape_cast %2 : vector<14xf32> to vector<14x1xf32>
    %cst_1 = arith.constant 3.200000e+01 : f32
    %4 = vector.broadcast %cst_1 : f32 to vector<14x1xf32>
    %5 = arith.divf %3, %4 : vector<14x1xf32>
    %cst_2 = arith.constant 1.1920929E-7 : f32
    %6 = vector.broadcast %cst_2 : f32 to vector<14x1xf32>
    %7 = arith.addf %5, %6 : vector<14x1xf32>
    %8 = math.rsqrt %7 : vector<14x1xf32>
    %9 = vector.broadcast %8 : vector<14x1xf32> to vector<14x32xf32>
    %10 = arith.mulf %0, %9 : vector<14x32xf32>
    %c0_3 = arith.constant 0 : index
    %c0_4 = arith.constant 0 : index
    %11 = vector.load %arg2[%c0_3, %c0_4] : memref<1x32xf32, #tpu.memory_space<vmem>>, vector<1x32xf32>
    %12 = vector.broadcast %11 : vector<1x32xf32> to vector<14x32xf32>
    %13 = arith.mulf %10, %12 : vector<14x32xf32>
    %14 = arith.truncf %13 : vector<14x32xf32> to vector<14x32xbf16>
    %c0_5 = arith.constant 0 : index
    %c0_6 = arith.constant 0 : index
    %15 = vector.load %arg3[%c0_5, %c0_6] : memref<32x32xbf16, #tpu.memory_space<vmem>>, vector<32x32xbf16>
    %cst_7 = arith.constant dense<0.000000e+00> : vector<14x32xf32>
    %16 = tpu.matmul %14, %15, %cst_7 {dimension_numbers = #tpu.dot_dimension_numbers<[1], [0], [0], [1], [0, 0, 1, 1], [], []>} : vector<14x32xbf16>, vector<32x32xbf16>, vector<14x32xf32> -> vector<14x32xf32>
    %c0_8 = arith.constant 0 : index
    %c0_9 = arith.constant 0 : index
    %17 = vector.load %arg5[%c0_8, %c0_9] : memref<14x32xf32, #tpu.memory_space<vmem>>, vector<14x32xf32>
    tpu.vector_store %arg5[%c0_8, %c0_9], %16 {strides = array<i32>} : memref<14x32xf32, #tpu.memory_space<vmem>>, vector<14x32xf32>,
    %c0_10 = arith.constant 0 : index
    %c0_11 = arith.constant 0 : index
    %18 = vector.load %arg4[%c0_10, %c0_11] : memref<32x32xbf16, #tpu.memory_space<vmem>>, vector<32x32xbf16>
    %cst_12 = arith.constant dense<0.000000e+00> : vector<14x32xf32>
    %19 = tpu.matmul %14, %18, %cst_12 {dimension_numbers = #tpu.dot_dimension_numbers<[1], [0], [0], [1], [0, 0, 1, 1], [], []>} : vector<14x32xbf16>, vector<32x32xbf16>, vector<14x32xf32> -> vector<14x32xf32>
    %c0_13 = arith.constant 0 : index
    %c0_14 = arith.constant 0 : index
    %20 = vector.load %arg6[%c0_13, %c0_14] : memref<14x32xf32, #tpu.memory_space<vmem>>, vector<14x32xf32>
    tpu.vector_store %arg6[%c0_13, %c0_14], %19 {strides = array<i32>} : memref<14x32xf32, #tpu.memory_space<vmem>>, vector<14x32xf32>,
    return
  }
  func.func @transform_0(%arg0: i32) -> (i32, i32) {
    %c0_i32 = arith.constant 0 : i32
    %c0_i32_0 = arith.constant 0 : i32
    return %arg0, %c0_i32 : i32, i32
  }
  func.func @transform_1(%arg0: i32) -> (i32, i32) {
    %c0_i32 = arith.constant 0 : i32
    %c0_i32_0 = arith.constant 0 : i32
    %c0_i32_1 = arith.constant 0 : i32
    return %c0_i32, %c0_i32_0 : i32, i32
  }
  func.func @transform_2(%arg0: i32) -> (i32, i32) {
    %c0_i32 = arith.constant 0 : i32
    %c0_i32_0 = arith.constant 0 : i32
    %c0_i32_1 = arith.constant 0 : i32
    return %c0_i32, %c0_i32_0 : i32, i32
  }
  func.func @transform_3(%arg0: i32) -> (i32, i32) {
    %c0_i32 = arith.constant 0 : i32
    %c0_i32_0 = arith.constant 0 : i32
    %c0_i32_1 = arith.constant 0 : i32
    return %c0_i32, %c0_i32_0 : i32, i32
  }
  func.func @transform_4(%arg0: i32) -> (i32, i32) {
    %c0_i32 = arith.constant 0 : i32
    %c0_i32_0 = arith.constant 0 : i32
    return %arg0, %c0_i32 : i32, i32
  }
  func.func @transform_5(%arg0: i32) -> (i32, i32) {
    %c0_i32 = arith.constant 0 : i32
    %c0_i32_0 = arith.constant 0 : i32
    return %arg0, %c0_i32 : i32, i32
  }
}

module attributes {stable_mosaic.version = 11 : i64} {
  func.func @_block_kernel(%arg0: i32, %arg1: i32, %arg2: memref<1x16x32xf32, #tpu.memory_space<vmem>>, %arg3: memref<1x7x32xf32, #tpu.memory_space<vmem>>, %arg4: memref<1x7x32xf32, #tpu.memory_space<vmem>>, %arg5: memref<32x32xf32, #tpu.memory_space<vmem>>, %arg6: memref<1x32xf32, #tpu.memory_space<vmem>>, %arg7: memref<32x32xbf16, #tpu.memory_space<vmem>>, %arg8: memref<32x32xbf16, #tpu.memory_space<vmem>>, %arg9: memref<1x32xf32, #tpu.memory_space<vmem>>, %arg10: memref<1x32xf32, #tpu.memory_space<vmem>>, %arg11: memref<32x128xbf16, #tpu.memory_space<vmem>>, %arg12: memref<1x128xf32, #tpu.memory_space<vmem>>, %arg13: memref<1x128xf32, #tpu.memory_space<vmem>>, %arg14: memref<128x32xbf16, #tpu.memory_space<vmem>>, %arg15: memref<1x32xf32, #tpu.memory_space<vmem>>, %arg16: memref<1x16x32xf32, #tpu.memory_space<vmem>>) attributes {dimension_semantics = [#tpu.dimension_semantics<parallel>, #tpu.dimension_semantics<parallel>], iteration_bounds = array<i64: 2, 1>, scalar_prefetch = 0 : i64, scratch_operands = 0 : i64, tpu.core_type = #tpu.core_type<tc>, window_params = [{transform_indices = @transform_0, window_bounds = array<i64: 1, 16, 32>}, {transform_indices = @transform_1, window_bounds = array<i64: 1, 7, 32>}, {transform_indices = @transform_2, window_bounds = array<i64: 1, 7, 32>}, {pipeline_mode = #tpu.pipeline_mode<synchronous>, transform_indices = @transform_3, window_bounds = array<i64: 32, 32>}, {pipeline_mode = #tpu.pipeline_mode<synchronous>, transform_indices = @transform_4, window_bounds = array<i64: 1, 32>}, {pipeline_mode = #tpu.pipeline_mode<synchronous>, transform_indices = @transform_5, window_bounds = array<i64: 32, 32>}, {pipeline_mode = #tpu.pipeline_mode<synchronous>, transform_indices = @transform_6, window_bounds = array<i64: 32, 32>}, {pipeline_mode = #tpu.pipeline_mode<synchronous>, transform_indices = @transform_7, window_bounds = array<i64: 1, 32>}, {pipeline_mode = #tpu.pipeline_mode<synchronous>, transform_indices = @transform_8, window_bounds = array<i64: 1, 32>}, {pipeline_mode = #tpu.pipeline_mode<synchronous>, transform_indices = @transform_9, window_bounds = array<i64: 32, 128>}, {pipeline_mode = #tpu.pipeline_mode<synchronous>, transform_indices = @transform_10, window_bounds = array<i64: 1, 128>}, {pipeline_mode = #tpu.pipeline_mode<synchronous>, transform_indices = @transform_11, window_bounds = array<i64: 1, 128>}, {pipeline_mode = #tpu.pipeline_mode<synchronous>, transform_indices = @transform_12, window_bounds = array<i64: 128, 32>}, {pipeline_mode = #tpu.pipeline_mode<synchronous>, transform_indices = @transform_13, window_bounds = array<i64: 1, 32>}, {transform_indices = @transform_14, window_bounds = array<i64: 1, 16, 32>}]} {
    %c0 = arith.constant 0 : index
    %c0_0 = arith.constant 0 : index
    %c0_1 = arith.constant 0 : index
    %0 = vector.load %arg2[%c0, %c0_0, %c0_1] : memref<1x16x32xf32, #tpu.memory_space<vmem>>, vector<1x16x32xf32>
    %1 = vector.shape_cast %0 : vector<1x16x32xf32> to vector<16x32xf32>
    %2 = arith.mulf %1, %1 : vector<16x32xf32>
    %cst = arith.constant dense<0.000000e+00> : vector<16xf32>
    %3 = vector.multi_reduction <add>, %2, %cst [1] : vector<16x32xf32> to vector<16xf32>
    %4 = vector.shape_cast %3 : vector<16xf32> to vector<16x1xf32>
    %cst_2 = arith.constant 3.200000e+01 : f32
    %5 = vector.broadcast %cst_2 : f32 to vector<16x1xf32>
    %6 = arith.divf %4, %5 : vector<16x1xf32>
    %cst_3 = arith.constant 1.1920929E-7 : f32
    %7 = vector.broadcast %cst_3 : f32 to vector<16x1xf32>
    %8 = arith.addf %6, %7 : vector<16x1xf32>
    %9 = math.rsqrt %8 : vector<16x1xf32>
    %10 = vector.broadcast %9 : vector<16x1xf32> to vector<16x32xf32>
    %11 = arith.mulf %1, %10 : vector<16x32xf32>
    %c0_4 = arith.constant 0 : index
    %c0_5 = arith.constant 0 : index
    %12 = vector.load %arg6[%c0_4, %c0_5] : memref<1x32xf32, #tpu.memory_space<vmem>>, vector<1x32xf32>
    %13 = vector.broadcast %12 : vector<1x32xf32> to vector<16x32xf32>
    %14 = arith.mulf %11, %13 : vector<16x32xf32>
    %15 = arith.truncf %14 : vector<16x32xf32> to vector<16x32xbf16>
    %c0_6 = arith.constant 0 : index
    %c0_7 = arith.constant 0 : index
    %16 = vector.load %arg7[%c0_6, %c0_7] : memref<32x32xbf16, #tpu.memory_space<vmem>>, vector<32x32xbf16>
    %cst_8 = arith.constant dense<0.000000e+00> : vector<16x32xf32>
    %17 = tpu.matmul %15, %16, %cst_8 {dimension_numbers = #tpu.dot_dimension_numbers<[1], [0], [0], [1], [0, 0, 1, 1], [], []>} : vector<16x32xbf16>, vector<32x32xbf16>, vector<16x32xf32> -> vector<16x32xf32>
    %c0_9 = arith.constant 0 : index
    %c0_10 = arith.constant 0 : index
    %c0_11 = arith.constant 0 : index
    %18 = vector.load %arg3[%c0_9, %c0_10, %c0_11] : memref<1x7x32xf32, #tpu.memory_space<vmem>>, vector<1x7x32xf32>
    %19 = vector.shape_cast %18 : vector<1x7x32xf32> to vector<7x32xf32>
    %c0_12 = arith.constant 0 : index
    %c0_13 = arith.constant 0 : index
    %c0_14 = arith.constant 0 : index
    %20 = vector.load %arg4[%c0_12, %c0_13, %c0_14] : memref<1x7x32xf32, #tpu.memory_space<vmem>>, vector<1x7x32xf32>
    %21 = vector.shape_cast %20 : vector<1x7x32xf32> to vector<7x32xf32>
    %cst_15 = arith.constant dense<0xFF800000> : vector<16xf32>
    %22 = vector.multi_reduction <maximumf>, %17, %cst_15 [1] : vector<16x32xf32> to vector<16xf32>
    %23 = vector.shape_cast %22 : vector<16xf32> to vector<16x1xf32>
    %24 = vector.broadcast %23 : vector<16x1xf32> to vector<16x32xf32>
    %25 = arith.subf %17, %24 : vector<16x32xf32>
    %26 = math.exp %25 : vector<16x32xf32>
    %cst_16 = arith.constant dense<0.000000e+00> : vector<16xf32>
    %27 = vector.multi_reduction <add>, %26, %cst_16 [1] : vector<16x32xf32> to vector<16xf32>
    %28 = vector.shape_cast %27 : vector<16xf32> to vector<16x1xf32>
    %29 = vector.broadcast %28 : vector<16x1xf32> to vector<16x32xf32>
    %30 = arith.divf %26, %29 : vector<16x32xf32>
    %cst_17 = arith.constant dense<0xFF800000> : vector<32xf32>
    %31 = vector.multi_reduction <maximumf>, %19, %cst_17 [0] : vector<7x32xf32> to vector<32xf32>
    %32 = vector.shape_cast %31 : vector<32xf32> to vector<1x32xf32>
    %33 = vector.broadcast %32 : vector<1x32xf32> to vector<7x32xf32>
    %34 = arith.subf %19, %33 : vector<7x32xf32>
    %35 = math.exp %34 : vector<7x32xf32>
    %cst_18 = arith.constant dense<0.000000e+00> : vector<32xf32>
    %36 = vector.multi_reduction <add>, %35, %cst_18 [0] : vector<7x32xf32> to vector<32xf32>
    %37 = vector.shape_cast %36 : vector<32xf32> to vector<1x32xf32>
    %38 = vector.broadcast %37 : vector<1x32xf32> to vector<7x32xf32>
    %39 = arith.divf %35, %38 : vector<7x32xf32>
    %cst_19 = arith.constant dense<0.000000e+00> : vector<32x32xf32>
    %40 = tpu.matmul %39, %21, %cst_19 {dimension_numbers = #tpu.dot_dimension_numbers<[0], [0], [1], [1], [0, 1, 1, 1], [], []>} : vector<7x32xf32>, vector<7x32xf32>, vector<32x32xf32> -> vector<32x32xf32>
    %cst_20 = arith.constant 0.176776692 : f32
    %41 = vector.broadcast %cst_20 : f32 to vector<32x32xf32>
    %42 = arith.mulf %40, %41 : vector<32x32xf32>
    %cst_21 = arith.constant dense<0.000000e+00> : vector<16x32xf32>
    %43 = tpu.matmul %30, %42, %cst_21 {dimension_numbers = #tpu.dot_dimension_numbers<[1], [0], [0], [1], [0, 0, 1, 1], [], []>} : vector<16x32xf32>, vector<32x32xf32>, vector<16x32xf32> -> vector<16x32xf32>
    %44 = arith.truncf %43 : vector<16x32xf32> to vector<16x32xbf16>
    %c0_22 = arith.constant 0 : index
    %c0_23 = arith.constant 0 : index
    %45 = vector.load %arg8[%c0_22, %c0_23] : memref<32x32xbf16, #tpu.memory_space<vmem>>, vector<32x32xbf16>
    %cst_24 = arith.constant dense<0.000000e+00> : vector<16x32xf32>
    %46 = tpu.matmul %44, %45, %cst_24 {dimension_numbers = #tpu.dot_dimension_numbers<[1], [0], [0], [1], [0, 0, 1, 1], [], []>} : vector<16x32xbf16>, vector<32x32xbf16>, vector<16x32xf32> -> vector<16x32xf32>
    %47 = arith.addf %1, %46 : vector<16x32xf32>
    %c0_25 = arith.constant 0 : index
    %c0_26 = arith.constant 0 : index
    %48 = vector.load %arg9[%c0_25, %c0_26] : memref<1x32xf32, #tpu.memory_space<vmem>>, vector<1x32xf32>
    %49 = vector.broadcast %48 : vector<1x32xf32> to vector<16x32xf32>
    %50 = arith.addf %47, %49 : vector<16x32xf32>
    %51 = arith.mulf %50, %50 : vector<16x32xf32>
    %cst_27 = arith.constant dense<0.000000e+00> : vector<16xf32>
    %52 = vector.multi_reduction <add>, %51, %cst_27 [1] : vector<16x32xf32> to vector<16xf32>
    %53 = vector.shape_cast %52 : vector<16xf32> to vector<16x1xf32>
    %cst_28 = arith.constant 3.200000e+01 : f32
    %54 = vector.broadcast %cst_28 : f32 to vector<16x1xf32>
    %55 = arith.divf %53, %54 : vector<16x1xf32>
    %cst_29 = arith.constant 1.1920929E-7 : f32
    %56 = vector.broadcast %cst_29 : f32 to vector<16x1xf32>
    %57 = arith.addf %55, %56 : vector<16x1xf32>
    %58 = math.rsqrt %57 : vector<16x1xf32>
    %59 = vector.broadcast %58 : vector<16x1xf32> to vector<16x32xf32>
    %60 = arith.mulf %50, %59 : vector<16x32xf32>
    %c0_30 = arith.constant 0 : index
    %c0_31 = arith.constant 0 : index
    %61 = vector.load %arg10[%c0_30, %c0_31] : memref<1x32xf32, #tpu.memory_space<vmem>>, vector<1x32xf32>
    %62 = vector.broadcast %61 : vector<1x32xf32> to vector<16x32xf32>
    %63 = arith.mulf %60, %62 : vector<16x32xf32>
    %cst_32 = arith.constant 0.000000e+00 : f32
    %64 = vector.broadcast %cst_32 : f32 to vector<16x32xf32>
    %65 = arith.maximumf %63, %64 : vector<16x32xf32>
    %66 = arith.truncf %65 : vector<16x32xf32> to vector<16x32xbf16>
    %c0_33 = arith.constant 0 : index
    %c0_34 = arith.constant 0 : index
    %67 = vector.load %arg11[%c0_33, %c0_34] : memref<32x128xbf16, #tpu.memory_space<vmem>>, vector<32x128xbf16>
    %cst_35 = arith.constant dense<0.000000e+00> : vector<16x128xf32>
    %68 = tpu.matmul %66, %67, %cst_35 {dimension_numbers = #tpu.dot_dimension_numbers<[1], [0], [0], [1], [0, 0, 1, 1], [], []>} : vector<16x32xbf16>, vector<32x128xbf16>, vector<16x128xf32> -> vector<16x128xf32>
    %c0_36 = arith.constant 0 : index
    %c0_37 = arith.constant 0 : index
    %69 = vector.load %arg12[%c0_36, %c0_37] : memref<1x128xf32, #tpu.memory_space<vmem>>, vector<1x128xf32>
    %70 = vector.broadcast %69 : vector<1x128xf32> to vector<16x128xf32>
    %71 = arith.addf %68, %70 : vector<16x128xf32>
    %72 = arith.mulf %71, %71 : vector<16x128xf32>
    %cst_38 = arith.constant dense<0.000000e+00> : vector<16xf32>
    %73 = vector.multi_reduction <add>, %72, %cst_38 [1] : vector<16x128xf32> to vector<16xf32>
    %74 = vector.shape_cast %73 : vector<16xf32> to vector<16x1xf32>
    %cst_39 = arith.constant 1.280000e+02 : f32
    %75 = vector.broadcast %cst_39 : f32 to vector<16x1xf32>
    %76 = arith.divf %74, %75 : vector<16x1xf32>
    %cst_40 = arith.constant 1.1920929E-7 : f32
    %77 = vector.broadcast %cst_40 : f32 to vector<16x1xf32>
    %78 = arith.addf %76, %77 : vector<16x1xf32>
    %79 = math.rsqrt %78 : vector<16x1xf32>
    %80 = vector.broadcast %79 : vector<16x1xf32> to vector<16x128xf32>
    %81 = arith.mulf %71, %80 : vector<16x128xf32>
    %c0_41 = arith.constant 0 : index
    %c0_42 = arith.constant 0 : index
    %82 = vector.load %arg13[%c0_41, %c0_42] : memref<1x128xf32, #tpu.memory_space<vmem>>, vector<1x128xf32>
    %83 = vector.broadcast %82 : vector<1x128xf32> to vector<16x128xf32>
    %84 = arith.mulf %81, %83 : vector<16x128xf32>
    %cst_43 = arith.constant 0.000000e+00 : f32
    %85 = vector.broadcast %cst_43 : f32 to vector<16x128xf32>
    %86 = arith.maximumf %84, %85 : vector<16x128xf32>
    %87 = arith.truncf %86 : vector<16x128xf32> to vector<16x128xbf16>
    %c0_44 = arith.constant 0 : index
    %c0_45 = arith.constant 0 : index
    %88 = vector.load %arg14[%c0_44, %c0_45] : memref<128x32xbf16, #tpu.memory_space<vmem>>, vector<128x32xbf16>
    %cst_46 = arith.constant dense<0.000000e+00> : vector<16x32xf32>
    %89 = tpu.matmul %87, %88, %cst_46 {dimension_numbers = #tpu.dot_dimension_numbers<[1], [0], [0], [1], [0, 0, 1, 1], [], []>} : vector<16x128xbf16>, vector<128x32xbf16>, vector<16x32xf32> -> vector<16x32xf32>
    %c0_47 = arith.constant 0 : index
    %c0_48 = arith.constant 0 : index
    %90 = vector.load %arg15[%c0_47, %c0_48] : memref<1x32xf32, #tpu.memory_space<vmem>>, vector<1x32xf32>
    %91 = vector.broadcast %90 : vector<1x32xf32> to vector<16x32xf32>
    %92 = arith.addf %89, %91 : vector<16x32xf32>
    %93 = arith.addf %50, %92 : vector<16x32xf32>
    %c0_49 = arith.constant 0 : index
    %c0_50 = arith.constant 0 : index
    %c0_51 = arith.constant 0 : index
    %94 = vector.load %arg16[%c0_49, %c0_50, %c0_51] : memref<1x16x32xf32, #tpu.memory_space<vmem>>, vector<1x16x32xf32>
    %95 = vector.shape_cast %94 : vector<1x16x32xf32> to vector<16x32xf32>
    %96 = vector.shape_cast %93 : vector<16x32xf32> to vector<1x16x32xf32>
    tpu.vector_store %arg16[%c0_49, %c0_50, %c0_51], %96 {strides = array<i32>} : memref<1x16x32xf32, #tpu.memory_space<vmem>>, vector<1x16x32xf32>,
    return
  }
  func.func @transform_0(%arg0: i32, %arg1: i32) -> (i32, i32, i32) {
    %c0_i32 = arith.constant 0 : i32
    %c0_i32_0 = arith.constant 0 : i32
    %c0_i32_1 = arith.constant 0 : i32
    return %c0_i32, %arg1, %c0_i32_0 : i32, i32, i32
  }
  func.func @transform_1(%arg0: i32, %arg1: i32) -> (i32, i32, i32) {
    %c0_i32 = arith.constant 0 : i32
    %c0_i32_0 = arith.constant 0 : i32
    %c0_i32_1 = arith.constant 0 : i32
    return %arg0, %c0_i32, %c0_i32_0 : i32, i32, i32
  }
  func.func @transform_2(%arg0: i32, %arg1: i32) -> (i32, i32, i32) {
    %c0_i32 = arith.constant 0 : i32
    %c0_i32_0 = arith.constant 0 : i32
    %c0_i32_1 = arith.constant 0 : i32
    return %arg0, %c0_i32, %c0_i32_0 : i32, i32, i32
  }
  func.func @transform_3(%arg0: i32, %arg1: i32) -> (i32, i32) {
    %c0_i32 = arith.constant 0 : i32
    %c0_i32_0 = arith.constant 0 : i32
    %c0_i32_1 = arith.constant 0 : i32
    return %c0_i32, %c0_i32_0 : i32, i32
  }
  func.func @transform_4(%arg0: i32, %arg1: i32) -> (i32, i32) {
    %c0_i32 = arith.constant 0 : i32
    %c0_i32_0 = arith.constant 0 : i32
    %c0_i32_1 = arith.constant 0 : i32
    return %c0_i32, %c0_i32_0 : i32, i32
  }
  func.func @transform_5(%arg0: i32, %arg1: i32) -> (i32, i32) {
    %c0_i32 = arith.constant 0 : i32
    %c0_i32_0 = arith.constant 0 : i32
    %c0_i32_1 = arith.constant 0 : i32
    return %c0_i32, %c0_i32_0 : i32, i32
  }
  func.func @transform_6(%arg0: i32, %arg1: i32) -> (i32, i32) {
    %c0_i32 = arith.constant 0 : i32
    %c0_i32_0 = arith.constant 0 : i32
    %c0_i32_1 = arith.constant 0 : i32
    return %c0_i32, %c0_i32_0 : i32, i32
  }
  func.func @transform_7(%arg0: i32, %arg1: i32) -> (i32, i32) {
    %c0_i32 = arith.constant 0 : i32
    %c0_i32_0 = arith.constant 0 : i32
    %c0_i32_1 = arith.constant 0 : i32
    return %c0_i32, %c0_i32_0 : i32, i32
  }
  func.func @transform_8(%arg0: i32, %arg1: i32) -> (i32, i32) {
    %c0_i32 = arith.constant 0 : i32
    %c0_i32_0 = arith.constant 0 : i32
    %c0_i32_1 = arith.constant 0 : i32
    return %c0_i32, %c0_i32_0 : i32, i32
  }
  func.func @transform_9(%arg0: i32, %arg1: i32) -> (i32, i32) {
    %c0_i32 = arith.constant 0 : i32
    %c0_i32_0 = arith.constant 0 : i32
    %c0_i32_1 = arith.constant 0 : i32
    return %c0_i32, %c0_i32_0 : i32, i32
  }
  func.func @transform_10(%arg0: i32, %arg1: i32) -> (i32, i32) {
    %c0_i32 = arith.constant 0 : i32
    %c0_i32_0 = arith.constant 0 : i32
    %c0_i32_1 = arith.constant 0 : i32
    return %c0_i32, %c0_i32_0 : i32, i32
  }
  func.func @transform_11(%arg0: i32, %arg1: i32) -> (i32, i32) {
    %c0_i32 = arith.constant 0 : i32
    %c0_i32_0 = arith.constant 0 : i32
    %c0_i32_1 = arith.constant 0 : i32
    return %c0_i32, %c0_i32_0 : i32, i32
  }
  func.func @transform_12(%arg0: i32, %arg1: i32) -> (i32, i32) {
    %c0_i32 = arith.constant 0 : i32
    %c0_i32_0 = arith.constant 0 : i32
    %c0_i32_1 = arith.constant 0 : i32
    return %c0_i32, %c0_i32_0 : i32, i32
  }
  func.func @transform_13(%arg0: i32, %arg1: i32) -> (i32, i32) {
    %c0_i32 = arith.constant 0 : i32
    %c0_i32_0 = arith.constant 0 : i32
    %c0_i32_1 = arith.constant 0 : i32
    return %c0_i32, %c0_i32_0 : i32, i32
  }
  func.func @transform_14(%arg0: i32, %arg1: i32) -> (i32, i32, i32) {
    %c0_i32 = arith.constant 0 : i32
    %c0_i32_0 = arith.constant 0 : i32
    return %arg0, %arg1, %c0_i32 : i32, i32, i32
  }
}

module attributes {stable_mosaic.version = 11 : i64} {
  func.func @_rmsnorm_kv_kernel(%arg0: i32, %arg1: memref<32x32xf32, #tpu.memory_space<vmem>>, %arg2: memref<1x32xf32, #tpu.memory_space<vmem>>, %arg3: memref<32x32xbf16, #tpu.memory_space<vmem>>, %arg4: memref<32x32xbf16, #tpu.memory_space<vmem>>, %arg5: memref<32x32xf32, #tpu.memory_space<vmem>>, %arg6: memref<32x32xf32, #tpu.memory_space<vmem>>) attributes {dimension_semantics = [#tpu.dimension_semantics<parallel>], iteration_bounds = array<i64: 1>, scalar_prefetch = 0 : i64, scratch_operands = 0 : i64, tpu.core_type = #tpu.core_type<tc>, window_params = [{transform_indices = @transform_0, window_bounds = array<i64: 32, 32>}, {pipeline_mode = #tpu.pipeline_mode<synchronous>, transform_indices = @transform_1, window_bounds = array<i64: 1, 32>}, {pipeline_mode = #tpu.pipeline_mode<synchronous>, transform_indices = @transform_2, window_bounds = array<i64: 32, 32>}, {pipeline_mode = #tpu.pipeline_mode<synchronous>, transform_indices = @transform_3, window_bounds = array<i64: 32, 32>}, {transform_indices = @transform_4, window_bounds = array<i64: 32, 32>}, {transform_indices = @transform_5, window_bounds = array<i64: 32, 32>}]} {
    %c0 = arith.constant 0 : index
    %c0_0 = arith.constant 0 : index
    %0 = vector.load %arg1[%c0, %c0_0] : memref<32x32xf32, #tpu.memory_space<vmem>>, vector<32x32xf32>
    %1 = arith.mulf %0, %0 : vector<32x32xf32>
    %cst = arith.constant dense<0.000000e+00> : vector<32xf32>
    %2 = vector.multi_reduction <add>, %1, %cst [1] : vector<32x32xf32> to vector<32xf32>
    %3 = vector.shape_cast %2 : vector<32xf32> to vector<32x1xf32>
    %cst_1 = arith.constant 3.200000e+01 : f32
    %4 = vector.broadcast %cst_1 : f32 to vector<32x1xf32>
    %5 = arith.divf %3, %4 : vector<32x1xf32>
    %cst_2 = arith.constant 1.1920929E-7 : f32
    %6 = vector.broadcast %cst_2 : f32 to vector<32x1xf32>
    %7 = arith.addf %5, %6 : vector<32x1xf32>
    %8 = math.rsqrt %7 : vector<32x1xf32>
    %9 = vector.broadcast %8 : vector<32x1xf32> to vector<32x32xf32>
    %10 = arith.mulf %0, %9 : vector<32x32xf32>
    %c0_3 = arith.constant 0 : index
    %c0_4 = arith.constant 0 : index
    %11 = vector.load %arg2[%c0_3, %c0_4] : memref<1x32xf32, #tpu.memory_space<vmem>>, vector<1x32xf32>
    %12 = vector.broadcast %11 : vector<1x32xf32> to vector<32x32xf32>
    %13 = arith.mulf %10, %12 : vector<32x32xf32>
    %14 = arith.truncf %13 : vector<32x32xf32> to vector<32x32xbf16>
    %c0_5 = arith.constant 0 : index
    %c0_6 = arith.constant 0 : index
    %15 = vector.load %arg3[%c0_5, %c0_6] : memref<32x32xbf16, #tpu.memory_space<vmem>>, vector<32x32xbf16>
    %cst_7 = arith.constant dense<0.000000e+00> : vector<32x32xf32>
    %16 = tpu.matmul %14, %15, %cst_7 {dimension_numbers = #tpu.dot_dimension_numbers<[1], [0], [0], [1], [0, 0, 1, 1], [], []>} : vector<32x32xbf16>, vector<32x32xbf16>, vector<32x32xf32> -> vector<32x32xf32>
    %c0_8 = arith.constant 0 : index
    %c0_9 = arith.constant 0 : index
    %17 = vector.load %arg5[%c0_8, %c0_9] : memref<32x32xf32, #tpu.memory_space<vmem>>, vector<32x32xf32>
    tpu.vector_store %arg5[%c0_8, %c0_9], %16 {strides = array<i32>} : memref<32x32xf32, #tpu.memory_space<vmem>>, vector<32x32xf32>,
    %c0_10 = arith.constant 0 : index
    %c0_11 = arith.constant 0 : index
    %18 = vector.load %arg4[%c0_10, %c0_11] : memref<32x32xbf16, #tpu.memory_space<vmem>>, vector<32x32xbf16>
    %cst_12 = arith.constant dense<0.000000e+00> : vector<32x32xf32>
    %19 = tpu.matmul %14, %18, %cst_12 {dimension_numbers = #tpu.dot_dimension_numbers<[1], [0], [0], [1], [0, 0, 1, 1], [], []>} : vector<32x32xbf16>, vector<32x32xbf16>, vector<32x32xf32> -> vector<32x32xf32>
    %c0_13 = arith.constant 0 : index
    %c0_14 = arith.constant 0 : index
    %20 = vector.load %arg6[%c0_13, %c0_14] : memref<32x32xf32, #tpu.memory_space<vmem>>, vector<32x32xf32>
    tpu.vector_store %arg6[%c0_13, %c0_14], %19 {strides = array<i32>} : memref<32x32xf32, #tpu.memory_space<vmem>>, vector<32x32xf32>,
    return
  }
  func.func @transform_0(%arg0: i32) -> (i32, i32) {
    %c0_i32 = arith.constant 0 : i32
    %c0_i32_0 = arith.constant 0 : i32
    return %arg0, %c0_i32 : i32, i32
  }
  func.func @transform_1(%arg0: i32) -> (i32, i32) {
    %c0_i32 = arith.constant 0 : i32
    %c0_i32_0 = arith.constant 0 : i32
    %c0_i32_1 = arith.constant 0 : i32
    return %c0_i32, %c0_i32_0 : i32, i32
  }
  func.func @transform_2(%arg0: i32) -> (i32, i32) {
    %c0_i32 = arith.constant 0 : i32
    %c0_i32_0 = arith.constant 0 : i32
    %c0_i32_1 = arith.constant 0 : i32
    return %c0_i32, %c0_i32_0 : i32, i32
  }
  func.func @transform_3(%arg0: i32) -> (i32, i32) {
    %c0_i32 = arith.constant 0 : i32
    %c0_i32_0 = arith.constant 0 : i32
    %c0_i32_1 = arith.constant 0 : i32
    return %c0_i32, %c0_i32_0 : i32, i32
  }
  func.func @transform_4(%arg0: i32) -> (i32, i32) {
    %c0_i32 = arith.constant 0 : i32
    %c0_i32_0 = arith.constant 0 : i32
    return %arg0, %c0_i32 : i32, i32
  }
  func.func @transform_5(%arg0: i32) -> (i32, i32) {
    %c0_i32 = arith.constant 0 : i32
    %c0_i32_0 = arith.constant 0 : i32
    return %arg0, %c0_i32 : i32, i32
  }
}

module attributes {stable_mosaic.version = 11 : i64} {
  func.func @_block_kernel(%arg0: i32, %arg1: i32, %arg2: memref<1x16x32xf32, #tpu.memory_space<vmem>>, %arg3: memref<1x16x32xf32, #tpu.memory_space<vmem>>, %arg4: memref<1x16x32xf32, #tpu.memory_space<vmem>>, %arg5: memref<32x32xf32, #tpu.memory_space<vmem>>, %arg6: memref<1x32xf32, #tpu.memory_space<vmem>>, %arg7: memref<32x32xbf16, #tpu.memory_space<vmem>>, %arg8: memref<32x32xbf16, #tpu.memory_space<vmem>>, %arg9: memref<1x32xf32, #tpu.memory_space<vmem>>, %arg10: memref<1x32xf32, #tpu.memory_space<vmem>>, %arg11: memref<32x128xbf16, #tpu.memory_space<vmem>>, %arg12: memref<1x128xf32, #tpu.memory_space<vmem>>, %arg13: memref<1x128xf32, #tpu.memory_space<vmem>>, %arg14: memref<128x32xbf16, #tpu.memory_space<vmem>>, %arg15: memref<1x32xf32, #tpu.memory_space<vmem>>, %arg16: memref<1x16x32xf32, #tpu.memory_space<vmem>>) attributes {dimension_semantics = [#tpu.dimension_semantics<parallel>, #tpu.dimension_semantics<parallel>], iteration_bounds = array<i64: 2, 1>, scalar_prefetch = 0 : i64, scratch_operands = 0 : i64, tpu.core_type = #tpu.core_type<tc>, window_params = [{transform_indices = @transform_0, window_bounds = array<i64: 1, 16, 32>}, {transform_indices = @transform_1, window_bounds = array<i64: 1, 16, 32>}, {transform_indices = @transform_2, window_bounds = array<i64: 1, 16, 32>}, {pipeline_mode = #tpu.pipeline_mode<synchronous>, transform_indices = @transform_3, window_bounds = array<i64: 32, 32>}, {pipeline_mode = #tpu.pipeline_mode<synchronous>, transform_indices = @transform_4, window_bounds = array<i64: 1, 32>}, {pipeline_mode = #tpu.pipeline_mode<synchronous>, transform_indices = @transform_5, window_bounds = array<i64: 32, 32>}, {pipeline_mode = #tpu.pipeline_mode<synchronous>, transform_indices = @transform_6, window_bounds = array<i64: 32, 32>}, {pipeline_mode = #tpu.pipeline_mode<synchronous>, transform_indices = @transform_7, window_bounds = array<i64: 1, 32>}, {pipeline_mode = #tpu.pipeline_mode<synchronous>, transform_indices = @transform_8, window_bounds = array<i64: 1, 32>}, {pipeline_mode = #tpu.pipeline_mode<synchronous>, transform_indices = @transform_9, window_bounds = array<i64: 32, 128>}, {pipeline_mode = #tpu.pipeline_mode<synchronous>, transform_indices = @transform_10, window_bounds = array<i64: 1, 128>}, {pipeline_mode = #tpu.pipeline_mode<synchronous>, transform_indices = @transform_11, window_bounds = array<i64: 1, 128>}, {pipeline_mode = #tpu.pipeline_mode<synchronous>, transform_indices = @transform_12, window_bounds = array<i64: 128, 32>}, {pipeline_mode = #tpu.pipeline_mode<synchronous>, transform_indices = @transform_13, window_bounds = array<i64: 1, 32>}, {transform_indices = @transform_14, window_bounds = array<i64: 1, 16, 32>}]} {
    %c0 = arith.constant 0 : index
    %c0_0 = arith.constant 0 : index
    %c0_1 = arith.constant 0 : index
    %0 = vector.load %arg2[%c0, %c0_0, %c0_1] : memref<1x16x32xf32, #tpu.memory_space<vmem>>, vector<1x16x32xf32>
    %1 = vector.shape_cast %0 : vector<1x16x32xf32> to vector<16x32xf32>
    %2 = arith.mulf %1, %1 : vector<16x32xf32>
    %cst = arith.constant dense<0.000000e+00> : vector<16xf32>
    %3 = vector.multi_reduction <add>, %2, %cst [1] : vector<16x32xf32> to vector<16xf32>
    %4 = vector.shape_cast %3 : vector<16xf32> to vector<16x1xf32>
    %cst_2 = arith.constant 3.200000e+01 : f32
    %5 = vector.broadcast %cst_2 : f32 to vector<16x1xf32>
    %6 = arith.divf %4, %5 : vector<16x1xf32>
    %cst_3 = arith.constant 1.1920929E-7 : f32
    %7 = vector.broadcast %cst_3 : f32 to vector<16x1xf32>
    %8 = arith.addf %6, %7 : vector<16x1xf32>
    %9 = math.rsqrt %8 : vector<16x1xf32>
    %10 = vector.broadcast %9 : vector<16x1xf32> to vector<16x32xf32>
    %11 = arith.mulf %1, %10 : vector<16x32xf32>
    %c0_4 = arith.constant 0 : index
    %c0_5 = arith.constant 0 : index
    %12 = vector.load %arg6[%c0_4, %c0_5] : memref<1x32xf32, #tpu.memory_space<vmem>>, vector<1x32xf32>
    %13 = vector.broadcast %12 : vector<1x32xf32> to vector<16x32xf32>
    %14 = arith.mulf %11, %13 : vector<16x32xf32>
    %15 = arith.truncf %14 : vector<16x32xf32> to vector<16x32xbf16>
    %c0_6 = arith.constant 0 : index
    %c0_7 = arith.constant 0 : index
    %16 = vector.load %arg7[%c0_6, %c0_7] : memref<32x32xbf16, #tpu.memory_space<vmem>>, vector<32x32xbf16>
    %cst_8 = arith.constant dense<0.000000e+00> : vector<16x32xf32>
    %17 = tpu.matmul %15, %16, %cst_8 {dimension_numbers = #tpu.dot_dimension_numbers<[1], [0], [0], [1], [0, 0, 1, 1], [], []>} : vector<16x32xbf16>, vector<32x32xbf16>, vector<16x32xf32> -> vector<16x32xf32>
    %c0_9 = arith.constant 0 : index
    %c0_10 = arith.constant 0 : index
    %c0_11 = arith.constant 0 : index
    %18 = vector.load %arg3[%c0_9, %c0_10, %c0_11] : memref<1x16x32xf32, #tpu.memory_space<vmem>>, vector<1x16x32xf32>
    %19 = vector.shape_cast %18 : vector<1x16x32xf32> to vector<16x32xf32>
    %c0_12 = arith.constant 0 : index
    %c0_13 = arith.constant 0 : index
    %c0_14 = arith.constant 0 : index
    %20 = vector.load %arg4[%c0_12, %c0_13, %c0_14] : memref<1x16x32xf32, #tpu.memory_space<vmem>>, vector<1x16x32xf32>
    %21 = vector.shape_cast %20 : vector<1x16x32xf32> to vector<16x32xf32>
    %c0_15 = arith.constant 0 : index
    %c0_16 = arith.constant 0 : index
    %22 = vector.load %arg5[%c0_15, %c0_16] : memref<32x32xf32, #tpu.memory_space<vmem>>, vector<32x32xf32>
    %cst_17 = arith.constant dense<0xFF800000> : vector<16xf32>
    %23 = vector.multi_reduction <maximumf>, %17, %cst_17 [1] : vector<16x32xf32> to vector<16xf32>
    %24 = vector.shape_cast %23 : vector<16xf32> to vector<16x1xf32>
    %25 = vector.broadcast %24 : vector<16x1xf32> to vector<16x32xf32>
    %26 = arith.subf %17, %25 : vector<16x32xf32>
    %27 = math.exp %26 : vector<16x32xf32>
    %cst_18 = arith.constant dense<0.000000e+00> : vector<16x32xf32>
    %28 = tpu.matmul %27, %22, %cst_18 {dimension_numbers = #tpu.dot_dimension_numbers<[1], [0], [0], [1], [0, 0, 1, 1], [], []>} : vector<16x32xf32>, vector<32x32xf32>, vector<16x32xf32> -> vector<16x32xf32>
    %29 = arith.divf %27, %28 : vector<16x32xf32>
    %cst_19 = arith.constant dense<0xFF800000> : vector<32xf32>
    %30 = vector.multi_reduction <maximumf>, %19, %cst_19 [0] : vector<16x32xf32> to vector<32xf32>
    %31 = vector.shape_cast %30 : vector<32xf32> to vector<1x32xf32>
    %32 = vector.broadcast %31 : vector<1x32xf32> to vector<16x32xf32>
    %33 = arith.subf %19, %32 : vector<16x32xf32>
    %34 = math.exp %33 : vector<16x32xf32>
    %cst_20 = arith.constant dense<0.000000e+00> : vector<32xf32>
    %35 = vector.multi_reduction <add>, %34, %cst_20 [0] : vector<16x32xf32> to vector<32xf32>
    %36 = vector.shape_cast %35 : vector<32xf32> to vector<1x32xf32>
    %37 = vector.broadcast %36 : vector<1x32xf32> to vector<16x32xf32>
    %38 = arith.divf %34, %37 : vector<16x32xf32>
    %cst_21 = arith.constant dense<0.000000e+00> : vector<32x32xf32>
    %39 = tpu.matmul %38, %21, %cst_21 {dimension_numbers = #tpu.dot_dimension_numbers<[0], [0], [1], [1], [0, 1, 1, 1], [], []>} : vector<16x32xf32>, vector<16x32xf32>, vector<32x32xf32> -> vector<32x32xf32>
    %40 = arith.mulf %39, %22 : vector<32x32xf32>
    %cst_22 = arith.constant 0.353553385 : f32
    %41 = vector.broadcast %cst_22 : f32 to vector<32x32xf32>
    %42 = arith.mulf %40, %41 : vector<32x32xf32>
    %cst_23 = arith.constant dense<0.000000e+00> : vector<16x32xf32>
    %43 = tpu.matmul %29, %42, %cst_23 {dimension_numbers = #tpu.dot_dimension_numbers<[1], [0], [0], [1], [0, 0, 1, 1], [], []>} : vector<16x32xf32>, vector<32x32xf32>, vector<16x32xf32> -> vector<16x32xf32>
    %44 = arith.truncf %43 : vector<16x32xf32> to vector<16x32xbf16>
    %c0_24 = arith.constant 0 : index
    %c0_25 = arith.constant 0 : index
    %45 = vector.load %arg8[%c0_24, %c0_25] : memref<32x32xbf16, #tpu.memory_space<vmem>>, vector<32x32xbf16>
    %cst_26 = arith.constant dense<0.000000e+00> : vector<16x32xf32>
    %46 = tpu.matmul %44, %45, %cst_26 {dimension_numbers = #tpu.dot_dimension_numbers<[1], [0], [0], [1], [0, 0, 1, 1], [], []>} : vector<16x32xbf16>, vector<32x32xbf16>, vector<16x32xf32> -> vector<16x32xf32>
    %47 = arith.addf %1, %46 : vector<16x32xf32>
    %c0_27 = arith.constant 0 : index
    %c0_28 = arith.constant 0 : index
    %48 = vector.load %arg9[%c0_27, %c0_28] : memref<1x32xf32, #tpu.memory_space<vmem>>, vector<1x32xf32>
    %49 = vector.broadcast %48 : vector<1x32xf32> to vector<16x32xf32>
    %50 = arith.addf %47, %49 : vector<16x32xf32>
    %51 = arith.mulf %50, %50 : vector<16x32xf32>
    %cst_29 = arith.constant dense<0.000000e+00> : vector<16xf32>
    %52 = vector.multi_reduction <add>, %51, %cst_29 [1] : vector<16x32xf32> to vector<16xf32>
    %53 = vector.shape_cast %52 : vector<16xf32> to vector<16x1xf32>
    %cst_30 = arith.constant 3.200000e+01 : f32
    %54 = vector.broadcast %cst_30 : f32 to vector<16x1xf32>
    %55 = arith.divf %53, %54 : vector<16x1xf32>
    %cst_31 = arith.constant 1.1920929E-7 : f32
    %56 = vector.broadcast %cst_31 : f32 to vector<16x1xf32>
    %57 = arith.addf %55, %56 : vector<16x1xf32>
    %58 = math.rsqrt %57 : vector<16x1xf32>
    %59 = vector.broadcast %58 : vector<16x1xf32> to vector<16x32xf32>
    %60 = arith.mulf %50, %59 : vector<16x32xf32>
    %c0_32 = arith.constant 0 : index
    %c0_33 = arith.constant 0 : index
    %61 = vector.load %arg10[%c0_32, %c0_33] : memref<1x32xf32, #tpu.memory_space<vmem>>, vector<1x32xf32>
    %62 = vector.broadcast %61 : vector<1x32xf32> to vector<16x32xf32>
    %63 = arith.mulf %60, %62 : vector<16x32xf32>
    %cst_34 = arith.constant 0.000000e+00 : f32
    %64 = vector.broadcast %cst_34 : f32 to vector<16x32xf32>
    %65 = arith.maximumf %63, %64 : vector<16x32xf32>
    %66 = arith.truncf %65 : vector<16x32xf32> to vector<16x32xbf16>
    %c0_35 = arith.constant 0 : index
    %c0_36 = arith.constant 0 : index
    %67 = vector.load %arg11[%c0_35, %c0_36] : memref<32x128xbf16, #tpu.memory_space<vmem>>, vector<32x128xbf16>
    %cst_37 = arith.constant dense<0.000000e+00> : vector<16x128xf32>
    %68 = tpu.matmul %66, %67, %cst_37 {dimension_numbers = #tpu.dot_dimension_numbers<[1], [0], [0], [1], [0, 0, 1, 1], [], []>} : vector<16x32xbf16>, vector<32x128xbf16>, vector<16x128xf32> -> vector<16x128xf32>
    %c0_38 = arith.constant 0 : index
    %c0_39 = arith.constant 0 : index
    %69 = vector.load %arg12[%c0_38, %c0_39] : memref<1x128xf32, #tpu.memory_space<vmem>>, vector<1x128xf32>
    %70 = vector.broadcast %69 : vector<1x128xf32> to vector<16x128xf32>
    %71 = arith.addf %68, %70 : vector<16x128xf32>
    %72 = arith.mulf %71, %71 : vector<16x128xf32>
    %cst_40 = arith.constant dense<0.000000e+00> : vector<16xf32>
    %73 = vector.multi_reduction <add>, %72, %cst_40 [1] : vector<16x128xf32> to vector<16xf32>
    %74 = vector.shape_cast %73 : vector<16xf32> to vector<16x1xf32>
    %cst_41 = arith.constant 1.280000e+02 : f32
    %75 = vector.broadcast %cst_41 : f32 to vector<16x1xf32>
    %76 = arith.divf %74, %75 : vector<16x1xf32>
    %cst_42 = arith.constant 1.1920929E-7 : f32
    %77 = vector.broadcast %cst_42 : f32 to vector<16x1xf32>
    %78 = arith.addf %76, %77 : vector<16x1xf32>
    %79 = math.rsqrt %78 : vector<16x1xf32>
    %80 = vector.broadcast %79 : vector<16x1xf32> to vector<16x128xf32>
    %81 = arith.mulf %71, %80 : vector<16x128xf32>
    %c0_43 = arith.constant 0 : index
    %c0_44 = arith.constant 0 : index
    %82 = vector.load %arg13[%c0_43, %c0_44] : memref<1x128xf32, #tpu.memory_space<vmem>>, vector<1x128xf32>
    %83 = vector.broadcast %82 : vector<1x128xf32> to vector<16x128xf32>
    %84 = arith.mulf %81, %83 : vector<16x128xf32>
    %cst_45 = arith.constant 0.000000e+00 : f32
    %85 = vector.broadcast %cst_45 : f32 to vector<16x128xf32>
    %86 = arith.maximumf %84, %85 : vector<16x128xf32>
    %87 = arith.truncf %86 : vector<16x128xf32> to vector<16x128xbf16>
    %c0_46 = arith.constant 0 : index
    %c0_47 = arith.constant 0 : index
    %88 = vector.load %arg14[%c0_46, %c0_47] : memref<128x32xbf16, #tpu.memory_space<vmem>>, vector<128x32xbf16>
    %cst_48 = arith.constant dense<0.000000e+00> : vector<16x32xf32>
    %89 = tpu.matmul %87, %88, %cst_48 {dimension_numbers = #tpu.dot_dimension_numbers<[1], [0], [0], [1], [0, 0, 1, 1], [], []>} : vector<16x128xbf16>, vector<128x32xbf16>, vector<16x32xf32> -> vector<16x32xf32>
    %c0_49 = arith.constant 0 : index
    %c0_50 = arith.constant 0 : index
    %90 = vector.load %arg15[%c0_49, %c0_50] : memref<1x32xf32, #tpu.memory_space<vmem>>, vector<1x32xf32>
    %91 = vector.broadcast %90 : vector<1x32xf32> to vector<16x32xf32>
    %92 = arith.addf %89, %91 : vector<16x32xf32>
    %93 = arith.addf %50, %92 : vector<16x32xf32>
    %c0_51 = arith.constant 0 : index
    %c0_52 = arith.constant 0 : index
    %c0_53 = arith.constant 0 : index
    %94 = vector.load %arg16[%c0_51, %c0_52, %c0_53] : memref<1x16x32xf32, #tpu.memory_space<vmem>>, vector<1x16x32xf32>
    %95 = vector.shape_cast %94 : vector<1x16x32xf32> to vector<16x32xf32>
    %96 = vector.shape_cast %93 : vector<16x32xf32> to vector<1x16x32xf32>
    tpu.vector_store %arg16[%c0_51, %c0_52, %c0_53], %96 {strides = array<i32>} : memref<1x16x32xf32, #tpu.memory_space<vmem>>, vector<1x16x32xf32>,
    return
  }
  func.func @transform_0(%arg0: i32, %arg1: i32) -> (i32, i32, i32) {
    %c0_i32 = arith.constant 0 : i32
    %c0_i32_0 = arith.constant 0 : i32
    return %arg0, %arg1, %c0_i32 : i32, i32, i32
  }
  func.func @transform_1(%arg0: i32, %arg1: i32) -> (i32, i32, i32) {
    %c0_i32 = arith.constant 0 : i32
    %c0_i32_0 = arith.constant 0 : i32
    %c0_i32_1 = arith.constant 0 : i32
    return %arg0, %c0_i32, %c0_i32_0 : i32, i32, i32
  }
  func.func @transform_2(%arg0: i32, %arg1: i32) -> (i32, i32, i32) {
    %c0_i32 = arith.constant 0 : i32
    %c0_i32_0 = arith.constant 0 : i32
    %c0_i32_1 = arith.constant 0 : i32
    return %arg0, %c0_i32, %c0_i32_0 : i32, i32, i32
  }
  func.func @transform_3(%arg0: i32, %arg1: i32) -> (i32, i32) {
    %c0_i32 = arith.constant 0 : i32
    %c0_i32_0 = arith.constant 0 : i32
    %c0_i32_1 = arith.constant 0 : i32
    return %c0_i32, %c0_i32_0 : i32, i32
  }
  func.func @transform_4(%arg0: i32, %arg1: i32) -> (i32, i32) {
    %c0_i32 = arith.constant 0 : i32
    %c0_i32_0 = arith.constant 0 : i32
    %c0_i32_1 = arith.constant 0 : i32
    return %c0_i32, %c0_i32_0 : i32, i32
  }
  func.func @transform_5(%arg0: i32, %arg1: i32) -> (i32, i32) {
    %c0_i32 = arith.constant 0 : i32
    %c0_i32_0 = arith.constant 0 : i32
    %c0_i32_1 = arith.constant 0 : i32
    return %c0_i32, %c0_i32_0 : i32, i32
  }
  func.func @transform_6(%arg0: i32, %arg1: i32) -> (i32, i32) {
    %c0_i32 = arith.constant 0 : i32
    %c0_i32_0 = arith.constant 0 : i32
    %c0_i32_1 = arith.constant 0 : i32
    return %c0_i32, %c0_i32_0 : i32, i32
  }
  func.func @transform_7(%arg0: i32, %arg1: i32) -> (i32, i32) {
    %c0_i32 = arith.constant 0 : i32
    %c0_i32_0 = arith.constant 0 : i32
    %c0_i32_1 = arith.constant 0 : i32
    return %c0_i32, %c0_i32_0 : i32, i32
  }
  func.func @transform_8(%arg0: i32, %arg1: i32) -> (i32, i32) {
    %c0_i32 = arith.constant 0 : i32
    %c0_i32_0 = arith.constant 0 : i32
    %c0_i32_1 = arith.constant 0 : i32
    return %c0_i32, %c0_i32_0 : i32, i32
  }
  func.func @transform_9(%arg0: i32, %arg1: i32) -> (i32, i32) {
    %c0_i32 = arith.constant 0 : i32
    %c0_i32_0 = arith.constant 0 : i32
    %c0_i32_1 = arith.constant 0 : i32
    return %c0_i32, %c0_i32_0 : i32, i32
  }
  func.func @transform_10(%arg0: i32, %arg1: i32) -> (i32, i32) {
    %c0_i32 = arith.constant 0 : i32
    %c0_i32_0 = arith.constant 0 : i32
    %c0_i32_1 = arith.constant 0 : i32
    return %c0_i32, %c0_i32_0 : i32, i32
  }
  func.func @transform_11(%arg0: i32, %arg1: i32) -> (i32, i32) {
    %c0_i32 = arith.constant 0 : i32
    %c0_i32_0 = arith.constant 0 : i32
    %c0_i32_1 = arith.constant 0 : i32
    return %c0_i32, %c0_i32_0 : i32, i32
  }
  func.func @transform_12(%arg0: i32, %arg1: i32) -> (i32, i32) {
    %c0_i32 = arith.constant 0 : i32
    %c0_i32_0 = arith.constant 0 : i32
    %c0_i32_1 = arith.constant 0 : i32
    return %c0_i32, %c0_i32_0 : i32, i32
  }
  func.func @transform_13(%arg0: i32, %arg1: i32) -> (i32, i32) {
    %c0_i32 = arith.constant 0 : i32
    %c0_i32_0 = arith.constant 0 : i32
    %c0_i32_1 = arith.constant 0 : i32
    return %c0_i32, %c0_i32_0 : i32, i32
  }
  func.func @transform_14(%arg0: i32, %arg1: i32) -> (i32, i32, i32) {
    %c0_i32 = arith.constant 0 : i32
    %c0_i32_0 = arith.constant 0 : i32
    return %arg0, %arg1, %c0_i32 : i32, i32, i32
  }
}

module attributes {stable_mosaic.version = 11 : i64} {
  func.func @_rmsnorm_kv_kernel(%arg0: i32, %arg1: memref<32x32xf32, #tpu.memory_space<vmem>>, %arg2: memref<1x32xf32, #tpu.memory_space<vmem>>, %arg3: memref<32x8xbf16, #tpu.memory_space<vmem>>, %arg4: memref<32x8xbf16, #tpu.memory_space<vmem>>, %arg5: memref<32x8xf32, #tpu.memory_space<vmem>>, %arg6: memref<32x8xf32, #tpu.memory_space<vmem>>) attributes {dimension_semantics = [#tpu.dimension_semantics<parallel>], iteration_bounds = array<i64: 1>, scalar_prefetch = 0 : i64, scratch_operands = 0 : i64, tpu.core_type = #tpu.core_type<tc>, window_params = [{transform_indices = @transform_0, window_bounds = array<i64: 32, 32>}, {pipeline_mode = #tpu.pipeline_mode<synchronous>, transform_indices = @transform_1, window_bounds = array<i64: 1, 32>}, {pipeline_mode = #tpu.pipeline_mode<synchronous>, transform_indices = @transform_2, window_bounds = array<i64: 32, 8>}, {pipeline_mode = #tpu.pipeline_mode<synchronous>, transform_indices = @transform_3, window_bounds = array<i64: 32, 8>}, {transform_indices = @transform_4, window_bounds = array<i64: 32, 8>}, {transform_indices = @transform_5, window_bounds = array<i64: 32, 8>}]} {
    %c0 = arith.constant 0 : index
    %c0_0 = arith.constant 0 : index
    %0 = vector.load %arg1[%c0, %c0_0] : memref<32x32xf32, #tpu.memory_space<vmem>>, vector<32x32xf32>
    %1 = arith.mulf %0, %0 : vector<32x32xf32>
    %cst = arith.constant dense<0.000000e+00> : vector<32xf32>
    %2 = vector.multi_reduction <add>, %1, %cst [1] : vector<32x32xf32> to vector<32xf32>
    %3 = vector.shape_cast %2 : vector<32xf32> to vector<32x1xf32>
    %cst_1 = arith.constant 3.200000e+01 : f32
    %4 = vector.broadcast %cst_1 : f32 to vector<32x1xf32>
    %5 = arith.divf %3, %4 : vector<32x1xf32>
    %cst_2 = arith.constant 1.1920929E-7 : f32
    %6 = vector.broadcast %cst_2 : f32 to vector<32x1xf32>
    %7 = arith.addf %5, %6 : vector<32x1xf32>
    %8 = math.rsqrt %7 : vector<32x1xf32>
    %9 = vector.broadcast %8 : vector<32x1xf32> to vector<32x32xf32>
    %10 = arith.mulf %0, %9 : vector<32x32xf32>
    %c0_3 = arith.constant 0 : index
    %c0_4 = arith.constant 0 : index
    %11 = vector.load %arg2[%c0_3, %c0_4] : memref<1x32xf32, #tpu.memory_space<vmem>>, vector<1x32xf32>
    %12 = vector.broadcast %11 : vector<1x32xf32> to vector<32x32xf32>
    %13 = arith.mulf %10, %12 : vector<32x32xf32>
    %14 = arith.truncf %13 : vector<32x32xf32> to vector<32x32xbf16>
    %c0_5 = arith.constant 0 : index
    %c0_6 = arith.constant 0 : index
    %15 = vector.load %arg3[%c0_5, %c0_6] : memref<32x8xbf16, #tpu.memory_space<vmem>>, vector<32x8xbf16>
    %cst_7 = arith.constant dense<0.000000e+00> : vector<32x8xf32>
    %16 = tpu.matmul %14, %15, %cst_7 {dimension_numbers = #tpu.dot_dimension_numbers<[1], [0], [0], [1], [0, 0, 1, 1], [], []>} : vector<32x32xbf16>, vector<32x8xbf16>, vector<32x8xf32> -> vector<32x8xf32>
    %c0_8 = arith.constant 0 : index
    %c0_9 = arith.constant 0 : index
    %17 = vector.load %arg5[%c0_8, %c0_9] : memref<32x8xf32, #tpu.memory_space<vmem>>, vector<32x8xf32>
    tpu.vector_store %arg5[%c0_8, %c0_9], %16 {strides = array<i32>} : memref<32x8xf32, #tpu.memory_space<vmem>>, vector<32x8xf32>,
    %c0_10 = arith.constant 0 : index
    %c0_11 = arith.constant 0 : index
    %18 = vector.load %arg4[%c0_10, %c0_11] : memref<32x8xbf16, #tpu.memory_space<vmem>>, vector<32x8xbf16>
    %cst_12 = arith.constant dense<0.000000e+00> : vector<32x8xf32>
    %19 = tpu.matmul %14, %18, %cst_12 {dimension_numbers = #tpu.dot_dimension_numbers<[1], [0], [0], [1], [0, 0, 1, 1], [], []>} : vector<32x32xbf16>, vector<32x8xbf16>, vector<32x8xf32> -> vector<32x8xf32>
    %c0_13 = arith.constant 0 : index
    %c0_14 = arith.constant 0 : index
    %20 = vector.load %arg6[%c0_13, %c0_14] : memref<32x8xf32, #tpu.memory_space<vmem>>, vector<32x8xf32>
    tpu.vector_store %arg6[%c0_13, %c0_14], %19 {strides = array<i32>} : memref<32x8xf32, #tpu.memory_space<vmem>>, vector<32x8xf32>,
    return
  }
  func.func @transform_0(%arg0: i32) -> (i32, i32) {
    %c0_i32 = arith.constant 0 : i32
    %c0_i32_0 = arith.constant 0 : i32
    return %arg0, %c0_i32 : i32, i32
  }
  func.func @transform_1(%arg0: i32) -> (i32, i32) {
    %c0_i32 = arith.constant 0 : i32
    %c0_i32_0 = arith.constant 0 : i32
    %c0_i32_1 = arith.constant 0 : i32
    return %c0_i32, %c0_i32_0 : i32, i32
  }
  func.func @transform_2(%arg0: i32) -> (i32, i32) {
    %c0_i32 = arith.constant 0 : i32
    %c0_i32_0 = arith.constant 0 : i32
    %c0_i32_1 = arith.constant 0 : i32
    return %c0_i32, %c0_i32_0 : i32, i32
  }
  func.func @transform_3(%arg0: i32) -> (i32, i32) {
    %c0_i32 = arith.constant 0 : i32
    %c0_i32_0 = arith.constant 0 : i32
    %c0_i32_1 = arith.constant 0 : i32
    return %c0_i32, %c0_i32_0 : i32, i32
  }
  func.func @transform_4(%arg0: i32) -> (i32, i32) {
    %c0_i32 = arith.constant 0 : i32
    %c0_i32_0 = arith.constant 0 : i32
    return %arg0, %c0_i32 : i32, i32
  }
  func.func @transform_5(%arg0: i32) -> (i32, i32) {
    %c0_i32 = arith.constant 0 : i32
    %c0_i32_0 = arith.constant 0 : i32
    return %arg0, %c0_i32 : i32, i32
  }
}

module attributes {stable_mosaic.version = 11 : i64} {
  func.func @_block_kernel(%arg0: i32, %arg1: i32, %arg2: memref<1x5x8xf32, #tpu.memory_space<vmem>>, %arg3: memref<1x16x8xf32, #tpu.memory_space<vmem>>, %arg4: memref<1x16x8xf32, #tpu.memory_space<vmem>>, %arg5: memref<8x8xf32, #tpu.memory_space<vmem>>, %arg6: memref<1x8xf32, #tpu.memory_space<vmem>>, %arg7: memref<8x8xbf16, #tpu.memory_space<vmem>>, %arg8: memref<8x8xbf16, #tpu.memory_space<vmem>>, %arg9: memref<1x8xf32, #tpu.memory_space<vmem>>, %arg10: memref<1x8xf32, #tpu.memory_space<vmem>>, %arg11: memref<8x32xbf16, #tpu.memory_space<vmem>>, %arg12: memref<1x32xf32, #tpu.memory_space<vmem>>, %arg13: memref<1x32xf32, #tpu.memory_space<vmem>>, %arg14: memref<32x8xbf16, #tpu.memory_space<vmem>>, %arg15: memref<1x8xf32, #tpu.memory_space<vmem>>, %arg16: memref<1x5x8xf32, #tpu.memory_space<vmem>>) attributes {dimension_semantics = [#tpu.dimension_semantics<parallel>, #tpu.dimension_semantics<parallel>], iteration_bounds = array<i64: 2, 1>, scalar_prefetch = 0 : i64, scratch_operands = 0 : i64, tpu.core_type = #tpu.core_type<tc>, window_params = [{transform_indices = @transform_0, window_bounds = array<i64: 1, 5, 8>}, {transform_indices = @transform_1, window_bounds = array<i64: 1, 16, 8>}, {transform_indices = @transform_2, window_bounds = array<i64: 1, 16, 8>}, {pipeline_mode = #tpu.pipeline_mode<synchronous>, transform_indices = @transform_3, window_bounds = array<i64: 8, 8>}, {pipeline_mode = #tpu.pipeline_mode<synchronous>, transform_indices = @transform_4, window_bounds = array<i64: 1, 8>}, {pipeline_mode = #tpu.pipeline_mode<synchronous>, transform_indices = @transform_5, window_bounds = array<i64: 8, 8>}, {pipeline_mode = #tpu.pipeline_mode<synchronous>, transform_indices = @transform_6, window_bounds = array<i64: 8, 8>}, {pipeline_mode = #tpu.pipeline_mode<synchronous>, transform_indices = @transform_7, window_bounds = array<i64: 1, 8>}, {pipeline_mode = #tpu.pipeline_mode<synchronous>, transform_indices = @transform_8, window_bounds = array<i64: 1, 8>}, {pipeline_mode = #tpu.pipeline_mode<synchronous>, transform_indices = @transform_9, window_bounds = array<i64: 8, 32>}, {pipeline_mode = #tpu.pipeline_mode<synchronous>, transform_indices = @transform_10, window_bounds = array<i64: 1, 32>}, {pipeline_mode = #tpu.pipeline_mode<synchronous>, transform_indices = @transform_11, window_bounds = array<i64: 1, 32>}, {pipeline_mode = #tpu.pipeline_mode<synchronous>, transform_indices = @transform_12, window_bounds = array<i64: 32, 8>}, {pipeline_mode = #tpu.pipeline_mode<synchronous>, transform_indices = @transform_13, window_bounds = array<i64: 1, 8>}, {transform_indices = @transform_14, window_bounds = array<i64: 1, 5, 8>}]} {
    %c0 = arith.constant 0 : index
    %c0_0 = arith.constant 0 : index
    %c0_1 = arith.constant 0 : index
    %0 = vector.load %arg2[%c0, %c0_0, %c0_1] : memref<1x5x8xf32, #tpu.memory_space<vmem>>, vector<1x5x8xf32>
    %1 = vector.shape_cast %0 : vector<1x5x8xf32> to vector<5x8xf32>
    %2 = arith.mulf %1, %1 : vector<5x8xf32>
    %cst = arith.constant dense<0.000000e+00> : vector<5xf32>
    %3 = vector.multi_reduction <add>, %2, %cst [1] : vector<5x8xf32> to vector<5xf32>
    %4 = vector.shape_cast %3 : vector<5xf32> to vector<5x1xf32>
    %cst_2 = arith.constant 8.000000e+00 : f32
    %5 = vector.broadcast %cst_2 : f32 to vector<5x1xf32>
    %6 = arith.divf %4, %5 : vector<5x1xf32>
    %cst_3 = arith.constant 1.1920929E-7 : f32
    %7 = vector.broadcast %cst_3 : f32 to vector<5x1xf32>
    %8 = arith.addf %6, %7 : vector<5x1xf32>
    %9 = math.rsqrt %8 : vector<5x1xf32>
    %10 = vector.broadcast %9 : vector<5x1xf32> to vector<5x8xf32>
    %11 = arith.mulf %1, %10 : vector<5x8xf32>
    %c0_4 = arith.constant 0 : index
    %c0_5 = arith.constant 0 : index
    %12 = vector.load %arg6[%c0_4, %c0_5] : memref<1x8xf32, #tpu.memory_space<vmem>>, vector<1x8xf32>
    %13 = vector.broadcast %12 : vector<1x8xf32> to vector<5x8xf32>
    %14 = arith.mulf %11, %13 : vector<5x8xf32>
    %15 = arith.truncf %14 : vector<5x8xf32> to vector<5x8xbf16>
    %c0_6 = arith.constant 0 : index
    %c0_7 = arith.constant 0 : index
    %16 = vector.load %arg7[%c0_6, %c0_7] : memref<8x8xbf16, #tpu.memory_space<vmem>>, vector<8x8xbf16>
    %cst_8 = arith.constant dense<0.000000e+00> : vector<5x8xf32>
    %17 = tpu.matmul %15, %16, %cst_8 {dimension_numbers = #tpu.dot_dimension_numbers<[1], [0], [0], [1], [0, 0, 1, 1], [], []>} : vector<5x8xbf16>, vector<8x8xbf16>, vector<5x8xf32> -> vector<5x8xf32>
    %c0_9 = arith.constant 0 : index
    %c0_10 = arith.constant 0 : index
    %c0_11 = arith.constant 0 : index
    %18 = vector.load %arg3[%c0_9, %c0_10, %c0_11] : memref<1x16x8xf32, #tpu.memory_space<vmem>>, vector<1x16x8xf32>
    %19 = vector.shape_cast %18 : vector<1x16x8xf32> to vector<16x8xf32>
    %c0_12 = arith.constant 0 : index
    %c0_13 = arith.constant 0 : index
    %c0_14 = arith.constant 0 : index
    %20 = vector.load %arg4[%c0_12, %c0_13, %c0_14] : memref<1x16x8xf32, #tpu.memory_space<vmem>>, vector<1x16x8xf32>
    %21 = vector.shape_cast %20 : vector<1x16x8xf32> to vector<16x8xf32>
    %cst_15 = arith.constant dense<0xFF800000> : vector<5xf32>
    %22 = vector.multi_reduction <maximumf>, %17, %cst_15 [1] : vector<5x8xf32> to vector<5xf32>
    %23 = vector.shape_cast %22 : vector<5xf32> to vector<5x1xf32>
    %24 = vector.broadcast %23 : vector<5x1xf32> to vector<5x8xf32>
    %25 = arith.subf %17, %24 : vector<5x8xf32>
    %26 = math.exp %25 : vector<5x8xf32>
    %cst_16 = arith.constant dense<0.000000e+00> : vector<5xf32>
    %27 = vector.multi_reduction <add>, %26, %cst_16 [1] : vector<5x8xf32> to vector<5xf32>
    %28 = vector.shape_cast %27 : vector<5xf32> to vector<5x1xf32>
    %29 = vector.broadcast %28 : vector<5x1xf32> to vector<5x8xf32>
    %30 = arith.divf %26, %29 : vector<5x8xf32>
    %cst_17 = arith.constant dense<0xFF800000> : vector<8xf32>
    %31 = vector.multi_reduction <maximumf>, %19, %cst_17 [0] : vector<16x8xf32> to vector<8xf32>
    %32 = vector.shape_cast %31 : vector<8xf32> to vector<1x8xf32>
    %33 = vector.broadcast %32 : vector<1x8xf32> to vector<16x8xf32>
    %34 = arith.subf %19, %33 : vector<16x8xf32>
    %35 = math.exp %34 : vector<16x8xf32>
    %cst_18 = arith.constant dense<0.000000e+00> : vector<8xf32>
    %36 = vector.multi_reduction <add>, %35, %cst_18 [0] : vector<16x8xf32> to vector<8xf32>
    %37 = vector.shape_cast %36 : vector<8xf32> to vector<1x8xf32>
    %38 = vector.broadcast %37 : vector<1x8xf32> to vector<16x8xf32>
    %39 = arith.divf %35, %38 : vector<16x8xf32>
    %cst_19 = arith.constant dense<0.000000e+00> : vector<8x8xf32>
    %40 = tpu.matmul %39, %21, %cst_19 {dimension_numbers = #tpu.dot_dimension_numbers<[0], [0], [1], [1], [0, 1, 1, 1], [], []>} : vector<16x8xf32>, vector<16x8xf32>, vector<8x8xf32> -> vector<8x8xf32>
    %cst_20 = arith.constant 0.353553385 : f32
    %41 = vector.broadcast %cst_20 : f32 to vector<8x8xf32>
    %42 = arith.mulf %40, %41 : vector<8x8xf32>
    %cst_21 = arith.constant dense<0.000000e+00> : vector<5x8xf32>
    %43 = tpu.matmul %30, %42, %cst_21 {dimension_numbers = #tpu.dot_dimension_numbers<[1], [0], [0], [1], [0, 0, 1, 1], [], []>} : vector<5x8xf32>, vector<8x8xf32>, vector<5x8xf32> -> vector<5x8xf32>
    %44 = arith.truncf %43 : vector<5x8xf32> to vector<5x8xbf16>
    %c0_22 = arith.constant 0 : index
    %c0_23 = arith.constant 0 : index
    %45 = vector.load %arg8[%c0_22, %c0_23] : memref<8x8xbf16, #tpu.memory_space<vmem>>, vector<8x8xbf16>
    %cst_24 = arith.constant dense<0.000000e+00> : vector<5x8xf32>
    %46 = tpu.matmul %44, %45, %cst_24 {dimension_numbers = #tpu.dot_dimension_numbers<[1], [0], [0], [1], [0, 0, 1, 1], [], []>} : vector<5x8xbf16>, vector<8x8xbf16>, vector<5x8xf32> -> vector<5x8xf32>
    %47 = arith.addf %1, %46 : vector<5x8xf32>
    %c0_25 = arith.constant 0 : index
    %c0_26 = arith.constant 0 : index
    %48 = vector.load %arg9[%c0_25, %c0_26] : memref<1x8xf32, #tpu.memory_space<vmem>>, vector<1x8xf32>
    %49 = vector.broadcast %48 : vector<1x8xf32> to vector<5x8xf32>
    %50 = arith.addf %47, %49 : vector<5x8xf32>
    %51 = arith.mulf %50, %50 : vector<5x8xf32>
    %cst_27 = arith.constant dense<0.000000e+00> : vector<5xf32>
    %52 = vector.multi_reduction <add>, %51, %cst_27 [1] : vector<5x8xf32> to vector<5xf32>
    %53 = vector.shape_cast %52 : vector<5xf32> to vector<5x1xf32>
    %cst_28 = arith.constant 8.000000e+00 : f32
    %54 = vector.broadcast %cst_28 : f32 to vector<5x1xf32>
    %55 = arith.divf %53, %54 : vector<5x1xf32>
    %cst_29 = arith.constant 1.1920929E-7 : f32
    %56 = vector.broadcast %cst_29 : f32 to vector<5x1xf32>
    %57 = arith.addf %55, %56 : vector<5x1xf32>
    %58 = math.rsqrt %57 : vector<5x1xf32>
    %59 = vector.broadcast %58 : vector<5x1xf32> to vector<5x8xf32>
    %60 = arith.mulf %50, %59 : vector<5x8xf32>
    %c0_30 = arith.constant 0 : index
    %c0_31 = arith.constant 0 : index
    %61 = vector.load %arg10[%c0_30, %c0_31] : memref<1x8xf32, #tpu.memory_space<vmem>>, vector<1x8xf32>
    %62 = vector.broadcast %61 : vector<1x8xf32> to vector<5x8xf32>
    %63 = arith.mulf %60, %62 : vector<5x8xf32>
    %cst_32 = arith.constant 0.000000e+00 : f32
    %64 = vector.broadcast %cst_32 : f32 to vector<5x8xf32>
    %65 = arith.maximumf %63, %64 : vector<5x8xf32>
    %66 = arith.truncf %65 : vector<5x8xf32> to vector<5x8xbf16>
    %c0_33 = arith.constant 0 : index
    %c0_34 = arith.constant 0 : index
    %67 = vector.load %arg11[%c0_33, %c0_34] : memref<8x32xbf16, #tpu.memory_space<vmem>>, vector<8x32xbf16>
    %cst_35 = arith.constant dense<0.000000e+00> : vector<5x32xf32>
    %68 = tpu.matmul %66, %67, %cst_35 {dimension_numbers = #tpu.dot_dimension_numbers<[1], [0], [0], [1], [0, 0, 1, 1], [], []>} : vector<5x8xbf16>, vector<8x32xbf16>, vector<5x32xf32> -> vector<5x32xf32>
    %c0_36 = arith.constant 0 : index
    %c0_37 = arith.constant 0 : index
    %69 = vector.load %arg12[%c0_36, %c0_37] : memref<1x32xf32, #tpu.memory_space<vmem>>, vector<1x32xf32>
    %70 = vector.broadcast %69 : vector<1x32xf32> to vector<5x32xf32>
    %71 = arith.addf %68, %70 : vector<5x32xf32>
    %72 = arith.mulf %71, %71 : vector<5x32xf32>
    %cst_38 = arith.constant dense<0.000000e+00> : vector<5xf32>
    %73 = vector.multi_reduction <add>, %72, %cst_38 [1] : vector<5x32xf32> to vector<5xf32>
    %74 = vector.shape_cast %73 : vector<5xf32> to vector<5x1xf32>
    %cst_39 = arith.constant 3.200000e+01 : f32
    %75 = vector.broadcast %cst_39 : f32 to vector<5x1xf32>
    %76 = arith.divf %74, %75 : vector<5x1xf32>
    %cst_40 = arith.constant 1.1920929E-7 : f32
    %77 = vector.broadcast %cst_40 : f32 to vector<5x1xf32>
    %78 = arith.addf %76, %77 : vector<5x1xf32>
    %79 = math.rsqrt %78 : vector<5x1xf32>
    %80 = vector.broadcast %79 : vector<5x1xf32> to vector<5x32xf32>
    %81 = arith.mulf %71, %80 : vector<5x32xf32>
    %c0_41 = arith.constant 0 : index
    %c0_42 = arith.constant 0 : index
    %82 = vector.load %arg13[%c0_41, %c0_42] : memref<1x32xf32, #tpu.memory_space<vmem>>, vector<1x32xf32>
    %83 = vector.broadcast %82 : vector<1x32xf32> to vector<5x32xf32>
    %84 = arith.mulf %81, %83 : vector<5x32xf32>
    %cst_43 = arith.constant 0.000000e+00 : f32
    %85 = vector.broadcast %cst_43 : f32 to vector<5x32xf32>
    %86 = arith.maximumf %84, %85 : vector<5x32xf32>
    %87 = arith.truncf %86 : vector<5x32xf32> to vector<5x32xbf16>
    %c0_44 = arith.constant 0 : index
    %c0_45 = arith.constant 0 : index
    %88 = vector.load %arg14[%c0_44, %c0_45] : memref<32x8xbf16, #tpu.memory_space<vmem>>, vector<32x8xbf16>
    %cst_46 = arith.constant dense<0.000000e+00> : vector<5x8xf32>
    %89 = tpu.matmul %87, %88, %cst_46 {dimension_numbers = #tpu.dot_dimension_numbers<[1], [0], [0], [1], [0, 0, 1, 1], [], []>} : vector<5x32xbf16>, vector<32x8xbf16>, vector<5x8xf32> -> vector<5x8xf32>
    %c0_47 = arith.constant 0 : index
    %c0_48 = arith.constant 0 : index
    %90 = vector.load %arg15[%c0_47, %c0_48] : memref<1x8xf32, #tpu.memory_space<vmem>>, vector<1x8xf32>
    %91 = vector.broadcast %90 : vector<1x8xf32> to vector<5x8xf32>
    %92 = arith.addf %89, %91 : vector<5x8xf32>
    %93 = arith.addf %50, %92 : vector<5x8xf32>
    %c0_49 = arith.constant 0 : index
    %c0_50 = arith.constant 0 : index
    %c0_51 = arith.constant 0 : index
    %94 = vector.load %arg16[%c0_49, %c0_50, %c0_51] : memref<1x5x8xf32, #tpu.memory_space<vmem>>, vector<1x5x8xf32>
    %95 = vector.shape_cast %94 : vector<1x5x8xf32> to vector<5x8xf32>
    %96 = vector.shape_cast %93 : vector<5x8xf32> to vector<1x5x8xf32>
    tpu.vector_store %arg16[%c0_49, %c0_50, %c0_51], %96 {strides = array<i32>} : memref<1x5x8xf32, #tpu.memory_space<vmem>>, vector<1x5x8xf32>,
    return
  }
  func.func @transform_0(%arg0: i32, %arg1: i32) -> (i32, i32, i32) {
    %c0_i32 = arith.constant 0 : i32
    %c0_i32_0 = arith.constant 0 : i32
    %c0_i32_1 = arith.constant 0 : i32
    return %c0_i32, %arg1, %c0_i32_0 : i32, i32, i32
  }
  func.func @transform_1(%arg0: i32, %arg1: i32) -> (i32, i32, i32) {
    %c0_i32 = arith.constant 0 : i32
    %c0_i32_0 = arith.constant 0 : i32
    %c0_i32_1 = arith.constant 0 : i32
    return %arg0, %c0_i32, %c0_i32_0 : i32, i32, i32
  }
  func.func @transform_2(%arg0: i32, %arg1: i32) -> (i32, i32, i32) {
    %c0_i32 = arith.constant 0 : i32
    %c0_i32_0 = arith.constant 0 : i32
    %c0_i32_1 = arith.constant 0 : i32
    return %arg0, %c0_i32, %c0_i32_0 : i32, i32, i32
  }
  func.func @transform_3(%arg0: i32, %arg1: i32) -> (i32, i32) {
    %c0_i32 = arith.constant 0 : i32
    %c0_i32_0 = arith.constant 0 : i32
    %c0_i32_1 = arith.constant 0 : i32
    return %c0_i32, %c0_i32_0 : i32, i32
  }
  func.func @transform_4(%arg0: i32, %arg1: i32) -> (i32, i32) {
    %c0_i32 = arith.constant 0 : i32
    %c0_i32_0 = arith.constant 0 : i32
    %c0_i32_1 = arith.constant 0 : i32
    return %c0_i32, %c0_i32_0 : i32, i32
  }
  func.func @transform_5(%arg0: i32, %arg1: i32) -> (i32, i32) {
    %c0_i32 = arith.constant 0 : i32
    %c0_i32_0 = arith.constant 0 : i32
    %c0_i32_1 = arith.constant 0 : i32
    return %c0_i32, %c0_i32_0 : i32, i32
  }
  func.func @transform_6(%arg0: i32, %arg1: i32) -> (i32, i32) {
    %c0_i32 = arith.constant 0 : i32
    %c0_i32_0 = arith.constant 0 : i32
    %c0_i32_1 = arith.constant 0 : i32
    return %c0_i32, %c0_i32_0 : i32, i32
  }
  func.func @transform_7(%arg0: i32, %arg1: i32) -> (i32, i32) {
    %c0_i32 = arith.constant 0 : i32
    %c0_i32_0 = arith.constant 0 : i32
    %c0_i32_1 = arith.constant 0 : i32
    return %c0_i32, %c0_i32_0 : i32, i32
  }
  func.func @transform_8(%arg0: i32, %arg1: i32) -> (i32, i32) {
    %c0_i32 = arith.constant 0 : i32
    %c0_i32_0 = arith.constant 0 : i32
    %c0_i32_1 = arith.constant 0 : i32
    return %c0_i32, %c0_i32_0 : i32, i32
  }
  func.func @transform_9(%arg0: i32, %arg1: i32) -> (i32, i32) {
    %c0_i32 = arith.constant 0 : i32
    %c0_i32_0 = arith.constant 0 : i32
    %c0_i32_1 = arith.constant 0 : i32
    return %c0_i32, %c0_i32_0 : i32, i32
  }
  func.func @transform_10(%arg0: i32, %arg1: i32) -> (i32, i32) {
    %c0_i32 = arith.constant 0 : i32
    %c0_i32_0 = arith.constant 0 : i32
    %c0_i32_1 = arith.constant 0 : i32
    return %c0_i32, %c0_i32_0 : i32, i32
  }
  func.func @transform_11(%arg0: i32, %arg1: i32) -> (i32, i32) {
    %c0_i32 = arith.constant 0 : i32
    %c0_i32_0 = arith.constant 0 : i32
    %c0_i32_1 = arith.constant 0 : i32
    return %c0_i32, %c0_i32_0 : i32, i32
  }
  func.func @transform_12(%arg0: i32, %arg1: i32) -> (i32, i32) {
    %c0_i32 = arith.constant 0 : i32
    %c0_i32_0 = arith.constant 0 : i32
    %c0_i32_1 = arith.constant 0 : i32
    return %c0_i32, %c0_i32_0 : i32, i32
  }
  func.func @transform_13(%arg0: i32, %arg1: i32) -> (i32, i32) {
    %c0_i32 = arith.constant 0 : i32
    %c0_i32_0 = arith.constant 0 : i32
    %c0_i32_1 = arith.constant 0 : i32
    return %c0_i32, %c0_i32_0 : i32, i32
  }
  func.func @transform_14(%arg0: i32, %arg1: i32) -> (i32, i32, i32) {
    %c0_i32 = arith.constant 0 : i32
    %c0_i32_0 = arith.constant 0 : i32
    return %arg0, %arg1, %c0_i32 : i32, i32, i32
  }
}

</mosaic_0001>

<llo_original>
// kernel: _lambda_.8
$region0: #{_lambda_.8}
  #allocation0 [shape = 'u32[]', space=smem, size = 0x4, offset = 0x4, fixed_abs, tag = 'smem constant byte address 0x4 - core index']
  #allocation1 [shape = 'u32[144,128]{1,0:T(1,128)}', space=vmem, size = 0x12000, scoped, tag = 'internal scratch']
  %s0 = inlined_call_operand.vmem [shape: f32[14,32], index: 0, kind: input, shape index: {}]
  %s1 = inlined_call_operand.vmem [shape: f32[1,32], index: 1, kind: input, shape index: {}]
  %s2 = inlined_call_operand.vmem [shape: bf16[32,32], index: 2, kind: input, shape index: {}]
  %s3 = inlined_call_operand.vmem [shape: bf16[32,32], index: 3, kind: input, shape index: {}]
  %s4 = inlined_call_operand.vmem [shape: f32[14,32], index: 4, kind: output, shape index: {0}]
  %s5 = inlined_call_operand.vmem [shape: f32[14,32], index: 5, kind: output, shape index: {1}]
  %6 = xla_tuple %s4, %s5
  %s7 = sld [smem:[#allocation0]]
  $region34: #{_lambda_.8} parent=0
    _
  %s9 = ssub.s32 1, %s7
  %s10 = scalar_select 0, %s9, %s7
  // Predicated region
  $region2: #{_lambda_.8} parent=0 // pred_check
    _
  $region3: #{_lambda_.8} parent=0 // pred_check_branch
    %12 = sbr.rel (0) target = $region5
  $region4: #{_lambda_.8} parent=0 // pred_region
    _
  $region5: #{_lambda_.8} parent=0 // pred_fallthru
    _
  // Predicated region
  $region6: #{_lambda_.8} parent=0 // pred_check
    _
  $region7: #{_lambda_.8} parent=0 // pred_check_branch
    %14 = sbr.rel (0) target = $region9
  $region8: #{_lambda_.8} parent=0 // pred_region
    _
  $region9: #{_lambda_.8} parent=0 // pred_fallthru
    _
  // Predicated region
  $region10: #{_lambda_.8} parent=0 // pred_check
    _
  $region11: #{_lambda_.8} parent=0 // pred_check_branch
    %16 = sbr.rel (0) target = $region13
  $region12: #{_lambda_.8} parent=0 // pred_region
    _
  $region13: #{_lambda_.8} parent=0 // pred_fallthru
    _
  // Predicated region
  $region14: #{_lambda_.8} parent=0 // pred_check
    _
  $region15: #{_lambda_.8} parent=0 // pred_check_branch
    %18 = sbr.rel (0) target = $region17
  $region16: #{_lambda_.8} parent=0 // pred_region
    _
  $region17: #{_lambda_.8} parent=0 // pred_fallthru
    _
  %v20 = vld [vmem:[%s0] sm:$0xff]
  %v21 = vld [vmem:[%s0 + $0x8] sm:$0x3f]
  %v22 = vmul.f32 %v20, %v20
  %v23 = vmul.f32 %v21, %v21
  %vm24 = vcmask 261120
  %v25 = vsel %vm24, %v22, 0.0
  %26 = vadd.xlane.f32.xlu0 %v25
  %v27 = vpop.xlane.xlu0 %26
  %vm28 = vcmask 259072
  %v29 = vsel %vm28, %v23, 0.0
  %30 = vadd.xlane.f32.xlu0 %v29
  %v31 = vpop.xlane.xlu0 %30
  %v32 = vrcp.pop 32.0
  %v33 = vmul.f32 %v27, %v32
  %v34 = vmul.f32 %v31, %v32
  %v35 = vadd.f32 %v33, 1.1920929e-07
  %v36 = vadd.f32 %v34, 1.1920929e-07
  %v37 = vrsqrt.pop %v35
  %v38 = vrsqrt.pop %v36
  %v39 = vmul.f32 %v20, %v37
  %v40 = vmul.f32 %v21, %v38
  %v41 = vld [vmem:[%s1] sm:$0x1]
  %v43 = vlaneseq
  %v44 = vshrl.u32 %v43, 7
  %v45 = vsub.s32 0, %v44
  %v46 = vrot.slane %v41, %v45
  %v48 = vmul.f32 %v39, %v46
  %v49 = vmul.f32 %v40, %v46
  %v50 = vpack.c.bf16 %v49, %v48
  %v51 = vld [vmem:[%s2] sm:$0xf]
  %v52 = vld [vmem:[%s2 + $0x4] sm:$0xf]
  %v53 = vld [vmem:[%s2 + $0x8] sm:$0xf]
  %v54 = vld [vmem:[%s2 + $0xc] sm:$0xf]
  %v59 = vunpack.c.l.b16 %v51
  %v60 = vunpack.c.l.b16 %v52
  %v61 = vunpack.c.l.b16 %v53
  %v62 = vunpack.c.l.b16 %v54
  %v63 = vpack.c.b16 %v60, %v59
  %v64 = vpack.c.b16 %v62, %v61
  %v68 = vsel %vm24, %v50, 0
  %70 = vmatprep.subr.bf16.mxu0 0
  %71 = vmatpush1.bf16.msra.mxu0 %v63
  %72 = vmatprep.subr.bf16.mxu0 0
  %73 = vmatpush1.bf16.msra.mxu0 %v64
  %74 = vmatprep.subr.bf16.mxu0 0
  %75 = vmatpush1.bf16.msra.mxu0 0
  %76 = vmatprep.subr.bf16.mxu0 0
  %77 = vmatpush1.bf16.msra.mxu0 0
  %78 = vmatprep.subr.bf16.mxu0 0
  %79 = vmatpush1.bf16.msra.mxu0 0
  %80 = vmatprep.subr.bf16.mxu0 0
  %81 = vmatpush1.bf16.msra.mxu0 0
  %82 = vmatprep.subr.bf16.mxu0 0
  %83 = vmatpush1.bf16.msra.mxu0 0
  %84 = vmatprep.subr.bf16.mxu0 0
  %85 = vmatpush1.bf16.msra.mxu0 0
  %86 = vmatprep.subr.bf16.mxu0 0
  %87 = vmatpush1.bf16.msra.mxu0 0
  %88 = vmatprep.subr.bf16.mxu0 0
  %89 = vmatpush1.bf16.msra.mxu0 0
  %90 = vmatprep.subr.bf16.mxu0 0
  %91 = vmatpush1.bf16.msra.mxu0 0
  %92 = vmatprep.subr.bf16.mxu0 0
  %93 = vmatpush1.bf16.msra.mxu0 0
  %94 = vmatprep.subr.bf16.mxu0 0
  %95 = vmatpush1.bf16.msra.mxu0 0
  %96 = vmatprep.subr.bf16.mxu0 0
  %97 = vmatpush1.bf16.msra.mxu0 0
  %98 = vmatprep.subr.bf16.mxu0 0
  %99 = vmatpush1.bf16.msra.mxu0 0
  %100 = vmatprep.subr.bf16.mxu0 0
  %101 = vmatpush1.bf16.msra.mxu0 0
  %102 = vmatprep.mubr.bf16.mxu0 0
  %103 = vmatmul.mubr.bf16.gmra.mrb[0].mxu0 %v68
  %v104 = vpop.f32.mrb[0].mxu0
  %v105 = vadd.f32 0.0, %v104
  %v106 = vpop.f32.mrb[0].mxu0
  %v107 = vpop.f32.mrb[0].mxu0
  %v108 = vadd.f32 0.0, %v107
  %v109 = vpop.f32.mrb[0].mxu0
  %110 = vdwg.mxu0
  %111 = vst.msk [vmem:[%s4] sm:$0xff] %vm24, %v105
  %112 = vst.msk [vmem:[%s4 + $0x8] sm:$0x3f] %vm28, %v108
  %v113 = vld [vmem:[%s3] sm:$0xf]
  %v114 = vld [vmem:[%s3 + $0x4] sm:$0xf]
  %v115 = vld [vmem:[%s3 + $0x8] sm:$0xf]
  %v116 = vld [vmem:[%s3 + $0xc] sm:$0xf]
  %v121 = vunpack.c.l.b16 %v113
  %v122 = vunpack.c.l.b16 %v114
  %v123 = vunpack.c.l.b16 %v115
  %v124 = vunpack.c.l.b16 %v116
  %v125 = vpack.c.b16 %v122, %v121
  %v126 = vpack.c.b16 %v124, %v123
  %129 = vmatprep.subr.bf16.mxu0 0
  %130 = vmatpush1.bf16.msra.mxu0 %v125
  %131 = vmatprep.subr.bf16.mxu0 0
  %132 = vmatpush1.bf16.msra.mxu0 %v126
  %133 = vmatprep.subr.bf16.mxu0 0
  %134 = vmatpush1.bf16.msra.mxu0 0
  %135 = vmatprep.subr.bf16.mxu0 0
  %136 = vmatpush1.bf16.msra.mxu0 0
  %137 = vmatprep.subr.bf16.mxu0 0
  %138 = vmatpush1.bf16.msra.mxu0 0
  %139 = vmatprep.subr.bf16.mxu0 0
  %140 = vmatpush1.bf16.msra.mxu0 0
  %141 = vmatprep.subr.bf16.mxu0 0
  %142 = vmatpush1.bf16.msra.mxu0 0
  %143 = vmatprep.subr.bf16.mxu0 0
  %144 = vmatpush1.bf16.msra.mxu0 0
  %145 = vmatprep.subr.bf16.mxu0 0
  %146 = vmatpush1.bf16.msra.mxu0 0
  %147 = vmatprep.subr.bf16.mxu0 0
  %148 = vmatpush1.bf16.msra.mxu0 0
  %149 = vmatprep.subr.bf16.mxu0 0
  %150 = vmatpush1.bf16.msra.mxu0 0
  %151 = vmatprep.subr.bf16.mxu0 0
  %152 = vmatpush1.bf16.msra.mxu0 0
  %153 = vmatprep.subr.bf16.mxu0 0
  %154 = vmatpush1.bf16.msra.mxu0 0
  %155 = vmatprep.subr.bf16.mxu0 0
  %156 = vmatpush1.bf16.msra.mxu0 0
  %157 = vmatprep.subr.bf16.mxu0 0
  %158 = vmatpush1.bf16.msra.mxu0 0
  %159 = vmatprep.subr.bf16.mxu0 0
  %160 = vmatpush1.bf16.msra.mxu0 0
  %161 = vmatprep.mubr.bf16.mxu0 0
  %162 = vmatmul.mubr.bf16.gmra.mrb[0].mxu0 %v68
  %v163 = vpop.f32.mrb[0].mxu0
  %v164 = vadd.f32 0.0, %v163
  %v165 = vpop.f32.mrb[0].mxu0
  %v166 = vpop.f32.mrb[0].mxu0
  %v167 = vadd.f32 0.0, %v166
  %v168 = vpop.f32.mrb[0].mxu0
  %169 = vdwg.mxu0
  %170 = vst.msk [vmem:[%s5] sm:$0xff] %vm24, %v164
  %171 = vst.msk [vmem:[%s5 + $0x8] sm:$0x3f] %vm28, %v167
  // Predicated region
  $region18: #{_lambda_.8} parent=0 // pred_check
    _
  $region19: #{_lambda_.8} parent=0 // pred_check_branch
    %173 = sbr.rel (0) target = $region21
  $region20: #{_lambda_.8} parent=0 // pred_region
    _
  $region21: #{_lambda_.8} parent=0 // pred_fallthru
    _
  // Predicated region
  $region22: #{_lambda_.8} parent=0 // pred_check
    _
  $region23: #{_lambda_.8} parent=0 // pred_check_branch
    %175 = sbr.rel (0) target = $region25
  $region24: #{_lambda_.8} parent=0 // pred_region
    _
  $region25: #{_lambda_.8} parent=0 // pred_fallthru
    _
  // Predicated region
  $region26: #{_lambda_.8} parent=0 // pred_check
    _
  $region27: #{_lambda_.8} parent=0 // pred_check_branch
    %177 = sbr.rel (0) target = $region29
  $region28: #{_lambda_.8} parent=0 // pred_region
    _
  $region29: #{_lambda_.8} parent=0 // pred_fallthru
    _
  // Predicated region
  $region30: #{_lambda_.8} parent=0 // pred_check
    _
  $region31: #{_lambda_.8} parent=0 // pred_check_branch
    %179 = sbr.rel (0) target = $region33
  $region32: #{_lambda_.8} parent=0 // pred_region
    _
  $region33: #{_lambda_.8} parent=0 // pred_fallthru
    _

// kernel: _lambda_.10
$region0: #{_lambda_.10}
  #allocation0 [shape = 'u32[]', space=smem, size = 0x4, offset = 0x4, fixed_abs, tag = 'smem constant byte address 0x4 - core index']
  #allocation1 [shape = 'u32[144,128]{1,0:T(1,128)}', space=vmem, size = 0x12000, scoped, tag = 'internal scratch']
  %s0 = inlined_call_operand.vmem [shape: f32[32,32], index: 0, kind: input, shape index: {}]
  %s1 = inlined_call_operand.vmem [shape: f32[1,32], index: 1, kind: input, shape index: {}]
  %s2 = inlined_call_operand.vmem [shape: bf16[32,32], index: 2, kind: input, shape index: {}]
  %s3 = inlined_call_operand.vmem [shape: bf16[32,32], index: 3, kind: input, shape index: {}]
  %s4 = inlined_call_operand.vmem [shape: f32[32,32], index: 4, kind: output, shape index: {0}]
  %s5 = inlined_call_operand.vmem [shape: f32[32,32], index: 5, kind: output, shape index: {1}]
  %6 = xla_tuple %s4, %s5
  %s7 = sld [smem:[#allocation0]]
  $region34: #{_lambda_.10} parent=0
    _
  %s9 = ssub.s32 1, %s7
  %s10 = scalar_select 0, %s9, %s7
  // Predicated region
  $region2: #{_lambda_.10} parent=0 // pred_check
    _
  $region3: #{_lambda_.10} parent=0 // pred_check_branch
    %12 = sbr.rel (0) target = $region5
  $region4: #{_lambda_.10} parent=0 // pred_region
    _
  $region5: #{_lambda_.10} parent=0 // pred_fallthru
    _
  // Predicated region
  $region6: #{_lambda_.10} parent=0 // pred_check
    _
  $region7: #{_lambda_.10} parent=0 // pred_check_branch
    %14 = sbr.rel (0) target = $region9
  $region8: #{_lambda_.10} parent=0 // pred_region
    _
  $region9: #{_lambda_.10} parent=0 // pred_fallthru
    _
  // Predicated region
  $region10: #{_lambda_.10} parent=0 // pred_check
    _
  $region11: #{_lambda_.10} parent=0 // pred_check_branch
    %16 = sbr.rel (0) target = $region13
  $region12: #{_lambda_.10} parent=0 // pred_region
    _
  $region13: #{_lambda_.10} parent=0 // pred_fallthru
    _
  // Predicated region
  $region14: #{_lambda_.10} parent=0 // pred_check
    _
  $region15: #{_lambda_.10} parent=0 // pred_check_branch
    %18 = sbr.rel (0) target = $region17
  $region16: #{_lambda_.10} parent=0 // pred_region
    _
  $region17: #{_lambda_.10} parent=0 // pred_fallthru
    _
  %v20 = vld [vmem:[%s0] sm:$0xff]
  %v21 = vld [vmem:[%s0 + $0x8] sm:$0xff]
  %v22 = vld [vmem:[%s0 + $0x10] sm:$0xff]
  %v23 = vld [vmem:[%s0 + $0x18] sm:$0xff]
  %v24 = vmul.f32 %v20, %v20
  %v25 = vmul.f32 %v21, %v21
  %v26 = vmul.f32 %v22, %v22
  %v27 = vmul.f32 %v23, %v23
  %vm28 = vcmask 261120
  %v29 = vsel %vm28, %v24, 0.0
  %30 = vadd.xlane.f32.xlu0 %v29
  %v31 = vpop.xlane.xlu0 %30
  %v32 = vsel %vm28, %v25, 0.0
  %33 = vadd.xlane.f32.xlu0 %v32
  %v34 = vpop.xlane.xlu0 %33
  %v35 = vsel %vm28, %v26, 0.0
  %36 = vadd.xlane.f32.xlu0 %v35
  %v37 = vpop.xlane.xlu0 %36
  %v38 = vsel %vm28, %v27, 0.0
  %39 = vadd.xlane.f32.xlu0 %v38
  %v40 = vpop.xlane.xlu0 %39
  %v41 = vrcp.pop 32.0
  %v42 = vmul.f32 %v31, %v41
  %v43 = vmul.f32 %v34, %v41
  %v44 = vmul.f32 %v37, %v41
  %v45 = vmul.f32 %v40, %v41
  %v46 = vadd.f32 %v42, 1.1920929e-07
  %v47 = vadd.f32 %v43, 1.1920929e-07
  %v48 = vadd.f32 %v44, 1.1920929e-07
  %v49 = vadd.f32 %v45, 1.1920929e-07
  %v50 = vrsqrt.pop %v46
  %v51 = vrsqrt.pop %v47
  %v52 = vrsqrt.pop %v48
  %v53 = vrsqrt.pop %v49
  %v54 = vmul.f32 %v20, %v50
  %v55 = vmul.f32 %v21, %v51
  %v56 = vmul.f32 %v22, %v52
  %v57 = vmul.f32 %v23, %v53
  %v58 = vld [vmem:[%s1] sm:$0x1]
  %v60 = vlaneseq
  %v61 = vshrl.u32 %v60, 7
  %v62 = vsub.s32 0, %v61
  %v63 = vrot.slane %v58, %v62
  %v65 = vmul.f32 %v54, %v63
  %v66 = vmul.f32 %v55, %v63
  %v67 = vmul.f32 %v56, %v63
  %v68 = vmul.f32 %v57, %v63
  %v69 = vpack.c.bf16 %v66, %v65
  %v70 = vpack.c.bf16 %v68, %v67
  %v71 = vld [vmem:[%s2] sm:$0xf]
  %v72 = vld [vmem:[%s2 + $0x4] sm:$0xf]
  %v73 = vld [vmem:[%s2 + $0x8] sm:$0xf]
  %v74 = vld [vmem:[%s2 + $0xc] sm:$0xf]
  %v79 = vunpack.c.l.b16 %v71
  %v80 = vunpack.c.l.b16 %v72
  %v81 = vunpack.c.l.b16 %v73
  %v82 = vunpack.c.l.b16 %v74
  %v83 = vpack.c.b16 %v80, %v79
  %v84 = vpack.c.b16 %v82, %v81
  %v88 = vsel %vm28, %v69, 0
  %v91 = vsel %vm28, %v70, 0
  %93 = vmatprep.subr.bf16.mxu0 0
  %94 = vmatpush1.bf16.msra.mxu0 %v83
  %95 = vmatprep.subr.bf16.mxu0 0
  %96 = vmatpush1.bf16.msra.mxu0 %v84
  %97 = vmatprep.subr.bf16.mxu0 0
  %98 = vmatpush1.bf16.msra.mxu0 0
  %99 = vmatprep.subr.bf16.mxu0 0
  %100 = vmatpush1.bf16.msra.mxu0 0
  %101 = vmatprep.subr.bf16.mxu0 0
  %102 = vmatpush1.bf16.msra.mxu0 0
  %103 = vmatprep.subr.bf16.mxu0 0
  %104 = vmatpush1.bf16.msra.mxu0 0
  %105 = vmatprep.subr.bf16.mxu0 0
  %106 = vmatpush1.bf16.msra.mxu0 0
  %107 = vmatprep.subr.bf16.mxu0 0
  %108 = vmatpush1.bf16.msra.mxu0 0
  %109 = vmatprep.subr.bf16.mxu0 0
  %110 = vmatpush1.bf16.msra.mxu0 0
  %111 = vmatprep.subr.bf16.mxu0 0
  %112 = vmatpush1.bf16.msra.mxu0 0
  %113 = vmatprep.subr.bf16.mxu0 0
  %114 = vmatpush1.bf16.msra.mxu0 0
  %115 = vmatprep.subr.bf16.mxu0 0
  %116 = vmatpush1.bf16.msra.mxu0 0
  %117 = vmatprep.subr.bf16.mxu0 0
  %118 = vmatpush1.bf16.msra.mxu0 0
  %119 = vmatprep.subr.bf16.mxu0 0
  %120 = vmatpush1.bf16.msra.mxu0 0
  %121 = vmatprep.subr.bf16.mxu0 0
  %122 = vmatpush1.bf16.msra.mxu0 0
  %123 = vmatprep.subr.bf16.mxu0 0
  %124 = vmatpush1.bf16.msra.mxu0 0
  %125 = vmatprep.mubr.bf16.mxu0 0
  %126 = vmatmul.mubr.bf16.gmra.mrb[0].mxu0 %v88
  %v127 = vpop.f32.mrb[0].mxu0
  %v128 = vadd.f32 0.0, %v127
  %v129 = vpop.f32.mrb[0].mxu0
  %v130 = vpop.f32.mrb[0].mxu0
  %v131 = vadd.f32 0.0, %v130
  %v132 = vpop.f32.mrb[0].mxu0
  %133 = vmatprep.mubr.bf16.mxu0 0
  %134 = vmatmul.mubr.bf16.gmra.mrb[0].mxu0 %v91
  %v135 = vpop.f32.mrb[0].mxu0
  %v136 = vadd.f32 0.0, %v135
  %v137 = vpop.f32.mrb[0].mxu0
  %v138 = vpop.f32.mrb[0].mxu0
  %v139 = vadd.f32 0.0, %v138
  %v140 = vpop.f32.mrb[0].mxu0
  %141 = vdwg.mxu0
  %142 = vst.msk [vmem:[%s4] sm:$0xff] %vm28, %v128
  %143 = vst.msk [vmem:[%s4 + $0x8] sm:$0xff] %vm28, %v131
  %144 = vst.msk [vmem:[%s4 + $0x10] sm:$0xff] %vm28, %v136
  %145 = vst.msk [vmem:[%s4 + $0x18] sm:$0xff] %vm28, %v139
  %v146 = vld [vmem:[%s3] sm:$0xf]
  %v147 = vld [vmem:[%s3 + $0x4] sm:$0xf]
  %v148 = vld [vmem:[%s3 + $0x8] sm:$0xf]
  %v149 = vld [vmem:[%s3 + $0xc] sm:$0xf]
  %v154 = vunpack.c.l.b16 %v146
  %v155 = vunpack.c.l.b16 %v147
  %v156 = vunpack.c.l.b16 %v148
  %v157 = vunpack.c.l.b16 %v149
  %v158 = vpack.c.b16 %v155, %v154
  %v159 = vpack.c.b16 %v157, %v156
  %162 = vmatprep.subr.bf16.mxu0 0
  %163 = vmatpush1.bf16.msra.mxu0 %v158
  %164 = vmatprep.subr.bf16.mxu0 0
  %165 = vmatpush1.bf16.msra.mxu0 %v159
  %166 = vmatprep.subr.bf16.mxu0 0
  %167 = vmatpush1.bf16.msra.mxu0 0
  %168 = vmatprep.subr.bf16.mxu0 0
  %169 = vmatpush1.bf16.msra.mxu0 0
  %170 = vmatprep.subr.bf16.mxu0 0
  %171 = vmatpush1.bf16.msra.mxu0 0
  %172 = vmatprep.subr.bf16.mxu0 0
  %173 = vmatpush1.bf16.msra.mxu0 0
  %174 = vmatprep.subr.bf16.mxu0 0
  %175 = vmatpush1.bf16.msra.mxu0 0
  %176 = vmatprep.subr.bf16.mxu0 0
  %177 = vmatpush1.bf16.msra.mxu0 0
  %178 = vmatprep.subr.bf16.mxu0 0
  %179 = vmatpush1.bf16.msra.mxu0 0
  %180 = vmatprep.subr.bf16.mxu0 0
  %181 = vmatpush1.bf16.msra.mxu0 0
  %182 = vmatprep.subr.bf16.mxu0 0
  %183 = vmatpush1.bf16.msra.mxu0 0
  %184 = vmatprep.subr.bf16.mxu0 0
  %185 = vmatpush1.bf16.msra.mxu0 0
  %186 = vmatprep.subr.bf16.mxu0 0
  %187 = vmatpush1.bf16.msra.mxu0 0
  %188 = vmatprep.subr.bf16.mxu0 0
  %189 = vmatpush1.bf16.msra.mxu0 0
  %190 = vmatprep.subr.bf16.mxu0 0
  %191 = vmatpush1.bf16.msra.mxu0 0
  %192 = vmatprep.subr.bf16.mxu0 0
  %193 = vmatpush1.bf16.msra.mxu0 0
  %194 = vmatprep.mubr.bf16.mxu0 0
  %195 = vmatmul.mubr.bf16.gmra.mrb[0].mxu0 %v88
  %v196 = vpop.f32.mrb[0].mxu0
  %v197 = vadd.f32 0.0, %v196
  %v198 = vpop.f32.mrb[0].mxu0
  %v199 = vpop.f32.mrb[0].mxu0
  %v200 = vadd.f32 0.0, %v199
  %v201 = vpop.f32.mrb[0].mxu0
  %202 = vmatprep.mubr.bf16.mxu0 0
  %203 = vmatmul.mubr.bf16.gmra.mrb[0].mxu0 %v91
  %v204 = vpop.f32.mrb[0].mxu0
  %v205 = vadd.f32 0.0, %v204
  %v206 = vpop.f32.mrb[0].mxu0
  %v207 = vpop.f32.mrb[0].mxu0
  %v208 = vadd.f32 0.0, %v207
  %v209 = vpop.f32.mrb[0].mxu0
  %210 = vdwg.mxu0
  %211 = vst.msk [vmem:[%s5] sm:$0xff] %vm28, %v197
  %212 = vst.msk [vmem:[%s5 + $0x8] sm:$0xff] %vm28, %v200
  %213 = vst.msk [vmem:[%s5 + $0x10] sm:$0xff] %vm28, %v205
  %214 = vst.msk [vmem:[%s5 + $0x18] sm:$0xff] %vm28, %v208
  // Predicated region
  $region18: #{_lambda_.10} parent=0 // pred_check
    _
  $region19: #{_lambda_.10} parent=0 // pred_check_branch
    %216 = sbr.rel (0) target = $region21
  $region20: #{_lambda_.10} parent=0 // pred_region
    _
  $region21: #{_lambda_.10} parent=0 // pred_fallthru
    _
  // Predicated region
  $region22: #{_lambda_.10} parent=0 // pred_check
    _
  $region23: #{_lambda_.10} parent=0 // pred_check_branch
    %218 = sbr.rel (0) target = $region25
  $region24: #{_lambda_.10} parent=0 // pred_region
    _
  $region25: #{_lambda_.10} parent=0 // pred_fallthru
    _
  // Predicated region
  $region26: #{_lambda_.10} parent=0 // pred_check
    _
  $region27: #{_lambda_.10} parent=0 // pred_check_branch
    %220 = sbr.rel (0) target = $region29
  $region28: #{_lambda_.10} parent=0 // pred_region
    _
  $region29: #{_lambda_.10} parent=0 // pred_fallthru
    _
  // Predicated region
  $region30: #{_lambda_.10} parent=0 // pred_check
    _
  $region31: #{_lambda_.10} parent=0 // pred_check_branch
    %222 = sbr.rel (0) target = $region33
  $region32: #{_lambda_.10} parent=0 // pred_region
    _
  $region33: #{_lambda_.10} parent=0 // pred_fallthru
    _

// kernel: _lambda_.9
$region0: #{_lambda_.9}
  #allocation0 [shape = 'u32[]', space=smem, size = 0x4, offset = 0x4, fixed_abs, tag = 'smem constant byte address 0x4 - core index']
  #allocation1 [shape = 'u32[144,128]{1,0:T(1,128)}', space=vmem, size = 0x12000, scoped, tag = 'internal scratch']
  %s0 = inlined_call_operand.vmem [shape: f32[1,16,32], index: 0, kind: input, shape index: {}]
  %s1 = inlined_call_operand.vmem [shape: f32[2,7,32], index: 1, kind: input, shape index: {}]
  %s2 = inlined_call_operand.vmem [shape: f32[2,7,32], index: 2, kind: input, shape index: {}]
  %s3 = inlined_call_operand.vmem [shape: f32[32,32], index: 3, kind: input, shape index: {}]
  %s4 = inlined_call_operand.vmem [shape: f32[1,32], index: 4, kind: input, shape index: {}, may-alias: {4,8}]
  %s5 = inlined_call_operand.vmem [shape: bf16[32,32], index: 5, kind: input, shape index: {}]
  %s6 = inlined_call_operand.vmem [shape: bf16[32,32], index: 6, kind: input, shape index: {}]
  %s7 = inlined_call_operand.vmem [shape: f32[1,32], index: 7, kind: input, shape index: {}, may-alias: {7,13}]
  %s8 = inlined_call_operand.vmem [shape: f32[1,32], index: 8, kind: input, shape index: {}, may-alias: {4,8}]
  %s9 = inlined_call_operand.vmem [shape: bf16[32,128], index: 9, kind: input, shape index: {}]
  %s10 = inlined_call_operand.vmem [shape: f32[1,128], index: 10, kind: input, shape index: {}]
  %s11 = inlined_call_operand.vmem [shape: f32[1,128], index: 11, kind: input, shape index: {}]
  %s12 = inlined_call_operand.vmem [shape: bf16[128,32], index: 12, kind: input, shape index: {}]
  %s13 = inlined_call_operand.vmem [shape: f32[1,32], index: 13, kind: input, shape index: {}, may-alias: {7,13}]
  %s14 = inlined_call_operand.vmem [shape: f32[2,16,32], index: 14, kind: output, shape index: {}]
  %s15 = sld [smem:[#allocation0]]
  $region89: #{_lambda_.9} parent=0
    _
  %s17 = ssub.s32 1, %s15
  %s18 = scalar_select 0, %s17, %s15
  loop: start=0, step=1, limit=4
  $region2: #{_lambda_.9} parent=0 // loop_pre_header
    _
  $region3: #{_lambda_.9} parent=0 // loop_header
    %s20 = sphi 0, %s24
    %p21 = scmp.ge.s32.totalorder %s20, 4
    %s27 = sphi 0, %s39
    %s28 = sphi 0, %s35
    %s29 = sphi 0, %s27
    %s30 = sphi 0, %s28
    %s31 = sphi 0, %s29
    %s32 = sphi 0, %s30
    %s42 = sphi 0, %s44
    %s45 = sphi 0, %s42
    %s46 = sphi 0, %s45
    %s62 = sphi 0, %s46
    %s68 = sphi 0, %s70
    %s71 = sphi 0, %s68
    %s72 = sphi 0, %s71
    %s88 = sphi 0, %s72
    %s94 = sphi 0, %s96
    %s97 = sphi 0, %s94
    %s98 = sphi 0, %s97
    %s114 = sphi 0, %s98
    %s118 = sphi 0, %s118
    %s120 = sphi 0, %s118
    %s121 = sphi 0, %s120
    %s135 = sphi 0, %s121
    %s139 = sphi 0, %s139
    %s141 = sphi 0, %s139
    %s142 = sphi 0, %s141
    %s156 = sphi 0, %s142
    %s160 = sphi 0, %s160
    %s162 = sphi 0, %s160
    %s163 = sphi 0, %s162
    %s177 = sphi 0, %s163
    %s181 = sphi 0, %s181
    %s183 = sphi 0, %s181
    %s184 = sphi 0, %s183
    %s198 = sphi 0, %s184
    %s202 = sphi 0, %s202
    %s204 = sphi 0, %s202
    %s205 = sphi 0, %s204
    %s219 = sphi 0, %s205
    %s223 = sphi 0, %s223
    %s225 = sphi 0, %s223
    %s226 = sphi 0, %s225
    %s240 = sphi 0, %s226
    %s244 = sphi 0, %s244
    %s246 = sphi 0, %s244
    %s247 = sphi 0, %s246
    %s261 = sphi 0, %s247
    %s265 = sphi 0, %s265
    %s267 = sphi 0, %s265
    %s268 = sphi 0, %s267
    %s282 = sphi 0, %s268
    %s286 = sphi 0, %s286
    %s288 = sphi 0, %s286
    %s289 = sphi 0, %s288
    %s303 = sphi 0, %s289
    %s307 = sphi 0, %s307
    %s309 = sphi 0, %s307
    %s310 = sphi 0, %s309
    %s324 = sphi 0, %s310
    %s328 = sphi 0, %s328
    %s330 = sphi 0, %s328
    %s331 = sphi 0, %s330
    %s345 = sphi 0, %s331
    %s353 = sphi 0, %s355
    %s356 = sphi 0, %s353
    %s357 = sphi 0, %s356
    %s373 = sphi 0, %s357
  $region4: #{_lambda_.9} parent=0 // loop_header_branch
    %23 = sbr.rel (%p21) target = $region8
  $region5: #{_lambda_.9} parent=0 // loop_body
    %s25 = ssub.s32 %s20, 1
    %s26 = ssub.s32 %s20, 2
    %s33 = sadd.s32 1, %s28
    %p34 = scmp.ge.s32.totalorder %s33, 1
    %s35 = scalar_select %p34, 0, %s33
    %s36 = sadd.s32 1, %s27
    %s37 = scalar_select %p34, %s36, %s27
    %p38 = scmp.ge.s32.totalorder %s37, 2
    %s39 = scalar_select %p38, 0, %s37
    %s40 = ssub.s32 %s28, %s35
    %p41 = scmp.eq.s32.totalorder %s40, 0
    %s43 = sadd.s32 %s42, 1
    %s44 = scalar_select %p41, %s42, %s43
    %p47 = pneg %p41
    %p48 = scmp.eq.s32.totalorder %s20, 1
    %p49 = por %p47, %p48
    %p50 = scmp.ne.s32.totalorder %s42, %s45
    %p51 = scmp.eq.s32.totalorder %s20, 0
    %p52 = por %p50, %p51
    %p53 = scmp.ne.s32.totalorder %s42, %s45
    %p54 = scmp.eq.s32.totalorder %s25, 1
    %p55 = por %p53, %p54
    %p56 = scmp.ne.s32.totalorder %s45, %s46
    %p57 = scmp.eq.s32.totalorder %s25, 0
    %p58 = por %p56, %p57
    %p59 = scmp.ne.s32.totalorder %s45, %s46
    %p60 = scmp.eq.s32.totalorder %s26, 1
    %p61 = por %p59, %p60
    %p63 = scmp.ne.s32.totalorder %s46, %s62
    %p64 = scmp.eq.s32.totalorder %s26, 0
    %p65 = por %p63, %p64
    %s66 = ssub.s32 %s27, %s39
    %p67 = scmp.eq.s32.totalorder %s66, 0
    %s69 = sadd.s32 %s68, 1
    %s70 = scalar_select %p67, %s68, %s69
    %p73 = pneg %p67
    %p74 = scmp.eq.s32.totalorder %s20, 1
    %p75 = por %p73, %p74
    %p76 = scmp.ne.s32.totalorder %s68, %s71
    %p77 = scmp.eq.s32.totalorder %s20, 0
    %p78 = por %p76, %p77
    %p79 = scmp.ne.s32.totalorder %s68, %s71
    %p80 = scmp.eq.s32.totalorder %s25, 1
    %p81 = por %p79, %p80
    %p82 = scmp.ne.s32.totalorder %s71, %s72
    %p83 = scmp.eq.s32.totalorder %s25, 0
    %p84 = por %p82, %p83
    %p85 = scmp.ne.s32.totalorder %s71, %s72
    %p86 = scmp.eq.s32.totalorder %s26, 1
    %p87 = por %p85, %p86
    %p89 = scmp.ne.s32.totalorder %s72, %s88
    %p90 = scmp.eq.s32.totalorder %s26, 0
    %p91 = por %p89, %p90
    %s92 = ssub.s32 %s27, %s39
    %p93 = scmp.eq.s32.totalorder %s92, 0
    %s95 = sadd.s32 %s94, 1
    %s96 = scalar_select %p93, %s94, %s95
    %p99 = pneg %p93
    %p100 = scmp.eq.s32.totalorder %s20, 1
    %p101 = por %p99, %p100
    %p102 = scmp.ne.s32.totalorder %s94, %s97
    %p103 = scmp.eq.s32.totalorder %s20, 0
    %p104 = por %p102, %p103
    %p105 = scmp.ne.s32.totalorder %s94, %s97
    %p106 = scmp.eq.s32.totalorder %s25, 1
    %p107 = por %p105, %p106
    %p108 = scmp.ne.s32.totalorder %s97, %s98
    %p109 = scmp.eq.s32.totalorder %s25, 0
    %p110 = por %p108, %p109
    %p111 = scmp.ne.s32.totalorder %s97, %s98
    %p112 = scmp.eq.s32.totalorder %s26, 1
    %p113 = por %p111, %p112
    %p115 = scmp.ne.s32.totalorder %s98, %s114
    %p116 = scmp.eq.s32.totalorder %s26, 0
    %p117 = por %p115, %p116
    %s119 = sadd.s32 %s118, 1
    %p122 = scmp.eq.s32.totalorder %s20, 1
    %p123 = scmp.ne.s32.totalorder %s118, %s120
    %p124 = scmp.eq.s32.totalorder %s20, 0
    %p125 = por %p123, %p124
    %p126 = scmp.ne.s32.totalorder %s118, %s120
    %p127 = scmp.eq.s32.totalorder %s25, 1
    %p128 = por %p126, %p127
    %p129 = scmp.ne.s32.totalorder %s120, %s121
    %p130 = scmp.eq.s32.totalorder %s25, 0
    %p131 = por %p129, %p130
    %p132 = scmp.ne.s32.totalorder %s120, %s121
    %p133 = scmp.eq.s32.totalorder %s26, 1
    %p134 = por %p132, %p133
    %p136 = scmp.ne.s32.totalorder %s121, %s135
    %p137 = scmp.eq.s32.totalorder %s26, 0
    %p138 = por %p136, %p137
    %s140 = sadd.s32 %s139, 1
    %p143 = scmp.eq.s32.totalorder %s20, 1
    %p144 = scmp.ne.s32.totalorder %s139, %s141
    %p145 = scmp.eq.s32.totalorder %s20, 0
    %p146 = por %p144, %p145
    %p147 = scmp.ne.s32.totalorder %s139, %s141
    %p148 = scmp.eq.s32.totalorder %s25, 1
    %p149 = por %p147, %p148
    %p150 = scmp.ne.s32.totalorder %s141, %s142
    %p151 = scmp.eq.s32.totalorder %s25, 0
    %p152 = por %p150, %p151
    %p153 = scmp.ne.s32.totalorder %s141, %s142
    %p154 = scmp.eq.s32.totalorder %s26, 1
    %p155 = por %p153, %p154
    %p157 = scmp.ne.s32.totalorder %s142, %s156
    %p158 = scmp.eq.s32.totalorder %s26, 0
    %p159 = por %p157, %p158
    %s161 = sadd.s32 %s160, 1
    %p164 = scmp.eq.s32.totalorder %s20, 1
    %p165 = scmp.ne.s32.totalorder %s160, %s162
    %p166 = scmp.eq.s32.totalorder %s20, 0
    %p167 = por %p165, %p166
    %p168 = scmp.ne.s32.totalorder %s160, %s162
    %p169 = scmp.eq.s32.totalorder %s25, 1
    %p170 = por %p168, %p169
    %p171 = scmp.ne.s32.totalorder %s162, %s163
    %p172 = scmp.eq.s32.totalorder %s25, 0
    %p173 = por %p171, %p172
    %p174 = scmp.ne.s32.totalorder %s162, %s163
    %p175 = scmp.eq.s32.totalorder %s26, 1
    %p176 = por %p174, %p175
    %p178 = scmp.ne.s32.totalorder %s163, %s177
    %p179 = scmp.eq.s32.totalorder %s26, 0
    %p180 = por %p178, %p179
    %s182 = sadd.s32 %s181, 1
    %p185 = scmp.eq.s32.totalorder %s20, 1
    %p186 = scmp.ne.s32.totalorder %s181, %s183
    %p187 = scmp.eq.s32.totalorder %s20, 0
    %p188 = por %p186, %p187
    %p189 = scmp.ne.s32.totalorder %s181, %s183
    %p190 = scmp.eq.s32.totalorder %s25, 1
    %p191 = por %p189, %p190
    %p192 = scmp.ne.s32.totalorder %s183, %s184
    %p193 = scmp.eq.s32.totalorder %s25, 0
    %p194 = por %p192, %p193
    %p195 = scmp.ne.s32.totalorder %s183, %s184
    %p196 = scmp.eq.s32.totalorder %s26, 1
    %p197 = por %p195, %p196
    %p199 = scmp.ne.s32.totalorder %s184, %s198
    %p200 = scmp.eq.s32.totalorder %s26, 0
    %p201 = por %p199, %p200
    %s203 = sadd.s32 %s202, 1
    %p206 = scmp.eq.s32.totalorder %s20, 1
    %p207 = scmp.ne.s32.totalorder %s202, %s204
    %p208 = scmp.eq.s32.totalorder %s20, 0
    %p209 = por %p207, %p208
    %p210 = scmp.ne.s32.totalorder %s202, %s204
    %p211 = scmp.eq.s32.totalorder %s25, 1
    %p212 = por %p210, %p211
    %p213 = scmp.ne.s32.totalorder %s204, %s205
    %p214 = scmp.eq.s32.totalorder %s25, 0
    %p215 = por %p213, %p214
    %p216 = scmp.ne.s32.totalorder %s204, %s205
    %p217 = scmp.eq.s32.totalorder %s26, 1
    %p218 = por %p216, %p217
    %p220 = scmp.ne.s32.totalorder %s205, %s219
    %p221 = scmp.eq.s32.totalorder %s26, 0
    %p222 = por %p220, %p221
    %s224 = sadd.s32 %s223, 1
    %p227 = scmp.eq.s32.totalorder %s20, 1
    %p228 = scmp.ne.s32.totalorder %s223, %s225
    %p229 = scmp.eq.s32.totalorder %s20, 0
    %p230 = por %p228, %p229
    %p231 = scmp.ne.s32.totalorder %s223, %s225
    %p232 = scmp.eq.s32.totalorder %s25, 1
    %p233 = por %p231, %p232
    %p234 = scmp.ne.s32.totalorder %s225, %s226
    %p235 = scmp.eq.s32.totalorder %s25, 0
    %p236 = por %p234, %p235
    %p237 = scmp.ne.s32.totalorder %s225, %s226
    %p238 = scmp.eq.s32.totalorder %s26, 1
    %p239 = por %p237, %p238
    %p241 = scmp.ne.s32.totalorder %s226, %s240
    %p242 = scmp.eq.s32.totalorder %s26, 0
    %p243 = por %p241, %p242
    %s245 = sadd.s32 %s244, 1
    %p248 = scmp.eq.s32.totalorder %s20, 1
    %p249 = scmp.ne.s32.totalorder %s244, %s246
    %p250 = scmp.eq.s32.totalorder %s20, 0
    %p251 = por %p249, %p250
    %p252 = scmp.ne.s32.totalorder %s244, %s246
    %p253 = scmp.eq.s32.totalorder %s25, 1
    %p254 = por %p252, %p253
    %p255 = scmp.ne.s32.totalorder %s246, %s247
    %p256 = scmp.eq.s32.totalorder %s25, 0
    %p257 = por %p255, %p256
    %p258 = scmp.ne.s32.totalorder %s246, %s247
    %p259 = scmp.eq.s32.totalorder %s26, 1
    %p260 = por %p258, %p259
    %p262 = scmp.ne.s32.totalorder %s247, %s261
    %p263 = scmp.eq.s32.totalorder %s26, 0
    %p264 = por %p262, %p263
    %s266 = sadd.s32 %s265, 1
    %p269 = scmp.eq.s32.totalorder %s20, 1
    %p270 = scmp.ne.s32.totalorder %s265, %s267
    %p271 = scmp.eq.s32.totalorder %s20, 0
    %p272 = por %p270, %p271
    %p273 = scmp.ne.s32.totalorder %s265, %s267
    %p274 = scmp.eq.s32.totalorder %s25, 1
    %p275 = por %p273, %p274
    %p276 = scmp.ne.s32.totalorder %s267, %s268
    %p277 = scmp.eq.s32.totalorder %s25, 0
    %p278 = por %p276, %p277
    %p279 = scmp.ne.s32.totalorder %s267, %s268
    %p280 = scmp.eq.s32.totalorder %s26, 1
    %p281 = por %p279, %p280
    %p283 = scmp.ne.s32.totalorder %s268, %s282
    %p284 = scmp.eq.s32.totalorder %s26, 0
    %p285 = por %p283, %p284
    %s287 = sadd.s32 %s286, 1
    %p290 = scmp.eq.s32.totalorder %s20, 1
    %p291 = scmp.ne.s32.totalorder %s286, %s288
    %p292 = scmp.eq.s32.totalorder %s20, 0
    %p293 = por %p291, %p292
    %p294 = scmp.ne.s32.totalorder %s286, %s288
    %p295 = scmp.eq.s32.totalorder %s25, 1
    %p296 = por %p294, %p295
    %p297 = scmp.ne.s32.totalorder %s288, %s289
    %p298 = scmp.eq.s32.totalorder %s25, 0
    %p299 = por %p297, %p298
    %p300 = scmp.ne.s32.totalorder %s288, %s289
    %p301 = scmp.eq.s32.totalorder %s26, 1
    %p302 = por %p300, %p301
    %p304 = scmp.ne.s32.totalorder %s289, %s303
    %p305 = scmp.eq.s32.totalorder %s26, 0
    %p306 = por %p304, %p305
    %s308 = sadd.s32 %s307, 1
    %p311 = scmp.eq.s32.totalorder %s20, 1
    %p312 = scmp.ne.s32.totalorder %s307, %s309
    %p313 = scmp.eq.s32.totalorder %s20, 0
    %p314 = por %p312, %p313
    %p315 = scmp.ne.s32.totalorder %s307, %s309
    %p316 = scmp.eq.s32.totalorder %s25, 1
    %p317 = por %p315, %p316
    %p318 = scmp.ne.s32.totalorder %s309, %s310
    %p319 = scmp.eq.s32.totalorder %s25, 0
    %p320 = por %p318, %p319
    %p321 = scmp.ne.s32.totalorder %s309, %s310
    %p322 = scmp.eq.s32.totalorder %s26, 1
    %p323 = por %p321, %p322
    %p325 = scmp.ne.s32.totalorder %s310, %s324
    %p326 = scmp.eq.s32.totalorder %s26, 0
    %p327 = por %p325, %p326
    %s329 = sadd.s32 %s328, 1
    %p332 = scmp.eq.s32.totalorder %s20, 1
    %p333 = scmp.ne.s32.totalorder %s328, %s330
    %p334 = scmp.eq.s32.totalorder %s20, 0
    %p335 = por %p333, %p334
    %p336 = scmp.ne.s32.totalorder %s328, %s330
    %p337 = scmp.eq.s32.totalorder %s25, 1
    %p338 = por %p336, %p337
    %p339 = scmp.ne.s32.totalorder %s330, %s331
    %p340 = scmp.eq.s32.totalorder %s25, 0
    %p341 = por %p339, %p340
    %p342 = scmp.ne.s32.totalorder %s330, %s331
    %p343 = scmp.eq.s32.totalorder %s26, 1
    %p344 = por %p342, %p343
    %p346 = scmp.ne.s32.totalorder %s331, %s345
    %p347 = scmp.eq.s32.totalorder %s26, 0
    %p348 = por %p346, %p347
    %s349 = ssub.s32 %s27, %s39
    %s350 = ssub.s32 %s28, %s35
    %s351 = sor.u32 %s349, %s350
    %p352 = scmp.eq.s32.totalorder %s351, 0
    %s354 = sadd.s32 %s353, 1
    %s355 = scalar_select %p352, %s353, %s354
    %p358 = pneg %p352
    %p359 = scmp.eq.s32.totalorder %s20, 1
    %p360 = por %p358, %p359
    %p361 = scmp.ne.s32.totalorder %s353, %s356
    %p362 = scmp.eq.s32.totalorder %s20, 0
    %p363 = por %p361, %p362
    %p364 = scmp.ne.s32.totalorder %s353, %s356
    %p365 = scmp.eq.s32.totalorder %s25, 1
    %p366 = por %p364, %p365
    %p367 = scmp.ne.s32.totalorder %s356, %s357
    %p368 = scmp.eq.s32.totalorder %s25, 0
    %p369 = por %p367, %p368
    %p370 = scmp.ne.s32.totalorder %s356, %s357
    %p371 = scmp.eq.s32.totalorder %s26, 1
    %p372 = por %p370, %p371
    %p374 = scmp.ne.s32.totalorder %s357, %s373
    %p375 = scmp.eq.s32.totalorder %s26, 0
    %p376 = por %p374, %p375
    %p377 = scmp.le.s32.totalorder 1, %s20
    %p378 = scmp.lt.s32.totalorder %s20, 3
    %p379 = pnand %p377, %p378
    %p380 = pneg %p379
    // Predicated region
    $region9: #{_lambda_.9} parent=5 // pred_check
      _
    $region10: #{_lambda_.9} parent=5 // pred_check_branch
      %382 = sbr.rel (%p379) target = $region12
    $region11: #{_lambda_.9} parent=5 // pred_region
      %s383 = ssub.s32 %s20, 1
      // Predicated region
      $region13: #{_lambda_.9} parent=11 // pred_check
        %p384 = pneg %p58
      $region14: #{_lambda_.9} parent=11 // pred_check_branch
        %386 = sbr.rel (%p384) target = $region16
      $region15: #{_lambda_.9} parent=11 // pred_region
        %s387 = smul.u32 2, %s30
        %p388 = scmp.lt.s32.totalorder %s387, 1
        %s389 = scalar_select %p388, %s387, 1
        %s390 = smul.addr %s389, 8
        %s391 = scalar_lea.vmem %s0, %s390
        %s392 = smul.u32 2, %s30
      $region16: #{_lambda_.9} parent=11 // pred_fallthru
        _
      // Predicated region
      $region17: #{_lambda_.9} parent=11 // pred_check
        %p393 = pneg %p131
      $region18: #{_lambda_.9} parent=11 // pred_check_branch
        %395 = sbr.rel (%p393) target = $region20
      $region19: #{_lambda_.9} parent=11 // pred_region
        _
      $region20: #{_lambda_.9} parent=11 // pred_fallthru
        _
      // Predicated region
      $region21: #{_lambda_.9} parent=11 // pred_check
        %p396 = pneg %p152
      $region22: #{_lambda_.9} parent=11 // pred_check_branch
        %398 = sbr.rel (%p396) target = $region24
      $region23: #{_lambda_.9} parent=11 // pred_region
        _
      $region24: #{_lambda_.9} parent=11 // pred_fallthru
        _
      // Predicated region
      $region25: #{_lambda_.9} parent=11 // pred_check
        %p399 = pneg %p173
      $region26: #{_lambda_.9} parent=11 // pred_check_branch
        %401 = sbr.rel (%p399) target = $region28
      $region27: #{_lambda_.9} parent=11 // pred_region
        _
      $region28: #{_lambda_.9} parent=11 // pred_fallthru
        _
      // Predicated region
      $region29: #{_lambda_.9} parent=11 // pred_check
        %p402 = pneg %p194
      $region30: #{_lambda_.9} parent=11 // pred_check_branch
        %404 = sbr.rel (%p402) target = $region32
      $region31: #{_lambda_.9} parent=11 // pred_region
        _
      $region32: #{_lambda_.9} parent=11 // pred_fallthru
        _
      // Predicated region
      $region33: #{_lambda_.9} parent=11 // pred_check
        %p405 = pneg %p215
      $region34: #{_lambda_.9} parent=11 // pred_check_branch
        %407 = sbr.rel (%p405) target = $region36
      $region35: #{_lambda_.9} parent=11 // pred_region
        _
      $region36: #{_lambda_.9} parent=11 // pred_fallthru
        _
      // Predicated region
      $region37: #{_lambda_.9} parent=11 // pred_check
        %p408 = pneg %p236
      $region38: #{_lambda_.9} parent=11 // pred_check_branch
        %410 = sbr.rel (%p408) target = $region40
      $region39: #{_lambda_.9} parent=11 // pred_region
        _
      $region40: #{_lambda_.9} parent=11 // pred_fallthru
        _
      // Predicated region
      $region41: #{_lambda_.9} parent=11 // pred_check
        %p411 = pneg %p257
      $region42: #{_lambda_.9} parent=11 // pred_check_branch
        %413 = sbr.rel (%p411) target = $region44
      $region43: #{_lambda_.9} parent=11 // pred_region
        _
      $region44: #{_lambda_.9} parent=11 // pred_fallthru
        _
      // Predicated region
      $region45: #{_lambda_.9} parent=11 // pred_check
        %p414 = pneg %p278
      $region46: #{_lambda_.9} parent=11 // pred_check_branch
        %416 = sbr.rel (%p414) target = $region48
      $region47: #{_lambda_.9} parent=11 // pred_region
        _
      $region48: #{_lambda_.9} parent=11 // pred_fallthru
        _
      // Predicated region
      $region49: #{_lambda_.9} parent=11 // pred_check
        %p417 = pneg %p299
      $region50: #{_lambda_.9} parent=11 // pred_check_branch
        %419 = sbr.rel (%p417) target = $region52
      $region51: #{_lambda_.9} parent=11 // pred_region
        _
      $region52: #{_lambda_.9} parent=11 // pred_fallthru
        _
      // Predicated region
      $region53: #{_lambda_.9} parent=11 // pred_check
        %p420 = pneg %p320
      $region54: #{_lambda_.9} parent=11 // pred_check_branch
        %422 = sbr.rel (%p420) target = $region56
      $region55: #{_lambda_.9} parent=11 // pred_region
        _
      $region56: #{_lambda_.9} parent=11 // pred_fallthru
        _
      // Predicated region
      $region57: #{_lambda_.9} parent=11 // pred_check
        %p423 = pneg %p341
      $region58: #{_lambda_.9} parent=11 // pred_check_branch
        %425 = sbr.rel (%p423) target = $region60
      $region59: #{_lambda_.9} parent=11 // pred_region
        _
      $region60: #{_lambda_.9} parent=11 // pred_fallthru
        _
    $region12: #{_lambda_.9} parent=5 // pred_fallthru
      _
    %p426 = scmp.lt.s32.totalorder %s20, 2
    // Predicated region
    $region61: #{_lambda_.9} parent=5 // pred_check
      %p427 = pneg %p426
    $region62: #{_lambda_.9} parent=5 // pred_check_branch
      %429 = sbr.rel (%p427) target = $region64
    $region63: #{_lambda_.9} parent=5 // pred_region
      // Predicated region
      $region65: #{_lambda_.9} parent=63 // pred_check
        %p430 = pneg %p78
      $region66: #{_lambda_.9} parent=63 // pred_check_branch
        %432 = sbr.rel (%p430) target = $region68
      $region67: #{_lambda_.9} parent=63 // pred_region
        %p433 = scmp.lt.s32.totalorder %s27, 1
        %s434 = scalar_select %p433, %s27, 1
        %s435 = smul.addr %s434, 8
        %s436 = scalar_lea.vmem %s1, %s435
      $region68: #{_lambda_.9} parent=63 // pred_fallthru
        _
      // Predicated region
      $region69: #{_lambda_.9} parent=63 // pred_check
        %p437 = pneg %p104
      $region70: #{_lambda_.9} parent=63 // pred_check_branch
        %439 = sbr.rel (%p437) target = $region72
      $region71: #{_lambda_.9} parent=63 // pred_region
        %p440 = scmp.lt.s32.totalorder %s27, 1
        %s441 = scalar_select %p440, %s27, 1
        %s442 = smul.addr %s441, 8
        %s443 = scalar_lea.vmem %s2, %s442
      $region72: #{_lambda_.9} parent=63 // pred_fallthru
        _
    $region64: #{_lambda_.9} parent=5 // pred_fallthru
      _
    %p444 = scmp.le.s32.totalorder 1, %s20
    %p445 = scmp.lt.s32.totalorder %s20, 3
    %p446 = pnand %p444, %p445
    %p447 = pneg %p446
    // Predicated region
    $region73: #{_lambda_.9} parent=5 // pred_check
      _
    $region74: #{_lambda_.9} parent=5 // pred_check_branch
      %449 = sbr.rel (%p446) target = $region76
    $region75: #{_lambda_.9} parent=5 // pred_region
      %s450 = ssub.s32 %s20, 1
      %s451 = smul.u32 2, %s30
      %p452 = scmp.lt.s32.totalorder %s451, 1
      %s453 = scalar_select %p452, %s451, 1
      %s454 = smul.addr %s453, 8
      %s455 = scalar_lea.vmem %s0, %s454
      %p456 = pneg %p58
      %p457 = pneg %p55
      %p458 = scmp.lt.s32.totalorder %s29, 1
      %s459 = scalar_select %p458, %s29, 1
      %s460 = smul.addr %s459, 8
      %s461 = scalar_lea.vmem %s1, %s460
      %p462 = pneg %p84
      %p463 = pneg %p81
      %p464 = scmp.lt.s32.totalorder %s29, 1
      %s465 = scalar_select %p464, %s29, 1
      %s466 = smul.addr %s465, 8
      %s467 = scalar_lea.vmem %s2, %s466
      %p468 = pneg %p110
      %p469 = pneg %p107
      %p470 = pneg %p131
      %p471 = pneg %p128
      %p472 = pneg %p152
      %p473 = pneg %p149
      %p474 = pneg %p173
      %p475 = pneg %p170
      %p476 = pneg %p194
      %p477 = pneg %p191
      %p478 = pneg %p215
      %p479 = pneg %p212
      %p480 = pneg %p236
      %p481 = pneg %p233
      %p482 = pneg %p257
      %p483 = pneg %p254
      %p484 = pneg %p278
      %p485 = pneg %p275
      %p486 = pneg %p299
      %p487 = pneg %p296
      %p488 = pneg %p320
      %p489 = pneg %p317
      %p490 = pneg %p341
      %p491 = pneg %p338
      %p492 = pneg %p369
      %p493 = pneg %p366
      %s494 = smul.u32 2, %s30
      %p495 = scmp.lt.s32.totalorder %s29, 1
      %s496 = scalar_select %p495, %s29, 1
      %p497 = scmp.lt.s32.totalorder %s494, 1
      %s498 = scalar_select %p497, %s494, 1
      %s499 = smul.addr %s496, 2
      %s500 = sadd.s32 %s498, %s499
      %s501 = smul.addr %s500, 8
      %s502 = scalar_lea.vmem %s14, %s501
      %s503 = smul.u32 2, %s30
      %p504 = scmp.lt.s32.totalorder %s503, 1
      %s505 = scalar_select %p504, %s503, 1
      %s506 = smul.addr %s505, 8
      %s507 = scalar_lea.vmem %s0, %s506
      %s508 = smul.u32 2, %s30
      %p509 = scmp.lt.s32.totalorder %s29, 1
      %s510 = scalar_select %p509, %s29, 1
      %s511 = smul.addr %s510, 8
      %s512 = scalar_lea.vmem %s1, %s511
      %p513 = scmp.lt.s32.totalorder %s29, 1
      %s514 = scalar_select %p513, %s29, 1
      %s515 = smul.addr %s514, 8
      %s516 = scalar_lea.vmem %s2, %s515
      %s517 = smul.u32 2, %s30
      %p518 = scmp.lt.s32.totalorder %s29, 1
      %s519 = scalar_select %p518, %s29, 1
      %p520 = scmp.lt.s32.totalorder %s517, 1
      %s521 = scalar_select %p520, %s517, 1
      %s522 = smul.addr %s519, 2
      %s523 = sadd.s32 %s521, %s522
      %s524 = smul.addr %s523, 8
      %s525 = scalar_lea.vmem %s14, %s524
      %s526 = smul.u32 2, %s30
      %v528 = vld [vmem:[%s507] sm:$0xff]
      %v529 = vld [vmem:[%s507 + $0x8] sm:$0xff]
      %v530 = vmul.f32 %v528, %v528
      %v531 = vmul.f32 %v529, %v529
      %vm532 = vcmask 261120
      %v533 = vsel %vm532, %v530, 0.0
      %534 = vadd.xlane.f32.xlu0 %v533
      %v535 = vpop.xlane.xlu0 %534
      %v536 = vsel %vm532, %v531, 0.0
      %537 = vadd.xlane.f32.xlu0 %v536
      %v538 = vpop.xlane.xlu0 %537
      %v539 = vrcp.pop 32.0
      %v540 = vmul.f32 %v535, %v539
      %v541 = vmul.f32 %v538, %v539
      %v542 = vadd.f32 %v540, 1.1920929e-07
      %v543 = vadd.f32 %v541, 1.1920929e-07
      %v544 = vrsqrt.pop %v542
      %v545 = vrsqrt.pop %v543
      %v546 = vmul.f32 %v528, %v544
      %v547 = vmul.f32 %v529, %v545
      %v548 = vld [vmem:[%s4] sm:$0x1]
      %v550 = vlaneseq
      %v551 = vshrl.u32 %v550, 7
      %v552 = vsub.s32 0, %v551
      %v553 = vrot.slane %v548, %v552
      %v555 = vmul.f32 %v546, %v553
      %v556 = vmul.f32 %v547, %v553
      %v557 = vpack.c.bf16 %v556, %v555
      %v558 = vld [vmem:[%s5] sm:$0xf]
      %v559 = vld [vmem:[%s5 + $0x4] sm:$0xf]
      %v560 = vld [vmem:[%s5 + $0x8] sm:$0xf]
      %v561 = vld [vmem:[%s5 + $0xc] sm:$0xf]
      %v566 = vunpack.c.l.b16 %v558
      %v567 = vunpack.c.l.b16 %v559
      %v568 = vunpack.c.l.b16 %v560
      %v569 = vunpack.c.l.b16 %v561
      %v570 = vpack.c.b16 %v567, %v566
      %v571 = vpack.c.b16 %v569, %v568
      %v575 = vsel %vm532, %v557, 0
      %577 = vmatprep.subr.bf16.mxu0 0
      %578 = vmatpush1.bf16.msra.mxu0 %v570
      %579 = vmatprep.subr.bf16.mxu0 0
      %580 = vmatpush1.bf16.msra.mxu0 %v571
      %581 = vmatprep.subr.bf16.mxu0 0
      %582 = vmatpush1.bf16.msra.mxu0 0
      %583 = vmatprep.subr.bf16.mxu0 0
      %584 = vmatpush1.bf16.msra.mxu0 0
      %585 = vmatprep.subr.bf16.mxu0 0
      %586 = vmatpush1.bf16.msra.mxu0 0
      %587 = vmatprep.subr.bf16.mxu0 0
      %588 = vmatpush1.bf16.msra.mxu0 0
      %589 = vmatprep.subr.bf16.mxu0 0
      %590 = vmatpush1.bf16.msra.mxu0 0
      %591 = vmatprep.subr.bf16.mxu0 0
      %592 = vmatpush1.bf16.msra.mxu0 0
      %593 = vmatprep.subr.bf16.mxu0 0
      %594 = vmatpush1.bf16.msra.mxu0 0
      %595 = vmatprep.subr.bf16.mxu0 0
      %596 = vmatpush1.bf16.msra.mxu0 0
      %597 = vmatprep.subr.bf16.mxu0 0
      %598 = vmatpush1.bf16.msra.mxu0 0
      %599 = vmatprep.subr.bf16.mxu0 0
      %600 = vmatpush1.bf16.msra.mxu0 0
      %601 = vmatprep.subr.bf16.mxu0 0
      %602 = vmatpush1.bf16.msra.mxu0 0
      %603 = vmatprep.subr.bf16.mxu0 0
      %604 = vmatpush1.bf16.msra.mxu0 0
      %605 = vmatprep.subr.bf16.mxu0 0
      %606 = vmatpush1.bf16.msra.mxu0 0
      %607 = vmatprep.subr.bf16.mxu0 0
      %608 = vmatpush1.bf16.msra.mxu0 0
      %609 = vmatprep.mubr.bf16.mxu0 0
      %610 = vmatmul.mubr.bf16.gmra.mrb[0].mxu0 %v575
      %v611 = vpop.f32.mrb[0].mxu0
      %v612 = vadd.f32 0.0, %v611
      %v613 = vpop.f32.mrb[0].mxu0
      %v614 = vpop.f32.mrb[0].mxu0
      %v615 = vadd.f32 0.0, %v614
      %v616 = vpop.f32.mrb[0].mxu0
      %617 = vdwg.mxu0
      %v618 = vld [vmem:[%s512] sm:$0x7f]
      %v619 = vld [vmem:[%s516] sm:$0x7f]
      %v620 = vsel %vm532, %v612, -inf
      %621 = vmax.xlane.f32.xlu0 %v620
      %v622 = vpop.xlane.xlu0 %621
      %v623 = vsel %vm532, %v615, -inf
      %624 = vmax.xlane.f32.xlu0 %v623
      %v625 = vpop.xlane.xlu0 %624
      %v626 = vsub.f32 %v612, %v622
      %v627 = vsub.f32 %v615, %v625
      %v628 = vmul.f32 %v626, 1.442695
      %v629 = vpow.pop %v628
      %v630 = vmul.f32 %v627, 1.442695
      %v631 = vpow.pop %v630
      %v632 = vsel %vm532, %v629, 0.0
      %633 = vadd.xlane.f32.xlu0 %v632
      %v634 = vpop.xlane.xlu0 %633
      %v635 = vsel %vm532, %v631, 0.0
      %636 = vadd.xlane.f32.xlu0 %v635
      %v637 = vpop.xlane.xlu0 %636
      %v638 = vrcp.pop %v634
      %v639 = vmul.f32 %v629, %v638
      %v640 = vrcp.pop %v637
      %v641 = vmul.f32 %v631, %v640
      %vm642 = vcmask 260096
      %v643 = vsel %vm642, %v618, -inf
      %v644 = vrot.slane %v643, 4
      %v645 = vmax.f32 %v643, %v644
      %v646 = vrot.slane %v645, 2
      %v647 = vmax.f32 %v645, %v646
      %v648 = vrot.slane %v647, 1
      %v649 = vmax.f32 %v647, %v648
      %v650 = vsub.f32 %v618, %v649
      %v651 = vmul.f32 %v650, 1.442695
      %v652 = vpow.pop %v651
      %v653 = vsel %vm642, %v652, 0.0
      %v654 = vrot.slane %v653, 4
      %v655 = vadd.f32 %v653, %v654
      %v656 = vrot.slane %v655, 2
      %v657 = vadd.f32 %v655, %v656
      %v658 = vrot.slane %v657, 1
      %v659 = vadd.f32 %v657, %v658
      %v660 = vrcp.pop %v659
      %v661 = vmul.f32 %v652, %v660
      %662 = vxpose.xlu0.b32.start [1/16] %v661, 128
      %663 = vxpose.xlu0.b32.cont [2/16] 0.0, 128
      %664 = vxpose.xlu0.b32.cont [3/16] 0.0, 128
      %665 = vxpose.xlu0.b32.cont [4/16] 0.0, 128
      %666 = vxpose.xlu0.b32.cont [5/16] 0.0, 128
      %667 = vxpose.xlu0.b32.cont [6/16] 0.0, 128
      %668 = vxpose.xlu0.b32.cont [7/16] 0.0, 128
      %669 = vxpose.xlu0.b32.cont [8/16] 0.0, 128
      %670 = vxpose.xlu0.b32.cont [9/16] 0.0, 128
      %671 = vxpose.xlu0.b32.cont [10/16] 0.0, 128
      %672 = vxpose.xlu0.b32.cont [11/16] 0.0, 128
      %673 = vxpose.xlu0.b32.cont [12/16] 0.0, 128
      %674 = vxpose.xlu0.b32.cont [13/16] 0.0, 128
      %675 = vxpose.xlu0.b32.cont [14/16] 0.0, 128
      %676 = vxpose.xlu0.b32.cont [15/16] 0.0, 128
      %677 = vxpose.xlu0.b32.end [16/16] 0.0, 128
      %v678 = vpop.trf.xlu0
      %v679 = vpop.trf.xlu0
      %v680 = vpop.trf.xlu0
      %v681 = vpop.trf.xlu0
      %v682 = vpop.trf.xlu0
      %v683 = vpop.trf.xlu0
      %v684 = vpop.trf.xlu0
      %v685 = vpop.trf.xlu0
      %v686 = vpop.trf.xlu0
      %v687 = vpop.trf.xlu0
      %v688 = vpop.trf.xlu0
      %v689 = vpop.trf.xlu0
      %v690 = vpop.trf.xlu0
      %v691 = vpop.trf.xlu0
      %v692 = vpop.trf.xlu0
      %v693 = vpop.trf.xlu0
      %vm694 = vcmask 56320
      %v696 = vsel %vm694, %v678, 0
      %v699 = vsel %vm694, %v679, 0
      %v702 = vsel %vm694, %v680, 0
      %v705 = vsel %vm694, %v681, 0
      %vm707 = vcmask 1046528
      %v709 = vsel %vm707, %v619, 0
      %711 = vmatprep.subr.mxu0 0.0
      %712 = vmatpush1.msra.mxu0 %v709
      %713 = vmatprep.subr.mxu0 0.0
      %714 = vmatpush1.msra.mxu0 0.0
      %715 = vmatprep.subr.mxu0 0.0
      %716 = vmatpush1.msra.mxu0 0.0
      %717 = vmatprep.subr.mxu0 0.0
      %718 = vmatpush1.msra.mxu0 0.0
      %719 = vmatprep.subr.mxu0 0.0
      %720 = vmatpush1.msra.mxu0 0.0
      %721 = vmatprep.subr.mxu0 0.0
      %722 = vmatpush1.msra.mxu0 0.0
      %723 = vmatprep.subr.mxu0 0.0
      %724 = vmatpush1.msra.mxu0 0.0
      %725 = vmatprep.subr.mxu0 0.0
      %726 = vmatpush1.msra.mxu0 0.0
      %727 = vmatprep.subr.mxu0 0.0
      %728 = vmatpush1.msra.mxu0 0.0
      %729 = vmatprep.subr.mxu0 0.0
      %730 = vmatpush1.msra.mxu0 0.0
      %731 = vmatprep.subr.mxu0 0.0
      %732 = vmatpush1.msra.mxu0 0.0
      %733 = vmatprep.subr.mxu0 0.0
      %734 = vmatpush1.msra.mxu0 0.0
      %735 = vmatprep.subr.mxu0 0.0
      %736 = vmatpush1.msra.mxu0 0.0
      %737 = vmatprep.subr.mxu0 0.0
      %738 = vmatpush1.msra.mxu0 0.0
      %739 = vmatprep.subr.mxu0 0.0
      %740 = vmatpush1.msra.mxu0 0.0
      %741 = vmatprep.subr.mxu0 0.0
      %742 = vmatpush1.msra.mxu0 0.0
      %743 = vmatprep.subr.mxu0 0.0
      %744 = vmatpush1.msra.mxu0 0.0
      %745 = vmatprep.subr.mxu0 0.0
      %746 = vmatpush1.msra.mxu0 0.0
      %747 = vmatprep.subr.mxu0 0.0
      %748 = vmatpush1.msra.mxu0 0.0
      %749 = vmatprep.subr.mxu0 0.0
      %750 = vmatpush1.msra.mxu0 0.0
      %751 = vmatprep.subr.mxu0 0.0
      %752 = vmatpush1.msra.mxu0 0.0
      %753 = vmatprep.subr.mxu0 0.0
      %754 = vmatpush1.msra.mxu0 0.0
      %755 = vmatprep.subr.mxu0 0.0
      %756 = vmatpush1.msra.mxu0 0.0
      %757 = vmatprep.subr.mxu0 0.0
      %758 = vmatpush1.msra.mxu0 0.0
      %759 = vmatprep.subr.mxu0 0.0
      %760 = vmatpush1.msra.mxu0 0.0
      %761 = vmatprep.subr.mxu0 0.0
      %762 = vmatpush1.msra.mxu0 0.0
      %763 = vmatprep.subr.mxu0 0.0
      %764 = vmatpush1.msra.mxu0 0.0
      %765 = vmatprep.subr.mxu0 0.0
      %766 = vmatpush1.msra.mxu0 0.0
      %767 = vmatprep.subr.mxu0 0.0
      %768 = vmatpush1.msra.mxu0 0.0
      %769 = vmatprep.subr.mxu0 0.0
      %770 = vmatpush1.msra.mxu0 0.0
      %771 = vmatprep.subr.mxu0 0.0
      %772 = vmatpush1.msra.mxu0 0.0
      %773 = vmatprep.subr.mxu0 0.0
      %774 = vmatpush1.msra.mxu0 0.0
      %775 = vmatprep.mubr.f32.mxu0 0.0
      %776 = vmatmul.mubr.f32.gmra.mrb[0].mxu0 %v696
      %v777 = vpop.f32.mrb[0].mxu0
      %v778 = vadd.f32 0.0, %v777
      %v779 = vpop.f32.mrb[0].mxu0
      %780 = vmatprep.mubr.f32.mxu0 0.0
      %781 = vmatmul.mubr.f32.gmra.mrb[0].mxu0 %v699
      %v782 = vpop.f32.mrb[0].mxu0
      %v783 = vadd.f32 0.0, %v782
      %v784 = vpop.f32.mrb[0].mxu0
      %785 = vmatprep.mubr.f32.mxu0 0.0
      %786 = vmatmul.mubr.f32.gmra.mrb[0].mxu0 %v702
      %v787 = vpop.f32.mrb[0].mxu0
      %v788 = vadd.f32 0.0, %v787
      %v789 = vpop.f32.mrb[0].mxu0
      %790 = vmatprep.mubr.f32.mxu0 0.0
      %791 = vmatmul.mubr.f32.gmra.mrb[0].mxu0 %v705
      %v792 = vpop.f32.mrb[0].mxu0
      %v793 = vadd.f32 0.0, %v792
      %v794 = vpop.f32.mrb[0].mxu0
      %795 = vdwg.mxu0
      %v796 = vmul.f32 %v778, 0.17677669
      %v797 = vmul.f32 %v783, 0.17677669
      %v798 = vmul.f32 %v788, 0.17677669
      %v799 = vmul.f32 %v793, 0.17677669
      %v801 = vsel %vm532, %v639, 0
      %v804 = vsel %vm532, %v641, 0
      %806 = vmatprep.subr.mxu0 0.0
      %807 = vmatpush1.msra.mxu0 %v796
      %808 = vmatprep.subr.mxu0 0.0
      %809 = vmatpush1.msra.mxu0 %v797
      %810 = vmatprep.subr.mxu0 0.0
      %811 = vmatpush1.msra.mxu0 %v798
      %812 = vmatprep.subr.mxu0 0.0
      %813 = vmatpush1.msra.mxu0 %v799
      %814 = vmatprep.subr.mxu0 0.0
      %815 = vmatpush1.msra.mxu0 0.0
      %816 = vmatprep.subr.mxu0 0.0
      %817 = vmatpush1.msra.mxu0 0.0
      %818 = vmatprep.subr.mxu0 0.0
      %819 = vmatpush1.msra.mxu0 0.0
      %820 = vmatprep.subr.mxu0 0.0
      %821 = vmatpush1.msra.mxu0 0.0
      %822 = vmatprep.subr.mxu0 0.0
      %823 = vmatpush1.msra.mxu0 0.0
      %824 = vmatprep.subr.mxu0 0.0
      %825 = vmatpush1.msra.mxu0 0.0
      %826 = vmatprep.subr.mxu0 0.0
      %827 = vmatpush1.msra.mxu0 0.0
      %828 = vmatprep.subr.mxu0 0.0
      %829 = vmatpush1.msra.mxu0 0.0
      %830 = vmatprep.subr.mxu0 0.0
      %831 = vmatpush1.msra.mxu0 0.0
      %832 = vmatprep.subr.mxu0 0.0
      %833 = vmatpush1.msra.mxu0 0.0
      %834 = vmatprep.subr.mxu0 0.0
      %835 = vmatpush1.msra.mxu0 0.0
      %836 = vmatprep.subr.mxu0 0.0
      %837 = vmatpush1.msra.mxu0 0.0
      %838 = vmatprep.subr.mxu0 0.0
      %839 = vmatpush1.msra.mxu0 0.0
      %840 = vmatprep.subr.mxu0 0.0
      %841 = vmatpush1.msra.mxu0 0.0
      %842 = vmatprep.subr.mxu0 0.0
      %843 = vmatpush1.msra.mxu0 0.0
      %844 = vmatprep.subr.mxu0 0.0
      %845 = vmatpush1.msra.mxu0 0.0
      %846 = vmatprep.subr.mxu0 0.0
      %847 = vmatpush1.msra.mxu0 0.0
      %848 = vmatprep.subr.mxu0 0.0
      %849 = vmatpush1.msra.mxu0 0.0
      %850 = vmatprep.subr.mxu0 0.0
      %851 = vmatpush1.msra.mxu0 0.0
      %852 = vmatprep.subr.mxu0 0.0
      %853 = vmatpush1.msra.mxu0 0.0
      %854 = vmatprep.subr.mxu0 0.0
      %855 = vmatpush1.msra.mxu0 0.0
      %856 = vmatprep.subr.mxu0 0.0
      %857 = vmatpush1.msra.mxu0 0.0
      %858 = vmatprep.subr.mxu0 0.0
      %859 = vmatpush1.msra.mxu0 0.0
      %860 = vmatprep.subr.mxu0 0.0
      %861 = vmatpush1.msra.mxu0 0.0
      %862 = vmatprep.subr.mxu0 0.0
      %863 = vmatpush1.msra.mxu0 0.0
      %864 = vmatprep.subr.mxu0 0.0
      %865 = vmatpush1.msra.mxu0 0.0
      %866 = vmatprep.subr.mxu0 0.0
      %867 = vmatpush1.msra.mxu0 0.0
      %868 = vmatprep.subr.mxu0 0.0
      %869 = vmatpush1.msra.mxu0 0.0
      %870 = vmatprep.mubr.f32.mxu0 0.0
      %871 = vmatmul.mubr.f32.gmra.mrb[0].mxu0 %v801
      %v872 = vpop.f32.mrb[0].mxu0
      %v873 = vadd.f32 0.0, %v872
      %v874 = vpop.f32.mrb[0].mxu0
      %875 = vmatprep.mubr.f32.mxu0 0.0
      %876 = vmatmul.mubr.f32.gmra.mrb[0].mxu0 %v804
      %v877 = vpop.f32.mrb[0].mxu0
      %v878 = vadd.f32 0.0, %v877
      %v879 = vpop.f32.mrb[0].mxu0
      %880 = vdwg.mxu0
      %v881 = vpack.c.bf16 %v878, %v873
      %v882 = vld [vmem:[%s6] sm:$0xf]
      %v883 = vld [vmem:[%s6 + $0x4] sm:$0xf]
      %v884 = vld [vmem:[%s6 + $0x8] sm:$0xf]
      %v885 = vld [vmem:[%s6 + $0xc] sm:$0xf]
      %v890 = vunpack.c.l.b16 %v882
      %v891 = vunpack.c.l.b16 %v883
      %v892 = vunpack.c.l.b16 %v884
      %v893 = vunpack.c.l.b16 %v885
      %v894 = vpack.c.b16 %v891, %v890
      %v895 = vpack.c.b16 %v893, %v892
      %v899 = vsel %vm532, %v881, 0
      %901 = vmatprep.subr.bf16.mxu0 0
      %902 = vmatpush1.bf16.msra.mxu0 %v894
      %903 = vmatprep.subr.bf16.mxu0 0
      %904 = vmatpush1.bf16.msra.mxu0 %v895
      %905 = vmatprep.subr.bf16.mxu0 0
      %906 = vmatpush1.bf16.msra.mxu0 0
      %907 = vmatprep.subr.bf16.mxu0 0
      %908 = vmatpush1.bf16.msra.mxu0 0
      %909 = vmatprep.subr.bf16.mxu0 0
      %910 = vmatpush1.bf16.msra.mxu0 0
      %911 = vmatprep.subr.bf16.mxu0 0
      %912 = vmatpush1.bf16.msra.mxu0 0
      %913 = vmatprep.subr.bf16.mxu0 0
      %914 = vmatpush1.bf16.msra.mxu0 0
      %915 = vmatprep.subr.bf16.mxu0 0
      %916 = vmatpush1.bf16.msra.mxu0 0
      %917 = vmatprep.subr.bf16.mxu0 0
      %918 = vmatpush1.bf16.msra.mxu0 0
      %919 = vmatprep.subr.bf16.mxu0 0
      %920 = vmatpush1.bf16.msra.mxu0 0
      %921 = vmatprep.subr.bf16.mxu0 0
      %922 = vmatpush1.bf16.msra.mxu0 0
      %923 = vmatprep.subr.bf16.mxu0 0
      %924 = vmatpush1.bf16.msra.mxu0 0
      %925 = vmatprep.subr.bf16.mxu0 0
      %926 = vmatpush1.bf16.msra.mxu0 0
      %927 = vmatprep.subr.bf16.mxu0 0
      %928 = vmatpush1.bf16.msra.mxu0 0
      %929 = vmatprep.subr.bf16.mxu0 0
      %930 = vmatpush1.bf16.msra.mxu0 0
      %931 = vmatprep.subr.bf16.mxu0 0
      %932 = vmatpush1.bf16.msra.mxu0 0
      %933 = vmatprep.mubr.bf16.mxu0 0
      %934 = vmatmul.mubr.bf16.gmra.mrb[0].mxu0 %v899
      %v935 = vpop.f32.mrb[0].mxu0
      %v936 = vadd.f32 0.0, %v935
      %v937 = vpop.f32.mrb[0].mxu0
      %v938 = vpop.f32.mrb[0].mxu0
      %v939 = vadd.f32 0.0, %v938
      %v940 = vpop.f32.mrb[0].mxu0
      %941 = vdwg.mxu0
      %v942 = vadd.f32 %v528, %v936
      %v943 = vadd.f32 %v529, %v939
      %v944 = vld [vmem:[%s7] sm:$0x1]
      %v946 = vlaneseq
      %v947 = vshrl.u32 %v946, 7
      %v948 = vsub.s32 0, %v947
      %v949 = vrot.slane %v944, %v948
      %v951 = vadd.f32 %v942, %v949
      %v952 = vadd.f32 %v943, %v949
      %v953 = vmul.f32 %v951, %v951
      %v954 = vmul.f32 %v952, %v952
      %v955 = vsel %vm532, %v953, 0.0
      %956 = vadd.xlane.f32.xlu0 %v955
      %v957 = vpop.xlane.xlu0 %956
      %v958 = vsel %vm532, %v954, 0.0
      %959 = vadd.xlane.f32.xlu0 %v958
      %v960 = vpop.xlane.xlu0 %959
      %v961 = vmul.f32 %v957, %v539
      %v962 = vmul.f32 %v960, %v539
      %v963 = vadd.f32 %v961, 1.1920929e-07
      %v964 = vadd.f32 %v962, 1.1920929e-07
      %v965 = vrsqrt.pop %v963
      %v966 = vrsqrt.pop %v964
      %v967 = vmul.f32 %v951, %v965
      %v968 = vmul.f32 %v952, %v966
      %v969 = vld [vmem:[%s8] sm:$0x1]
      %v971 = vlaneseq
      %v972 = vshrl.u32 %v971, 7
      %v973 = vsub.s32 0, %v972
      %v974 = vrot.slane %v969, %v973
      %v976 = vmul.f32 %v967, %v974
      %v977 = vmul.f32 %v968, %v974
      %v978 = vmax.f32 %v976, 0.0
      %v979 = vmax.f32 %v977, 0.0
      %v980 = vpack.c.bf16 %v979, %v978
      %v981 = vld [vmem:[%s9] sm:$0xf]
      %v982 = vld [vmem:[%s9 + $0x4] sm:$0xf]
      %v983 = vld [vmem:[%s9 + $0x8] sm:$0xf]
      %v984 = vld [vmem:[%s9 + $0xc] sm:$0xf]
      %v985 = vld [vmem:[%s10] sm:$0x1]
      %v987 = vlaneseq
      %v988 = vshrl.u32 %v987, 7
      %v989 = vsub.s32 0, %v988
      %v990 = vrot.slane %v985, %v989
      %v996 = vunpack.c.l.b16 %v981
      %v997 = vunpack.c.l.b16 %v982
      %v998 = vunpack.c.l.b16 %v983
      %v999 = vunpack.c.l.b16 %v984
      %v1000 = vpack.c.b16 %v997, %v996
      %v1001 = vpack.c.b16 %v999, %v998
      %v1005 = vsel %vm532, %v980, 0
      %1007 = vmatprep.subr.bf16.mxu0 0
      %1008 = vmatpush1.bf16.msra.mxu0 %v1000
      %1009 = vmatprep.subr.bf16.mxu0 0
      %1010 = vmatpush1.bf16.msra.mxu0 %v1001
      %1011 = vmatprep.subr.bf16.mxu0 0
      %1012 = vmatpush1.bf16.msra.mxu0 0
      %1013 = vmatprep.subr.bf16.mxu0 0
      %1014 = vmatpush1.bf16.msra.mxu0 0
      %1015 = vmatprep.subr.bf16.mxu0 0
      %1016 = vmatpush1.bf16.msra.mxu0 0
      %1017 = vmatprep.subr.bf16.mxu0 0
      %1018 = vmatpush1.bf16.msra.mxu0 0
      %1019 = vmatprep.subr.bf16.mxu0 0
      %1020 = vmatpush1.bf16.msra.mxu0 0
      %1021 = vmatprep.subr.bf16.mxu0 0
      %1022 = vmatpush1.bf16.msra.mxu0 0
      %1023 = vmatprep.subr.bf16.mxu0 0
      %1024 = vmatpush1.bf16.msra.mxu0 0
      %1025 = vmatprep.subr.bf16.mxu0 0
      %1026 = vmatpush1.bf16.msra.mxu0 0
      %1027 = vmatprep.subr.bf16.mxu0 0
      %1028 = vmatpush1.bf16.msra.mxu0 0
      %1029 = vmatprep.subr.bf16.mxu0 0
      %1030 = vmatpush1.bf16.msra.mxu0 0
      %1031 = vmatprep.subr.bf16.mxu0 0
      %1032 = vmatpush1.bf16.msra.mxu0 0
      %1033 = vmatprep.subr.bf16.mxu0 0
      %1034 = vmatpush1.bf16.msra.mxu0 0
      %1035 = vmatprep.subr.bf16.mxu0 0
      %1036 = vmatpush1.bf16.msra.mxu0 0
      %1037 = vmatprep.subr.bf16.mxu0 0
      %1038 = vmatpush1.bf16.msra.mxu0 0
      %1039 = vmatprep.mubr.bf16.mxu0 0
      %1040 = vmatmul.mubr.bf16.gmra.mrb[0].mxu0 %v1005
      %v1041 = vpop.f32.mrb[0].mxu0
      %v1042 = vadd.f32 %v990, %v1041
      %v1043 = vpop.f32.mrb[0].mxu0
      %v1044 = vpop.f32.mrb[0].mxu0
      %v1045 = vadd.f32 %v990, %v1044
      %v1046 = vpop.f32.mrb[0].mxu0
      %1047 = vdwg.mxu0
      %v1048 = vmul.f32 %v1042, %v1042
      %v1049 = vmul.f32 %v1045, %v1045
      %1050 = vadd.xlane.f32.xlu0 %v1048
      %v1051 = vpop.xlane.xlu0 %1050
      %1052 = vadd.xlane.f32.xlu0 %v1049
      %v1053 = vpop.xlane.xlu0 %1052
      %v1054 = vrcp.pop 128.0
      %v1055 = vmul.f32 %v1051, %v1054
      %v1056 = vmul.f32 %v1053, %v1054
      %v1057 = vadd.f32 %v1055, 1.1920929e-07
      %v1058 = vadd.f32 %v1056, 1.1920929e-07
      %v1059 = vrsqrt.pop %v1057
      %v1060 = vrsqrt.pop %v1058
      %v1061 = vmul.f32 %v1042, %v1059
      %v1062 = vmul.f32 %v1045, %v1060
      %v1063 = vld [vmem:[%s11] sm:$0x1]
      %v1065 = vlaneseq
      %v1066 = vshrl.u32 %v1065, 7
      %v1067 = vsub.s32 0, %v1066
      %v1068 = vrot.slane %v1063, %v1067
      %v1070 = vmul.f32 %v1061, %v1068
      %v1071 = vmul.f32 %v1062, %v1068
      %v1072 = vmax.f32 %v1070, 0.0
      %v1073 = vmax.f32 %v1071, 0.0
      %v1074 = vpack.c.bf16 %v1073, %v1072
      %v1075 = vld [vmem:[%s12] sm:$0xf]
      %v1076 = vld [vmem:[%s12 + $0x4] sm:$0xf]
      %v1077 = vld [vmem:[%s12 + $0x8] sm:$0xf]
      %v1078 = vld [vmem:[%s12 + $0xc] sm:$0xf]
      %v1079 = vld [vmem:[%s12 + $0x10] sm:$0xf]
      %v1080 = vld [vmem:[%s12 + $0x14] sm:$0xf]
      %v1081 = vld [vmem:[%s12 + $0x18] sm:$0xf]
      %v1082 = vld [vmem:[%s12 + $0x1c] sm:$0xf]
      %v1083 = vld [vmem:[%s12 + $0x20] sm:$0xf]
      %v1084 = vld [vmem:[%s12 + $0x24] sm:$0xf]
      %v1085 = vld [vmem:[%s12 + $0x28] sm:$0xf]
      %v1086 = vld [vmem:[%s12 + $0x2c] sm:$0xf]
      %v1087 = vld [vmem:[%s12 + $0x30] sm:$0xf]
      %v1088 = vld [vmem:[%s12 + $0x34] sm:$0xf]
      %v1089 = vld [vmem:[%s12 + $0x38] sm:$0xf]
      %v1090 = vld [vmem:[%s12 + $0x3c] sm:$0xf]
      %v1091 = vld [vmem:[%s13] sm:$0x1]
      %v1093 = vlaneseq
      %v1094 = vshrl.u32 %v1093, 7
      %v1095 = vsub.s32 0, %v1094
      %v1096 = vrot.slane %v1091, %v1095
      %v1114 = vunpack.c.l.b16 %v1075
      %v1115 = vunpack.c.l.b16 %v1076
      %v1116 = vunpack.c.l.b16 %v1077
      %v1117 = vunpack.c.l.b16 %v1078
      %v1118 = vunpack.c.l.b16 %v1079
      %v1119 = vunpack.c.l.b16 %v1080
      %v1120 = vunpack.c.l.b16 %v1081
      %v1121 = vunpack.c.l.b16 %v1082
      %v1122 = vunpack.c.l.b16 %v1083
      %v1123 = vunpack.c.l.b16 %v1084
      %v1124 = vunpack.c.l.b16 %v1085
      %v1125 = vunpack.c.l.b16 %v1086
      %v1126 = vunpack.c.l.b16 %v1087
      %v1127 = vunpack.c.l.b16 %v1088
      %v1128 = vunpack.c.l.b16 %v1089
      %v1129 = vunpack.c.l.b16 %v1090
      %v1130 = vpack.c.b16 %v1115, %v1114
      %v1131 = vpack.c.b16 %v1117, %v1116
      %v1132 = vpack.c.b16 %v1119, %v1118
      %v1133 = vpack.c.b16 %v1121, %v1120
      %v1134 = vpack.c.b16 %v1123, %v1122
      %v1135 = vpack.c.b16 %v1125, %v1124
      %v1136 = vpack.c.b16 %v1127, %v1126
      %v1137 = vpack.c.b16 %v1129, %v1128
      %1146 = vmatprep.subr.bf16.mxu0 0
      %1147 = vmatpush1.bf16.msra.mxu0 %v1130
      %1148 = vmatprep.subr.bf16.mxu0 0
      %1149 = vmatpush1.bf16.msra.mxu0 %v1131
      %1150 = vmatprep.subr.bf16.mxu0 0
      %1151 = vmatpush1.bf16.msra.mxu0 %v1132
      %1152 = vmatprep.subr.bf16.mxu0 0
      %1153 = vmatpush1.bf16.msra.mxu0 %v1133
      %1154 = vmatprep.subr.bf16.mxu0 0
      %1155 = vmatpush1.bf16.msra.mxu0 %v1134
      %1156 = vmatprep.subr.bf16.mxu0 0
      %1157 = vmatpush1.bf16.msra.mxu0 %v1135
      %1158 = vmatprep.subr.bf16.mxu0 0
      %1159 = vmatpush1.bf16.msra.mxu0 %v1136
      %1160 = vmatprep.subr.bf16.mxu0 0
      %1161 = vmatpush1.bf16.msra.mxu0 %v1137
      %1162 = vmatprep.subr.bf16.mxu0 0
      %1163 = vmatpush1.bf16.msra.mxu0 0
      %1164 = vmatprep.subr.bf16.mxu0 0
      %1165 = vmatpush1.bf16.msra.mxu0 0
      %1166 = vmatprep.subr.bf16.mxu0 0
      %1167 = vmatpush1.bf16.msra.mxu0 0
      %1168 = vmatprep.subr.bf16.mxu0 0
      %1169 = vmatpush1.bf16.msra.mxu0 0
      %1170 = vmatprep.subr.bf16.mxu0 0
      %1171 = vmatpush1.bf16.msra.mxu0 0
      %1172 = vmatprep.subr.bf16.mxu0 0
      %1173 = vmatpush1.bf16.msra.mxu0 0
      %1174 = vmatprep.subr.bf16.mxu0 0
      %1175 = vmatpush1.bf16.msra.mxu0 0
      %1176 = vmatprep.subr.bf16.mxu0 0
      %1177 = vmatpush1.bf16.msra.mxu0 0
      %1178 = vmatprep.mubr.bf16.mxu0 0
      %1179 = vmatmul.mubr.bf16.gmra.mrb[0].mxu0 %v1074
      %v1180 = vpop.f32.mrb[0].mxu0
      %v1181 = vadd.f32 %v1096, %v1180
      %v1182 = vpop.f32.mrb[0].mxu0
      %v1183 = vpop.f32.mrb[0].mxu0
      %v1184 = vadd.f32 %v1096, %v1183
      %v1185 = vpop.f32.mrb[0].mxu0
      %1186 = vdwg.mxu0
      %v1187 = vadd.f32 %v951, %v1181
      %v1188 = vadd.f32 %v952, %v1184
      %1189 = vst.msk [vmem:[%s525] sm:$0xff] %vm532, %v1187
      %1190 = vst.msk [vmem:[%s525 + $0x8] sm:$0xff] %vm532, %v1188
      %s1191 = smul.u32 2, %s30
      %p1192 = scmp.lt.s32.totalorder %s29, 1
      %s1193 = scalar_select %p1192, %s29, 1
      %p1194 = scmp.lt.s32.totalorder %s1191, 1
      %s1195 = scalar_select %p1194, %s1191, 1
      %s1196 = smul.addr %s1193, 2
      %s1197 = sadd.s32 %s1195, %s1196
      %s1198 = smul.addr %s1197, 8
      %s1199 = scalar_lea.vmem %s14, %s1198
      // Predicated region
      $region77: #{_lambda_.9} parent=75 // pred_check
        %p1200 = pneg %p366
      $region78: #{_lambda_.9} parent=75 // pred_check_branch
        %1202 = sbr.rel (%p1200) target = $region80
      $region79: #{_lambda_.9} parent=75 // pred_region
        %s1203 = smul.u32 2, %s30
      $region80: #{_lambda_.9} parent=75 // pred_fallthru
        _
    $region76: #{_lambda_.9} parent=5 // pred_fallthru
      _
    %p1204 = scmp.le.s32.totalorder 2, %s20
    // Predicated region
    $region81: #{_lambda_.9} parent=5 // pred_check
      %p1205 = pneg %p1204
    $region82: #{_lambda_.9} parent=5 // pred_check_branch
      %1207 = sbr.rel (%p1205) target = $region84
    $region83: #{_lambda_.9} parent=5 // pred_region
      %s1208 = ssub.s32 %s20, 2
      // Predicated region
      $region85: #{_lambda_.9} parent=83 // pred_check
        %p1209 = pneg %p372
      $region86: #{_lambda_.9} parent=83 // pred_check_branch
        %1211 = sbr.rel (%p1209) target = $region88
      $region87: #{_lambda_.9} parent=83 // pred_region
        %s1212 = smul.u32 2, %s32
        %p1213 = scmp.lt.s32.totalorder %s31, 1
        %s1214 = scalar_select %p1213, %s31, 1
        %p1215 = scmp.lt.s32.totalorder %s1212, 1
        %s1216 = scalar_select %p1215, %s1212, 1
        %s1217 = smul.addr %s1214, 2
        %s1218 = sadd.s32 %s1216, %s1217
        %s1219 = smul.addr %s1218, 8
        %s1220 = scalar_lea.vmem %s14, %s1219
      $region88: #{_lambda_.9} parent=83 // pred_fallthru
        _
    $region84: #{_lambda_.9} parent=5 // pred_fallthru
      _
  $region6: #{_lambda_.9} parent=0 // loop_footer
    %s24 = sadd.s32 1, %s20
  $region7: #{_lambda_.9} parent=0 // loop_footer_branch
    %19 = sbr.rel target = $region3
  $region8: #{_lambda_.9} parent=0 // loop_exit
    _

// kernel: _lambda_.11
$region0: #{_lambda_.11}
  #allocation0 [shape = 'u32[]', space=smem, size = 0x4, offset = 0x4, fixed_abs, tag = 'smem constant byte address 0x4 - core index']
  #allocation1 [shape = 'u32[144,128]{1,0:T(1,128)}', space=vmem, size = 0x12000, scoped, tag = 'internal scratch']
  %s0 = inlined_call_operand.vmem [shape: f32[2,16,32], index: 0, kind: input, shape index: {}]
  %s1 = inlined_call_operand.vmem [shape: f32[2,16,32], index: 1, kind: input, shape index: {}]
  %s2 = inlined_call_operand.vmem [shape: f32[2,16,32], index: 2, kind: input, shape index: {}]
  %s3 = inlined_call_operand.vmem [shape: f32[32,32], index: 3, kind: input, shape index: {}]
  %s4 = inlined_call_operand.vmem [shape: f32[1,32], index: 4, kind: input, shape index: {}, may-alias: {4,8}]
  %s5 = inlined_call_operand.vmem [shape: bf16[32,32], index: 5, kind: input, shape index: {}]
  %s6 = inlined_call_operand.vmem [shape: bf16[32,32], index: 6, kind: input, shape index: {}]
  %s7 = inlined_call_operand.vmem [shape: f32[1,32], index: 7, kind: input, shape index: {}, may-alias: {7,13}]
  %s8 = inlined_call_operand.vmem [shape: f32[1,32], index: 8, kind: input, shape index: {}, may-alias: {4,8}]
  %s9 = inlined_call_operand.vmem [shape: bf16[32,128], index: 9, kind: input, shape index: {}]
  %s10 = inlined_call_operand.vmem [shape: f32[1,128], index: 10, kind: input, shape index: {}]
  %s11 = inlined_call_operand.vmem [shape: f32[1,128], index: 11, kind: input, shape index: {}]
  %s12 = inlined_call_operand.vmem [shape: bf16[128,32], index: 12, kind: input, shape index: {}]
  %s13 = inlined_call_operand.vmem [shape: f32[1,32], index: 13, kind: input, shape index: {}, may-alias: {7,13}]
  %s14 = inlined_call_operand.vmem [shape: f32[2,16,32], index: 14, kind: output, shape index: {}]
  %s15 = sld [smem:[#allocation0]]
  $region89: #{_lambda_.11} parent=0
    _
  %s17 = ssub.s32 1, %s15
  %s18 = scalar_select 0, %s17, %s15
  loop: start=0, step=1, limit=4
  $region2: #{_lambda_.11} parent=0 // loop_pre_header
    _
  $region3: #{_lambda_.11} parent=0 // loop_header
    %s20 = sphi 0, %s24
    %p21 = scmp.ge.s32.totalorder %s20, 4
    %s27 = sphi 0, %s39
    %s28 = sphi 0, %s35
    %s29 = sphi 0, %s27
    %s30 = sphi 0, %s28
    %s31 = sphi 0, %s29
    %s32 = sphi 0, %s30
    %s44 = sphi 0, %s46
    %s47 = sphi 0, %s44
    %s48 = sphi 0, %s47
    %s64 = sphi 0, %s48
    %s70 = sphi 0, %s72
    %s73 = sphi 0, %s70
    %s74 = sphi 0, %s73
    %s90 = sphi 0, %s74
    %s96 = sphi 0, %s98
    %s99 = sphi 0, %s96
    %s100 = sphi 0, %s99
    %s116 = sphi 0, %s100
    %s120 = sphi 0, %s120
    %s122 = sphi 0, %s120
    %s123 = sphi 0, %s122
    %s137 = sphi 0, %s123
    %s141 = sphi 0, %s141
    %s143 = sphi 0, %s141
    %s144 = sphi 0, %s143
    %s158 = sphi 0, %s144
    %s162 = sphi 0, %s162
    %s164 = sphi 0, %s162
    %s165 = sphi 0, %s164
    %s179 = sphi 0, %s165
    %s183 = sphi 0, %s183
    %s185 = sphi 0, %s183
    %s186 = sphi 0, %s185
    %s200 = sphi 0, %s186
    %s204 = sphi 0, %s204
    %s206 = sphi 0, %s204
    %s207 = sphi 0, %s206
    %s221 = sphi 0, %s207
    %s225 = sphi 0, %s225
    %s227 = sphi 0, %s225
    %s228 = sphi 0, %s227
    %s242 = sphi 0, %s228
    %s246 = sphi 0, %s246
    %s248 = sphi 0, %s246
    %s249 = sphi 0, %s248
    %s263 = sphi 0, %s249
    %s267 = sphi 0, %s267
    %s269 = sphi 0, %s267
    %s270 = sphi 0, %s269
    %s284 = sphi 0, %s270
    %s288 = sphi 0, %s288
    %s290 = sphi 0, %s288
    %s291 = sphi 0, %s290
    %s305 = sphi 0, %s291
    %s309 = sphi 0, %s309
    %s311 = sphi 0, %s309
    %s312 = sphi 0, %s311
    %s326 = sphi 0, %s312
    %s330 = sphi 0, %s330
    %s332 = sphi 0, %s330
    %s333 = sphi 0, %s332
    %s347 = sphi 0, %s333
    %s355 = sphi 0, %s357
    %s358 = sphi 0, %s355
    %s359 = sphi 0, %s358
    %s375 = sphi 0, %s359
  $region4: #{_lambda_.11} parent=0 // loop_header_branch
    %23 = sbr.rel (%p21) target = $region8
  $region5: #{_lambda_.11} parent=0 // loop_body
    %s25 = ssub.s32 %s20, 1
    %s26 = ssub.s32 %s20, 2
    %s33 = sadd.s32 1, %s28
    %p34 = scmp.ge.s32.totalorder %s33, 1
    %s35 = scalar_select %p34, 0, %s33
    %s36 = sadd.s32 1, %s27
    %s37 = scalar_select %p34, %s36, %s27
    %p38 = scmp.ge.s32.totalorder %s37, 2
    %s39 = scalar_select %p38, 0, %s37
    %s40 = ssub.s32 %s27, %s39
    %s41 = ssub.s32 %s28, %s35
    %s42 = sor.u32 %s40, %s41
    %p43 = scmp.eq.s32.totalorder %s42, 0
    %s45 = sadd.s32 %s44, 1
    %s46 = scalar_select %p43, %s44, %s45
    %p49 = pneg %p43
    %p50 = scmp.eq.s32.totalorder %s20, 1
    %p51 = por %p49, %p50
    %p52 = scmp.ne.s32.totalorder %s44, %s47
    %p53 = scmp.eq.s32.totalorder %s20, 0
    %p54 = por %p52, %p53
    %p55 = scmp.ne.s32.totalorder %s44, %s47
    %p56 = scmp.eq.s32.totalorder %s25, 1
    %p57 = por %p55, %p56
    %p58 = scmp.ne.s32.totalorder %s47, %s48
    %p59 = scmp.eq.s32.totalorder %s25, 0
    %p60 = por %p58, %p59
    %p61 = scmp.ne.s32.totalorder %s47, %s48
    %p62 = scmp.eq.s32.totalorder %s26, 1
    %p63 = por %p61, %p62
    %p65 = scmp.ne.s32.totalorder %s48, %s64
    %p66 = scmp.eq.s32.totalorder %s26, 0
    %p67 = por %p65, %p66
    %s68 = ssub.s32 %s27, %s39
    %p69 = scmp.eq.s32.totalorder %s68, 0
    %s71 = sadd.s32 %s70, 1
    %s72 = scalar_select %p69, %s70, %s71
    %p75 = pneg %p69
    %p76 = scmp.eq.s32.totalorder %s20, 1
    %p77 = por %p75, %p76
    %p78 = scmp.ne.s32.totalorder %s70, %s73
    %p79 = scmp.eq.s32.totalorder %s20, 0
    %p80 = por %p78, %p79
    %p81 = scmp.ne.s32.totalorder %s70, %s73
    %p82 = scmp.eq.s32.totalorder %s25, 1
    %p83 = por %p81, %p82
    %p84 = scmp.ne.s32.totalorder %s73, %s74
    %p85 = scmp.eq.s32.totalorder %s25, 0
    %p86 = por %p84, %p85
    %p87 = scmp.ne.s32.totalorder %s73, %s74
    %p88 = scmp.eq.s32.totalorder %s26, 1
    %p89 = por %p87, %p88
    %p91 = scmp.ne.s32.totalorder %s74, %s90
    %p92 = scmp.eq.s32.totalorder %s26, 0
    %p93 = por %p91, %p92
    %s94 = ssub.s32 %s27, %s39
    %p95 = scmp.eq.s32.totalorder %s94, 0
    %s97 = sadd.s32 %s96, 1
    %s98 = scalar_select %p95, %s96, %s97
    %p101 = pneg %p95
    %p102 = scmp.eq.s32.totalorder %s20, 1
    %p103 = por %p101, %p102
    %p104 = scmp.ne.s32.totalorder %s96, %s99
    %p105 = scmp.eq.s32.totalorder %s20, 0
    %p106 = por %p104, %p105
    %p107 = scmp.ne.s32.totalorder %s96, %s99
    %p108 = scmp.eq.s32.totalorder %s25, 1
    %p109 = por %p107, %p108
    %p110 = scmp.ne.s32.totalorder %s99, %s100
    %p111 = scmp.eq.s32.totalorder %s25, 0
    %p112 = por %p110, %p111
    %p113 = scmp.ne.s32.totalorder %s99, %s100
    %p114 = scmp.eq.s32.totalorder %s26, 1
    %p115 = por %p113, %p114
    %p117 = scmp.ne.s32.totalorder %s100, %s116
    %p118 = scmp.eq.s32.totalorder %s26, 0
    %p119 = por %p117, %p118
    %s121 = sadd.s32 %s120, 1
    %p124 = scmp.eq.s32.totalorder %s20, 1
    %p125 = scmp.ne.s32.totalorder %s120, %s122
    %p126 = scmp.eq.s32.totalorder %s20, 0
    %p127 = por %p125, %p126
    %p128 = scmp.ne.s32.totalorder %s120, %s122
    %p129 = scmp.eq.s32.totalorder %s25, 1
    %p130 = por %p128, %p129
    %p131 = scmp.ne.s32.totalorder %s122, %s123
    %p132 = scmp.eq.s32.totalorder %s25, 0
    %p133 = por %p131, %p132
    %p134 = scmp.ne.s32.totalorder %s122, %s123
    %p135 = scmp.eq.s32.totalorder %s26, 1
    %p136 = por %p134, %p135
    %p138 = scmp.ne.s32.totalorder %s123, %s137
    %p139 = scmp.eq.s32.totalorder %s26, 0
    %p140 = por %p138, %p139
    %s142 = sadd.s32 %s141, 1
    %p145 = scmp.eq.s32.totalorder %s20, 1
    %p146 = scmp.ne.s32.totalorder %s141, %s143
    %p147 = scmp.eq.s32.totalorder %s20, 0
    %p148 = por %p146, %p147
    %p149 = scmp.ne.s32.totalorder %s141, %s143
    %p150 = scmp.eq.s32.totalorder %s25, 1
    %p151 = por %p149, %p150
    %p152 = scmp.ne.s32.totalorder %s143, %s144
    %p153 = scmp.eq.s32.totalorder %s25, 0
    %p154 = por %p152, %p153
    %p155 = scmp.ne.s32.totalorder %s143, %s144
    %p156 = scmp.eq.s32.totalorder %s26, 1
    %p157 = por %p155, %p156
    %p159 = scmp.ne.s32.totalorder %s144, %s158
    %p160 = scmp.eq.s32.totalorder %s26, 0
    %p161 = por %p159, %p160
    %s163 = sadd.s32 %s162, 1
    %p166 = scmp.eq.s32.totalorder %s20, 1
    %p167 = scmp.ne.s32.totalorder %s162, %s164
    %p168 = scmp.eq.s32.totalorder %s20, 0
    %p169 = por %p167, %p168
    %p170 = scmp.ne.s32.totalorder %s162, %s164
    %p171 = scmp.eq.s32.totalorder %s25, 1
    %p172 = por %p170, %p171
    %p173 = scmp.ne.s32.totalorder %s164, %s165
    %p174 = scmp.eq.s32.totalorder %s25, 0
    %p175 = por %p173, %p174
    %p176 = scmp.ne.s32.totalorder %s164, %s165
    %p177 = scmp.eq.s32.totalorder %s26, 1
    %p178 = por %p176, %p177
    %p180 = scmp.ne.s32.totalorder %s165, %s179
    %p181 = scmp.eq.s32.totalorder %s26, 0
    %p182 = por %p180, %p181
    %s184 = sadd.s32 %s183, 1
    %p187 = scmp.eq.s32.totalorder %s20, 1
    %p188 = scmp.ne.s32.totalorder %s183, %s185
    %p189 = scmp.eq.s32.totalorder %s20, 0
    %p190 = por %p188, %p189
    %p191 = scmp.ne.s32.totalorder %s183, %s185
    %p192 = scmp.eq.s32.totalorder %s25, 1
    %p193 = por %p191, %p192
    %p194 = scmp.ne.s32.totalorder %s185, %s186
    %p195 = scmp.eq.s32.totalorder %s25, 0
    %p196 = por %p194, %p195
    %p197 = scmp.ne.s32.totalorder %s185, %s186
    %p198 = scmp.eq.s32.totalorder %s26, 1
    %p199 = por %p197, %p198
    %p201 = scmp.ne.s32.totalorder %s186, %s200
    %p202 = scmp.eq.s32.totalorder %s26, 0
    %p203 = por %p201, %p202
    %s205 = sadd.s32 %s204, 1
    %p208 = scmp.eq.s32.totalorder %s20, 1
    %p209 = scmp.ne.s32.totalorder %s204, %s206
    %p210 = scmp.eq.s32.totalorder %s20, 0
    %p211 = por %p209, %p210
    %p212 = scmp.ne.s32.totalorder %s204, %s206
    %p213 = scmp.eq.s32.totalorder %s25, 1
    %p214 = por %p212, %p213
    %p215 = scmp.ne.s32.totalorder %s206, %s207
    %p216 = scmp.eq.s32.totalorder %s25, 0
    %p217 = por %p215, %p216
    %p218 = scmp.ne.s32.totalorder %s206, %s207
    %p219 = scmp.eq.s32.totalorder %s26, 1
    %p220 = por %p218, %p219
    %p222 = scmp.ne.s32.totalorder %s207, %s221
    %p223 = scmp.eq.s32.totalorder %s26, 0
    %p224 = por %p222, %p223
    %s226 = sadd.s32 %s225, 1
    %p229 = scmp.eq.s32.totalorder %s20, 1
    %p230 = scmp.ne.s32.totalorder %s225, %s227
    %p231 = scmp.eq.s32.totalorder %s20, 0
    %p232 = por %p230, %p231
    %p233 = scmp.ne.s32.totalorder %s225, %s227
    %p234 = scmp.eq.s32.totalorder %s25, 1
    %p235 = por %p233, %p234
    %p236 = scmp.ne.s32.totalorder %s227, %s228
    %p237 = scmp.eq.s32.totalorder %s25, 0
    %p238 = por %p236, %p237
    %p239 = scmp.ne.s32.totalorder %s227, %s228
    %p240 = scmp.eq.s32.totalorder %s26, 1
    %p241 = por %p239, %p240
    %p243 = scmp.ne.s32.totalorder %s228, %s242
    %p244 = scmp.eq.s32.totalorder %s26, 0
    %p245 = por %p243, %p244
    %s247 = sadd.s32 %s246, 1
    %p250 = scmp.eq.s32.totalorder %s20, 1
    %p251 = scmp.ne.s32.totalorder %s246, %s248
    %p252 = scmp.eq.s32.totalorder %s20, 0
    %p253 = por %p251, %p252
    %p254 = scmp.ne.s32.totalorder %s246, %s248
    %p255 = scmp.eq.s32.totalorder %s25, 1
    %p256 = por %p254, %p255
    %p257 = scmp.ne.s32.totalorder %s248, %s249
    %p258 = scmp.eq.s32.totalorder %s25, 0
    %p259 = por %p257, %p258
    %p260 = scmp.ne.s32.totalorder %s248, %s249
    %p261 = scmp.eq.s32.totalorder %s26, 1
    %p262 = por %p260, %p261
    %p264 = scmp.ne.s32.totalorder %s249, %s263
    %p265 = scmp.eq.s32.totalorder %s26, 0
    %p266 = por %p264, %p265
    %s268 = sadd.s32 %s267, 1
    %p271 = scmp.eq.s32.totalorder %s20, 1
    %p272 = scmp.ne.s32.totalorder %s267, %s269
    %p273 = scmp.eq.s32.totalorder %s20, 0
    %p274 = por %p272, %p273
    %p275 = scmp.ne.s32.totalorder %s267, %s269
    %p276 = scmp.eq.s32.totalorder %s25, 1
    %p277 = por %p275, %p276
    %p278 = scmp.ne.s32.totalorder %s269, %s270
    %p279 = scmp.eq.s32.totalorder %s25, 0
    %p280 = por %p278, %p279
    %p281 = scmp.ne.s32.totalorder %s269, %s270
    %p282 = scmp.eq.s32.totalorder %s26, 1
    %p283 = por %p281, %p282
    %p285 = scmp.ne.s32.totalorder %s270, %s284
    %p286 = scmp.eq.s32.totalorder %s26, 0
    %p287 = por %p285, %p286
    %s289 = sadd.s32 %s288, 1
    %p292 = scmp.eq.s32.totalorder %s20, 1
    %p293 = scmp.ne.s32.totalorder %s288, %s290
    %p294 = scmp.eq.s32.totalorder %s20, 0
    %p295 = por %p293, %p294
    %p296 = scmp.ne.s32.totalorder %s288, %s290
    %p297 = scmp.eq.s32.totalorder %s25, 1
    %p298 = por %p296, %p297
    %p299 = scmp.ne.s32.totalorder %s290, %s291
    %p300 = scmp.eq.s32.totalorder %s25, 0
    %p301 = por %p299, %p300
    %p302 = scmp.ne.s32.totalorder %s290, %s291
    %p303 = scmp.eq.s32.totalorder %s26, 1
    %p304 = por %p302, %p303
    %p306 = scmp.ne.s32.totalorder %s291, %s305
    %p307 = scmp.eq.s32.totalorder %s26, 0
    %p308 = por %p306, %p307
    %s310 = sadd.s32 %s309, 1
    %p313 = scmp.eq.s32.totalorder %s20, 1
    %p314 = scmp.ne.s32.totalorder %s309, %s311
    %p315 = scmp.eq.s32.totalorder %s20, 0
    %p316 = por %p314, %p315
    %p317 = scmp.ne.s32.totalorder %s309, %s311
    %p318 = scmp.eq.s32.totalorder %s25, 1
    %p319 = por %p317, %p318
    %p320 = scmp.ne.s32.totalorder %s311, %s312
    %p321 = scmp.eq.s32.totalorder %s25, 0
    %p322 = por %p320, %p321
    %p323 = scmp.ne.s32.totalorder %s311, %s312
    %p324 = scmp.eq.s32.totalorder %s26, 1
    %p325 = por %p323, %p324
    %p327 = scmp.ne.s32.totalorder %s312, %s326
    %p328 = scmp.eq.s32.totalorder %s26, 0
    %p329 = por %p327, %p328
    %s331 = sadd.s32 %s330, 1
    %p334 = scmp.eq.s32.totalorder %s20, 1
    %p335 = scmp.ne.s32.totalorder %s330, %s332
    %p336 = scmp.eq.s32.totalorder %s20, 0
    %p337 = por %p335, %p336
    %p338 = scmp.ne.s32.totalorder %s330, %s332
    %p339 = scmp.eq.s32.totalorder %s25, 1
    %p340 = por %p338, %p339
    %p341 = scmp.ne.s32.totalorder %s332, %s333
    %p342 = scmp.eq.s32.totalorder %s25, 0
    %p343 = por %p341, %p342
    %p344 = scmp.ne.s32.totalorder %s332, %s333
    %p345 = scmp.eq.s32.totalorder %s26, 1
    %p346 = por %p344, %p345
    %p348 = scmp.ne.s32.totalorder %s333, %s347
    %p349 = scmp.eq.s32.totalorder %s26, 0
    %p350 = por %p348, %p349
    %s351 = ssub.s32 %s27, %s39
    %s352 = ssub.s32 %s28, %s35
    %s353 = sor.u32 %s351, %s352
    %p354 = scmp.eq.s32.totalorder %s353, 0
    %s356 = sadd.s32 %s355, 1
    %s357 = scalar_select %p354, %s355, %s356
    %p360 = pneg %p354
    %p361 = scmp.eq.s32.totalorder %s20, 1
    %p362 = por %p360, %p361
    %p363 = scmp.ne.s32.totalorder %s355, %s358
    %p364 = scmp.eq.s32.totalorder %s20, 0
    %p365 = por %p363, %p364
    %p366 = scmp.ne.s32.totalorder %s355, %s358
    %p367 = scmp.eq.s32.totalorder %s25, 1
    %p368 = por %p366, %p367
    %p369 = scmp.ne.s32.totalorder %s358, %s359
    %p370 = scmp.eq.s32.totalorder %s25, 0
    %p371 = por %p369, %p370
    %p372 = scmp.ne.s32.totalorder %s358, %s359
    %p373 = scmp.eq.s32.totalorder %s26, 1
    %p374 = por %p372, %p373
    %p376 = scmp.ne.s32.totalorder %s359, %s375
    %p377 = scmp.eq.s32.totalorder %s26, 0
    %p378 = por %p376, %p377
    %p379 = scmp.le.s32.totalorder 1, %s20
    %p380 = scmp.lt.s32.totalorder %s20, 3
    %p381 = pnand %p379, %p380
    %p382 = pneg %p381
    // Predicated region
    $region9: #{_lambda_.11} parent=5 // pred_check
      _
    $region10: #{_lambda_.11} parent=5 // pred_check_branch
      %384 = sbr.rel (%p381) target = $region12
    $region11: #{_lambda_.11} parent=5 // pred_region
      %s385 = ssub.s32 %s20, 1
      // Predicated region
      $region13: #{_lambda_.11} parent=11 // pred_check
        %p386 = pneg %p133
      $region14: #{_lambda_.11} parent=11 // pred_check_branch
        %388 = sbr.rel (%p386) target = $region16
      $region15: #{_lambda_.11} parent=11 // pred_region
        _
      $region16: #{_lambda_.11} parent=11 // pred_fallthru
        _
      // Predicated region
      $region17: #{_lambda_.11} parent=11 // pred_check
        %p389 = pneg %p154
      $region18: #{_lambda_.11} parent=11 // pred_check_branch
        %391 = sbr.rel (%p389) target = $region20
      $region19: #{_lambda_.11} parent=11 // pred_region
        _
      $region20: #{_lambda_.11} parent=11 // pred_fallthru
        _
      // Predicated region
      $region21: #{_lambda_.11} parent=11 // pred_check
        %p392 = pneg %p175
      $region22: #{_lambda_.11} parent=11 // pred_check_branch
        %394 = sbr.rel (%p392) target = $region24
      $region23: #{_lambda_.11} parent=11 // pred_region
        _
      $region24: #{_lambda_.11} parent=11 // pred_fallthru
        _
      // Predicated region
      $region25: #{_lambda_.11} parent=11 // pred_check
        %p395 = pneg %p196
      $region26: #{_lambda_.11} parent=11 // pred_check_branch
        %397 = sbr.rel (%p395) target = $region28
      $region27: #{_lambda_.11} parent=11 // pred_region
        _
      $region28: #{_lambda_.11} parent=11 // pred_fallthru
        _
      // Predicated region
      $region29: #{_lambda_.11} parent=11 // pred_check
        %p398 = pneg %p217
      $region30: #{_lambda_.11} parent=11 // pred_check_branch
        %400 = sbr.rel (%p398) target = $region32
      $region31: #{_lambda_.11} parent=11 // pred_region
        _
      $region32: #{_lambda_.11} parent=11 // pred_fallthru
        _
      // Predicated region
      $region33: #{_lambda_.11} parent=11 // pred_check
        %p401 = pneg %p238
      $region34: #{_lambda_.11} parent=11 // pred_check_branch
        %403 = sbr.rel (%p401) target = $region36
      $region35: #{_lambda_.11} parent=11 // pred_region
        _
      $region36: #{_lambda_.11} parent=11 // pred_fallthru
        _
      // Predicated region
      $region37: #{_lambda_.11} parent=11 // pred_check
        %p404 = pneg %p259
      $region38: #{_lambda_.11} parent=11 // pred_check_branch
        %406 = sbr.rel (%p404) target = $region40
      $region39: #{_lambda_.11} parent=11 // pred_region
        _
      $region40: #{_lambda_.11} parent=11 // pred_fallthru
        _
      // Predicated region
      $region41: #{_lambda_.11} parent=11 // pred_check
        %p407 = pneg %p280
      $region42: #{_lambda_.11} parent=11 // pred_check_branch
        %409 = sbr.rel (%p407) target = $region44
      $region43: #{_lambda_.11} parent=11 // pred_region
        _
      $region44: #{_lambda_.11} parent=11 // pred_fallthru
        _
      // Predicated region
      $region45: #{_lambda_.11} parent=11 // pred_check
        %p410 = pneg %p301
      $region46: #{_lambda_.11} parent=11 // pred_check_branch
        %412 = sbr.rel (%p410) target = $region48
      $region47: #{_lambda_.11} parent=11 // pred_region
        _
      $region48: #{_lambda_.11} parent=11 // pred_fallthru
        _
      // Predicated region
      $region49: #{_lambda_.11} parent=11 // pred_check
        %p413 = pneg %p322
      $region50: #{_lambda_.11} parent=11 // pred_check_branch
        %415 = sbr.rel (%p413) target = $region52
      $region51: #{_lambda_.11} parent=11 // pred_region
        _
      $region52: #{_lambda_.11} parent=11 // pred_fallthru
        _
      // Predicated region
      $region53: #{_lambda_.11} parent=11 // pred_check
        %p416 = pneg %p343
      $region54: #{_lambda_.11} parent=11 // pred_check_branch
        %418 = sbr.rel (%p416) target = $region56
      $region55: #{_lambda_.11} parent=11 // pred_region
        _
      $region56: #{_lambda_.11} parent=11 // pred_fallthru
        _
    $region12: #{_lambda_.11} parent=5 // pred_fallthru
      _
    %p419 = scmp.lt.s32.totalorder %s20, 2
    // Predicated region
    $region57: #{_lambda_.11} parent=5 // pred_check
      %p420 = pneg %p419
    $region58: #{_lambda_.11} parent=5 // pred_check_branch
      %422 = sbr.rel (%p420) target = $region60
    $region59: #{_lambda_.11} parent=5 // pred_region
      // Predicated region
      $region61: #{_lambda_.11} parent=59 // pred_check
        %p423 = pneg %p54
      $region62: #{_lambda_.11} parent=59 // pred_check_branch
        %425 = sbr.rel (%p423) target = $region64
      $region63: #{_lambda_.11} parent=59 // pred_region
        %s426 = smul.u32 2, %s28
        %p427 = scmp.lt.s32.totalorder %s27, 1
        %s428 = scalar_select %p427, %s27, 1
        %p429 = scmp.lt.s32.totalorder %s426, 1
        %s430 = scalar_select %p429, %s426, 1
        %s431 = smul.addr %s428, 2
        %s432 = sadd.s32 %s430, %s431
        %s433 = smul.addr %s432, 8
        %s434 = scalar_lea.vmem %s0, %s433
        %s435 = smul.u32 2, %s28
      $region64: #{_lambda_.11} parent=59 // pred_fallthru
        _
      // Predicated region
      $region65: #{_lambda_.11} parent=59 // pred_check
        %p436 = pneg %p80
      $region66: #{_lambda_.11} parent=59 // pred_check_branch
        %438 = sbr.rel (%p436) target = $region68
      $region67: #{_lambda_.11} parent=59 // pred_region
        %p439 = scmp.lt.s32.totalorder %s27, 1
        %s440 = scalar_select %p439, %s27, 1
        %s441 = smul.addr %s440, 2
        %s442 = smul.addr %s441, 8
        %s443 = scalar_lea.vmem %s1, %s442
      $region68: #{_lambda_.11} parent=59 // pred_fallthru
        _
      // Predicated region
      $region69: #{_lambda_.11} parent=59 // pred_check
        %p444 = pneg %p106
      $region70: #{_lambda_.11} parent=59 // pred_check_branch
        %446 = sbr.rel (%p444) target = $region72
      $region71: #{_lambda_.11} parent=59 // pred_region
        %p447 = scmp.lt.s32.totalorder %s27, 1
        %s448 = scalar_select %p447, %s27, 1
        %s449 = smul.addr %s448, 2
        %s450 = smul.addr %s449, 8
        %s451 = scalar_lea.vmem %s2, %s450
      $region72: #{_lambda_.11} parent=59 // pred_fallthru
        _
    $region60: #{_lambda_.11} parent=5 // pred_fallthru
      _
    %p452 = scmp.le.s32.totalorder 1, %s20
    %p453 = scmp.lt.s32.totalorder %s20, 3
    %p454 = pnand %p452, %p453
    %p455 = pneg %p454
    // Predicated region
    $region73: #{_lambda_.11} parent=5 // pred_check
      _
    $region74: #{_lambda_.11} parent=5 // pred_check_branch
      %457 = sbr.rel (%p454) target = $region76
    $region75: #{_lambda_.11} parent=5 // pred_region
      %s458 = ssub.s32 %s20, 1
      %s459 = smul.u32 2, %s30
      %p460 = scmp.lt.s32.totalorder %s29, 1
      %s461 = scalar_select %p460, %s29, 1
      %p462 = scmp.lt.s32.totalorder %s459, 1
      %s463 = scalar_select %p462, %s459, 1
      %s464 = smul.addr %s461, 2
      %s465 = sadd.s32 %s463, %s464
      %s466 = smul.addr %s465, 8
      %s467 = scalar_lea.vmem %s0, %s466
      %p468 = pneg %p60
      %p469 = pneg %p57
      %p470 = scmp.lt.s32.totalorder %s29, 1
      %s471 = scalar_select %p470, %s29, 1
      %s472 = smul.addr %s471, 2
      %s473 = smul.addr %s472, 8
      %s474 = scalar_lea.vmem %s1, %s473
      %p475 = pneg %p86
      %p476 = pneg %p83
      %p477 = scmp.lt.s32.totalorder %s29, 1
      %s478 = scalar_select %p477, %s29, 1
      %s479 = smul.addr %s478, 2
      %s480 = smul.addr %s479, 8
      %s481 = scalar_lea.vmem %s2, %s480
      %p482 = pneg %p112
      %p483 = pneg %p109
      %p484 = pneg %p133
      %p485 = pneg %p130
      %p486 = pneg %p154
      %p487 = pneg %p151
      %p488 = pneg %p175
      %p489 = pneg %p172
      %p490 = pneg %p196
      %p491 = pneg %p193
      %p492 = pneg %p217
      %p493 = pneg %p214
      %p494 = pneg %p238
      %p495 = pneg %p235
      %p496 = pneg %p259
      %p497 = pneg %p256
      %p498 = pneg %p280
      %p499 = pneg %p277
      %p500 = pneg %p301
      %p501 = pneg %p298
      %p502 = pneg %p322
      %p503 = pneg %p319
      %p504 = pneg %p343
      %p505 = pneg %p340
      %p506 = pneg %p371
      %p507 = pneg %p368
      %s508 = smul.u32 2, %s30
      %p509 = scmp.lt.s32.totalorder %s29, 1
      %s510 = scalar_select %p509, %s29, 1
      %p511 = scmp.lt.s32.totalorder %s508, 1
      %s512 = scalar_select %p511, %s508, 1
      %s513 = smul.addr %s510, 2
      %s514 = sadd.s32 %s512, %s513
      %s515 = smul.addr %s514, 8
      %s516 = scalar_lea.vmem %s14, %s515
      %s517 = smul.u32 2, %s30
      %p518 = scmp.lt.s32.totalorder %s29, 1
      %s519 = scalar_select %p518, %s29, 1
      %p520 = scmp.lt.s32.totalorder %s517, 1
      %s521 = scalar_select %p520, %s517, 1
      %s522 = smul.addr %s519, 2
      %s523 = sadd.s32 %s521, %s522
      %s524 = smul.addr %s523, 8
      %s525 = scalar_lea.vmem %s0, %s524
      %s526 = smul.u32 2, %s30
      %p527 = scmp.lt.s32.totalorder %s29, 1
      %s528 = scalar_select %p527, %s29, 1
      %s529 = smul.addr %s528, 2
      %s530 = smul.addr %s529, 8
      %s531 = scalar_lea.vmem %s1, %s530
      %p532 = scmp.lt.s32.totalorder %s29, 1
      %s533 = scalar_select %p532, %s29, 1
      %s534 = smul.addr %s533, 2
      %s535 = smul.addr %s534, 8
      %s536 = scalar_lea.vmem %s2, %s535
      %s537 = smul.u32 2, %s30
      %p538 = scmp.lt.s32.totalorder %s29, 1
      %s539 = scalar_select %p538, %s29, 1
      %p540 = scmp.lt.s32.totalorder %s537, 1
      %s541 = scalar_select %p540, %s537, 1
      %s542 = smul.addr %s539, 2
      %s543 = sadd.s32 %s541, %s542
      %s544 = smul.addr %s543, 8
      %s545 = scalar_lea.vmem %s14, %s544
      %s546 = smul.u32 2, %s30
      %v548 = vld [vmem:[%s525] sm:$0xff]
      %v549 = vld [vmem:[%s525 + $0x8] sm:$0xff]
      %v550 = vmul.f32 %v548, %v548
      %v551 = vmul.f32 %v549, %v549
      %vm552 = vcmask 261120
      %v553 = vsel %vm552, %v550, 0.0
      %554 = vadd.xlane.f32.xlu0 %v553
      %v555 = vpop.xlane.xlu0 %554
      %v556 = vsel %vm552, %v551, 0.0
      %557 = vadd.xlane.f32.xlu0 %v556
      %v558 = vpop.xlane.xlu0 %557
      %v559 = vrcp.pop 32.0
      %v560 = vmul.f32 %v555, %v559
      %v561 = vmul.f32 %v558, %v559
      %v562 = vadd.f32 %v560, 1.1920929e-07
      %v563 = vadd.f32 %v561, 1.1920929e-07
      %v564 = vrsqrt.pop %v562
      %v565 = vrsqrt.pop %v563
      %v566 = vmul.f32 %v548, %v564
      %v567 = vmul.f32 %v549, %v565
      %v568 = vld [vmem:[%s4] sm:$0x1]
      %v570 = vlaneseq
      %v571 = vshrl.u32 %v570, 7
      %v572 = vsub.s32 0, %v571
      %v573 = vrot.slane %v568, %v572
      %v575 = vmul.f32 %v566, %v573
      %v576 = vmul.f32 %v567, %v573
      %v577 = vpack.c.bf16 %v576, %v575
      %v578 = vld [vmem:[%s5] sm:$0xf]
      %v579 = vld [vmem:[%s5 + $0x4] sm:$0xf]
      %v580 = vld [vmem:[%s5 + $0x8] sm:$0xf]
      %v581 = vld [vmem:[%s5 + $0xc] sm:$0xf]
      %v586 = vunpack.c.l.b16 %v578
      %v587 = vunpack.c.l.b16 %v579
      %v588 = vunpack.c.l.b16 %v580
      %v589 = vunpack.c.l.b16 %v581
      %v590 = vpack.c.b16 %v587, %v586
      %v591 = vpack.c.b16 %v589, %v588
      %v595 = vsel %vm552, %v577, 0
      %597 = vmatprep.subr.bf16.mxu0 0
      %598 = vmatpush1.bf16.msra.mxu0 %v590
      %599 = vmatprep.subr.bf16.mxu0 0
      %600 = vmatpush1.bf16.msra.mxu0 %v591
      %601 = vmatprep.subr.bf16.mxu0 0
      %602 = vmatpush1.bf16.msra.mxu0 0
      %603 = vmatprep.subr.bf16.mxu0 0
      %604 = vmatpush1.bf16.msra.mxu0 0
      %605 = vmatprep.subr.bf16.mxu0 0
      %606 = vmatpush1.bf16.msra.mxu0 0
      %607 = vmatprep.subr.bf16.mxu0 0
      %608 = vmatpush1.bf16.msra.mxu0 0
      %609 = vmatprep.subr.bf16.mxu0 0
      %610 = vmatpush1.bf16.msra.mxu0 0
      %611 = vmatprep.subr.bf16.mxu0 0
      %612 = vmatpush1.bf16.msra.mxu0 0
      %613 = vmatprep.subr.bf16.mxu0 0
      %614 = vmatpush1.bf16.msra.mxu0 0
      %615 = vmatprep.subr.bf16.mxu0 0
      %616 = vmatpush1.bf16.msra.mxu0 0
      %617 = vmatprep.subr.bf16.mxu0 0
      %618 = vmatpush1.bf16.msra.mxu0 0
      %619 = vmatprep.subr.bf16.mxu0 0
      %620 = vmatpush1.bf16.msra.mxu0 0
      %621 = vmatprep.subr.bf16.mxu0 0
      %622 = vmatpush1.bf16.msra.mxu0 0
      %623 = vmatprep.subr.bf16.mxu0 0
      %624 = vmatpush1.bf16.msra.mxu0 0
      %625 = vmatprep.subr.bf16.mxu0 0
      %626 = vmatpush1.bf16.msra.mxu0 0
      %627 = vmatprep.subr.bf16.mxu0 0
      %628 = vmatpush1.bf16.msra.mxu0 0
      %629 = vmatprep.mubr.bf16.mxu0 0
      %630 = vmatmul.mubr.bf16.gmra.mrb[0].mxu0 %v595
      %v631 = vpop.f32.mrb[0].mxu0
      %v632 = vadd.f32 0.0, %v631
      %v633 = vpop.f32.mrb[0].mxu0
      %v634 = vpop.f32.mrb[0].mxu0
      %v635 = vadd.f32 0.0, %v634
      %v636 = vpop.f32.mrb[0].mxu0
      %637 = vdwg.mxu0
      %v638 = vld [vmem:[%s531] sm:$0xff]
      %v639 = vld [vmem:[%s531 + $0x8] sm:$0xff]
      %v640 = vld [vmem:[%s536] sm:$0xff]
      %v641 = vld [vmem:[%s536 + $0x8] sm:$0xff]
      %v642 = vld [vmem:[%s3] sm:$0xff]
      %v643 = vld [vmem:[%s3 + $0x8] sm:$0xff]
      %v644 = vld [vmem:[%s3 + $0x10] sm:$0xff]
      %v645 = vld [vmem:[%s3 + $0x18] sm:$0xff]
      %v646 = vsel %vm552, %v632, -inf
      %647 = vmax.xlane.f32.xlu0 %v646
      %v648 = vpop.xlane.xlu0 %647
      %v649 = vsel %vm552, %v635, -inf
      %650 = vmax.xlane.f32.xlu0 %v649
      %v651 = vpop.xlane.xlu0 %650
      %v652 = vsub.f32 %v632, %v648
      %v653 = vsub.f32 %v635, %v651
      %v654 = vmul.f32 %v652, 1.442695
      %v655 = vpow.pop %v654
      %v656 = vmul.f32 %v653, 1.442695
      %v657 = vpow.pop %v656
      %v659 = vsel %vm552, %v655, 0
      %v662 = vsel %vm552, %v657, 0
      %664 = vmatprep.subr.mxu0 0.0
      %665 = vmatpush1.msra.mxu0 %v642
      %666 = vmatprep.subr.mxu0 0.0
      %667 = vmatpush1.msra.mxu0 %v643
      %668 = vmatprep.subr.mxu0 0.0
      %669 = vmatpush1.msra.mxu0 %v644
      %670 = vmatprep.subr.mxu0 0.0
      %671 = vmatpush1.msra.mxu0 %v645
      %672 = vmatprep.subr.mxu0 0.0
      %673 = vmatpush1.msra.mxu0 0.0
      %674 = vmatprep.subr.mxu0 0.0
      %675 = vmatpush1.msra.mxu0 0.0
      %676 = vmatprep.subr.mxu0 0.0
      %677 = vmatpush1.msra.mxu0 0.0
      %678 = vmatprep.subr.mxu0 0.0
      %679 = vmatpush1.msra.mxu0 0.0
      %680 = vmatprep.subr.mxu0 0.0
      %681 = vmatpush1.msra.mxu0 0.0
      %682 = vmatprep.subr.mxu0 0.0
      %683 = vmatpush1.msra.mxu0 0.0
      %684 = vmatprep.subr.mxu0 0.0
      %685 = vmatpush1.msra.mxu0 0.0
      %686 = vmatprep.subr.mxu0 0.0
      %687 = vmatpush1.msra.mxu0 0.0
      %688 = vmatprep.subr.mxu0 0.0
      %689 = vmatpush1.msra.mxu0 0.0
      %690 = vmatprep.subr.mxu0 0.0
      %691 = vmatpush1.msra.mxu0 0.0
      %692 = vmatprep.subr.mxu0 0.0
      %693 = vmatpush1.msra.mxu0 0.0
      %694 = vmatprep.subr.mxu0 0.0
      %695 = vmatpush1.msra.mxu0 0.0
      %696 = vmatprep.subr.mxu0 0.0
      %697 = vmatpush1.msra.mxu0 0.0
      %698 = vmatprep.subr.mxu0 0.0
      %699 = vmatpush1.msra.mxu0 0.0
      %700 = vmatprep.subr.mxu0 0.0
      %701 = vmatpush1.msra.mxu0 0.0
      %702 = vmatprep.subr.mxu0 0.0
      %703 = vmatpush1.msra.mxu0 0.0
      %704 = vmatprep.subr.mxu0 0.0
      %705 = vmatpush1.msra.mxu0 0.0
      %706 = vmatprep.subr.mxu0 0.0
      %707 = vmatpush1.msra.mxu0 0.0
      %708 = vmatprep.subr.mxu0 0.0
      %709 = vmatpush1.msra.mxu0 0.0
      %710 = vmatprep.subr.mxu0 0.0
      %711 = vmatpush1.msra.mxu0 0.0
      %712 = vmatprep.subr.mxu0 0.0
      %713 = vmatpush1.msra.mxu0 0.0
      %714 = vmatprep.subr.mxu0 0.0
      %715 = vmatpush1.msra.mxu0 0.0
      %716 = vmatprep.subr.mxu0 0.0
      %717 = vmatpush1.msra.mxu0 0.0
      %718 = vmatprep.subr.mxu0 0.0
      %719 = vmatpush1.msra.mxu0 0.0
      %720 = vmatprep.subr.mxu0 0.0
      %721 = vmatpush1.msra.mxu0 0.0
      %722 = vmatprep.subr.mxu0 0.0
      %723 = vmatpush1.msra.mxu0 0.0
      %724 = vmatprep.subr.mxu0 0.0
      %725 = vmatpush1.msra.mxu0 0.0
      %726 = vmatprep.subr.mxu0 0.0
      %727 = vmatpush1.msra.mxu0 0.0
      %728 = vmatprep.mubr.f32.mxu0 0.0
      %729 = vmatmul.mubr.f32.gmra.mrb[0].mxu0 %v659
      %v730 = vpop.f32.mrb[0].mxu0
      %v731 = vadd.f32 0.0, %v730
      %v732 = vpop.f32.mrb[0].mxu0
      %733 = vmatprep.mubr.f32.mxu0 0.0
      %734 = vmatmul.mubr.f32.gmra.mrb[0].mxu0 %v662
      %v735 = vpop.f32.mrb[0].mxu0
      %v736 = vadd.f32 0.0, %v735
      %v737 = vpop.f32.mrb[0].mxu0
      %738 = vdwg.mxu0
      %v739 = vrcp.pop %v731
      %v740 = vmul.f32 %v655, %v739
      %v741 = vrcp.pop %v736
      %v742 = vmul.f32 %v657, %v741
      %v743 = vsel %vm552, %v638, -inf
      %v744 = vsel %vm552, %v639, -inf
      %v745 = vmax.f32 %v743, %v744
      %v746 = vrot.slane %v745, 4
      %v747 = vmax.f32 %v745, %v746
      %v748 = vrot.slane %v747, 2
      %v749 = vmax.f32 %v747, %v748
      %v750 = vrot.slane %v749, 1
      %v751 = vmax.f32 %v749, %v750
      %v752 = vsub.f32 %v638, %v751
      %v753 = vsub.f32 %v639, %v751
      %v754 = vmul.f32 %v752, 1.442695
      %v755 = vpow.pop %v754
      %v756 = vmul.f32 %v753, 1.442695
      %v757 = vpow.pop %v756
      %v758 = vsel %vm552, %v755, 0.0
      %v759 = vsel %vm552, %v757, 0.0
      %v760 = vadd.f32 %v758, %v759
      %v761 = vrot.slane %v760, 4
      %v762 = vadd.f32 %v760, %v761
      %v763 = vrot.slane %v762, 2
      %v764 = vadd.f32 %v762, %v763
      %v765 = vrot.slane %v764, 1
      %v766 = vadd.f32 %v764, %v765
      %v767 = vrcp.pop %v766
      %v768 = vmul.f32 %v755, %v767
      %v769 = vmul.f32 %v757, %v767
      %770 = vxpose.xlu0.b32.start [1/16] %v768, 128
      %771 = vxpose.xlu0.b32.cont [2/16] %v769, 128
      %772 = vxpose.xlu0.b32.cont [3/16] 0.0, 128
      %773 = vxpose.xlu0.b32.cont [4/16] 0.0, 128
      %774 = vxpose.xlu0.b32.cont [5/16] 0.0, 128
      %775 = vxpose.xlu0.b32.cont [6/16] 0.0, 128
      %776 = vxpose.xlu0.b32.cont [7/16] 0.0, 128
      %777 = vxpose.xlu0.b32.cont [8/16] 0.0, 128
      %778 = vxpose.xlu0.b32.cont [9/16] 0.0, 128
      %779 = vxpose.xlu0.b32.cont [10/16] 0.0, 128
      %780 = vxpose.xlu0.b32.cont [11/16] 0.0, 128
      %781 = vxpose.xlu0.b32.cont [12/16] 0.0, 128
      %782 = vxpose.xlu0.b32.cont [13/16] 0.0, 128
      %783 = vxpose.xlu0.b32.cont [14/16] 0.0, 128
      %784 = vxpose.xlu0.b32.cont [15/16] 0.0, 128
      %785 = vxpose.xlu0.b32.end [16/16] 0.0, 128
      %v786 = vpop.trf.xlu0
      %v787 = vpop.trf.xlu0
      %v788 = vpop.trf.xlu0
      %v789 = vpop.trf.xlu0
      %v790 = vpop.trf.xlu0
      %v791 = vpop.trf.xlu0
      %v792 = vpop.trf.xlu0
      %v793 = vpop.trf.xlu0
      %v794 = vpop.trf.xlu0
      %v795 = vpop.trf.xlu0
      %v796 = vpop.trf.xlu0
      %v797 = vpop.trf.xlu0
      %v798 = vpop.trf.xlu0
      %v799 = vpop.trf.xlu0
      %v800 = vpop.trf.xlu0
      %v801 = vpop.trf.xlu0
      %vm802 = vcmask 130048
      %v804 = vsel %vm802, %v786, 0
      %v807 = vsel %vm802, %v787, 0
      %v810 = vsel %vm802, %v788, 0
      %v813 = vsel %vm802, %v789, 0
      %815 = vmatprep.subr.mxu0 0.0
      %816 = vmatpush1.msra.mxu0 %v640
      %817 = vmatprep.subr.mxu0 0.0
      %818 = vmatpush1.msra.mxu0 %v641
      %819 = vmatprep.subr.mxu0 0.0
      %820 = vmatpush1.msra.mxu0 0.0
      %821 = vmatprep.subr.mxu0 0.0
      %822 = vmatpush1.msra.mxu0 0.0
      %823 = vmatprep.subr.mxu0 0.0
      %824 = vmatpush1.msra.mxu0 0.0
      %825 = vmatprep.subr.mxu0 0.0
      %826 = vmatpush1.msra.mxu0 0.0
      %827 = vmatprep.subr.mxu0 0.0
      %828 = vmatpush1.msra.mxu0 0.0
      %829 = vmatprep.subr.mxu0 0.0
      %830 = vmatpush1.msra.mxu0 0.0
      %831 = vmatprep.subr.mxu0 0.0
      %832 = vmatpush1.msra.mxu0 0.0
      %833 = vmatprep.subr.mxu0 0.0
      %834 = vmatpush1.msra.mxu0 0.0
      %835 = vmatprep.subr.mxu0 0.0
      %836 = vmatpush1.msra.mxu0 0.0
      %837 = vmatprep.subr.mxu0 0.0
      %838 = vmatpush1.msra.mxu0 0.0
      %839 = vmatprep.subr.mxu0 0.0
      %840 = vmatpush1.msra.mxu0 0.0
      %841 = vmatprep.subr.mxu0 0.0
      %842 = vmatpush1.msra.mxu0 0.0
      %843 = vmatprep.subr.mxu0 0.0
      %844 = vmatpush1.msra.mxu0 0.0
      %845 = vmatprep.subr.mxu0 0.0
      %846 = vmatpush1.msra.mxu0 0.0
      %847 = vmatprep.subr.mxu0 0.0
      %848 = vmatpush1.msra.mxu0 0.0
      %849 = vmatprep.subr.mxu0 0.0
      %850 = vmatpush1.msra.mxu0 0.0
      %851 = vmatprep.subr.mxu0 0.0
      %852 = vmatpush1.msra.mxu0 0.0
      %853 = vmatprep.subr.mxu0 0.0
      %854 = vmatpush1.msra.mxu0 0.0
      %855 = vmatprep.subr.mxu0 0.0
      %856 = vmatpush1.msra.mxu0 0.0
      %857 = vmatprep.subr.mxu0 0.0
      %858 = vmatpush1.msra.mxu0 0.0
      %859 = vmatprep.subr.mxu0 0.0
      %860 = vmatpush1.msra.mxu0 0.0
      %861 = vmatprep.subr.mxu0 0.0
      %862 = vmatpush1.msra.mxu0 0.0
      %863 = vmatprep.subr.mxu0 0.0
      %864 = vmatpush1.msra.mxu0 0.0
      %865 = vmatprep.subr.mxu0 0.0
      %866 = vmatpush1.msra.mxu0 0.0
      %867 = vmatprep.subr.mxu0 0.0
      %868 = vmatpush1.msra.mxu0 0.0
      %869 = vmatprep.subr.mxu0 0.0
      %870 = vmatpush1.msra.mxu0 0.0
      %871 = vmatprep.subr.mxu0 0.0
      %872 = vmatpush1.msra.mxu0 0.0
      %873 = vmatprep.subr.mxu0 0.0
      %874 = vmatpush1.msra.mxu0 0.0
      %875 = vmatprep.subr.mxu0 0.0
      %876 = vmatpush1.msra.mxu0 0.0
      %877 = vmatprep.subr.mxu0 0.0
      %878 = vmatpush1.msra.mxu0 0.0
      %879 = vmatprep.mubr.f32.mxu0 0.0
      %880 = vmatmul.mubr.f32.gmra.mrb[0].mxu0 %v804
      %v881 = vpop.f32.mrb[0].mxu0
      %v882 = vadd.f32 0.0, %v881
      %v883 = vpop.f32.mrb[0].mxu0
      %884 = vmatprep.mubr.f32.mxu0 0.0
      %885 = vmatmul.mubr.f32.gmra.mrb[0].mxu0 %v807
      %v886 = vpop.f32.mrb[0].mxu0
      %v887 = vadd.f32 0.0, %v886
      %v888 = vpop.f32.mrb[0].mxu0
      %889 = vmatprep.mubr.f32.mxu0 0.0
      %890 = vmatmul.mubr.f32.gmra.mrb[0].mxu0 %v810
      %v891 = vpop.f32.mrb[0].mxu0
      %v892 = vadd.f32 0.0, %v891
      %v893 = vpop.f32.mrb[0].mxu0
      %894 = vmatprep.mubr.f32.mxu0 0.0
      %895 = vmatmul.mubr.f32.gmra.mrb[0].mxu0 %v813
      %v896 = vpop.f32.mrb[0].mxu0
      %v897 = vadd.f32 0.0, %v896
      %v898 = vpop.f32.mrb[0].mxu0
      %899 = vdwg.mxu0
      %v900 = vmul.f32 %v882, %v642
      %v901 = vmul.f32 %v887, %v643
      %v902 = vmul.f32 %v892, %v644
      %v903 = vmul.f32 %v897, %v645
      %v904 = vmul.f32 %v900, 0.35355338
      %v905 = vmul.f32 %v901, 0.35355338
      %v906 = vmul.f32 %v902, 0.35355338
      %v907 = vmul.f32 %v903, 0.35355338
      %v909 = vsel %vm552, %v740, 0
      %v912 = vsel %vm552, %v742, 0
      %914 = vmatprep.subr.mxu0 0.0
      %915 = vmatpush1.msra.mxu0 %v904
      %916 = vmatprep.subr.mxu0 0.0
      %917 = vmatpush1.msra.mxu0 %v905
      %918 = vmatprep.subr.mxu0 0.0
      %919 = vmatpush1.msra.mxu0 %v906
      %920 = vmatprep.subr.mxu0 0.0
      %921 = vmatpush1.msra.mxu0 %v907
      %922 = vmatprep.subr.mxu0 0.0
      %923 = vmatpush1.msra.mxu0 0.0
      %924 = vmatprep.subr.mxu0 0.0
      %925 = vmatpush1.msra.mxu0 0.0
      %926 = vmatprep.subr.mxu0 0.0
      %927 = vmatpush1.msra.mxu0 0.0
      %928 = vmatprep.subr.mxu0 0.0
      %929 = vmatpush1.msra.mxu0 0.0
      %930 = vmatprep.subr.mxu0 0.0
      %931 = vmatpush1.msra.mxu0 0.0
      %932 = vmatprep.subr.mxu0 0.0
      %933 = vmatpush1.msra.mxu0 0.0
      %934 = vmatprep.subr.mxu0 0.0
      %935 = vmatpush1.msra.mxu0 0.0
      %936 = vmatprep.subr.mxu0 0.0
      %937 = vmatpush1.msra.mxu0 0.0
      %938 = vmatprep.subr.mxu0 0.0
      %939 = vmatpush1.msra.mxu0 0.0
      %940 = vmatprep.subr.mxu0 0.0
      %941 = vmatpush1.msra.mxu0 0.0
      %942 = vmatprep.subr.mxu0 0.0
      %943 = vmatpush1.msra.mxu0 0.0
      %944 = vmatprep.subr.mxu0 0.0
      %945 = vmatpush1.msra.mxu0 0.0
      %946 = vmatprep.subr.mxu0 0.0
      %947 = vmatpush1.msra.mxu0 0.0
      %948 = vmatprep.subr.mxu0 0.0
      %949 = vmatpush1.msra.mxu0 0.0
      %950 = vmatprep.subr.mxu0 0.0
      %951 = vmatpush1.msra.mxu0 0.0
      %952 = vmatprep.subr.mxu0 0.0
      %953 = vmatpush1.msra.mxu0 0.0
      %954 = vmatprep.subr.mxu0 0.0
      %955 = vmatpush1.msra.mxu0 0.0
      %956 = vmatprep.subr.mxu0 0.0
      %957 = vmatpush1.msra.mxu0 0.0
      %958 = vmatprep.subr.mxu0 0.0
      %959 = vmatpush1.msra.mxu0 0.0
      %960 = vmatprep.subr.mxu0 0.0
      %961 = vmatpush1.msra.mxu0 0.0
      %962 = vmatprep.subr.mxu0 0.0
      %963 = vmatpush1.msra.mxu0 0.0
      %964 = vmatprep.subr.mxu0 0.0
      %965 = vmatpush1.msra.mxu0 0.0
      %966 = vmatprep.subr.mxu0 0.0
      %967 = vmatpush1.msra.mxu0 0.0
      %968 = vmatprep.subr.mxu0 0.0
      %969 = vmatpush1.msra.mxu0 0.0
      %970 = vmatprep.subr.mxu0 0.0
      %971 = vmatpush1.msra.mxu0 0.0
      %972 = vmatprep.subr.mxu0 0.0
      %973 = vmatpush1.msra.mxu0 0.0
      %974 = vmatprep.subr.mxu0 0.0
      %975 = vmatpush1.msra.mxu0 0.0
      %976 = vmatprep.subr.mxu0 0.0
      %977 = vmatpush1.msra.mxu0 0.0
      %978 = vmatprep.mubr.f32.mxu0 0.0
      %979 = vmatmul.mubr.f32.gmra.mrb[0].mxu0 %v909
      %v980 = vpop.f32.mrb[0].mxu0
      %v981 = vadd.f32 0.0, %v980
      %v982 = vpop.f32.mrb[0].mxu0
      %983 = vmatprep.mubr.f32.mxu0 0.0
      %984 = vmatmul.mubr.f32.gmra.mrb[0].mxu0 %v912
      %v985 = vpop.f32.mrb[0].mxu0
      %v986 = vadd.f32 0.0, %v985
      %v987 = vpop.f32.mrb[0].mxu0
      %988 = vdwg.mxu0
      %v989 = vpack.c.bf16 %v986, %v981
      %v990 = vld [vmem:[%s6] sm:$0xf]
      %v991 = vld [vmem:[%s6 + $0x4] sm:$0xf]
      %v992 = vld [vmem:[%s6 + $0x8] sm:$0xf]
      %v993 = vld [vmem:[%s6 + $0xc] sm:$0xf]
      %v998 = vunpack.c.l.b16 %v990
      %v999 = vunpack.c.l.b16 %v991
      %v1000 = vunpack.c.l.b16 %v992
      %v1001 = vunpack.c.l.b16 %v993
      %v1002 = vpack.c.b16 %v999, %v998
      %v1003 = vpack.c.b16 %v1001, %v1000
      %v1007 = vsel %vm552, %v989, 0
      %1009 = vmatprep.subr.bf16.mxu0 0
      %1010 = vmatpush1.bf16.msra.mxu0 %v1002
      %1011 = vmatprep.subr.bf16.mxu0 0
      %1012 = vmatpush1.bf16.msra.mxu0 %v1003
      %1013 = vmatprep.subr.bf16.mxu0 0
      %1014 = vmatpush1.bf16.msra.mxu0 0
      %1015 = vmatprep.subr.bf16.mxu0 0
      %1016 = vmatpush1.bf16.msra.mxu0 0
      %1017 = vmatprep.subr.bf16.mxu0 0
      %1018 = vmatpush1.bf16.msra.mxu0 0
      %1019 = vmatprep.subr.bf16.mxu0 0
      %1020 = vmatpush1.bf16.msra.mxu0 0
      %1021 = vmatprep.subr.bf16.mxu0 0
      %1022 = vmatpush1.bf16.msra.mxu0 0
      %1023 = vmatprep.subr.bf16.mxu0 0
      %1024 = vmatpush1.bf16.msra.mxu0 0
      %1025 = vmatprep.subr.bf16.mxu0 0
      %1026 = vmatpush1.bf16.msra.mxu0 0
      %1027 = vmatprep.subr.bf16.mxu0 0
      %1028 = vmatpush1.bf16.msra.mxu0 0
      %1029 = vmatprep.subr.bf16.mxu0 0
      %1030 = vmatpush1.bf16.msra.mxu0 0
      %1031 = vmatprep.subr.bf16.mxu0 0
      %1032 = vmatpush1.bf16.msra.mxu0 0
      %1033 = vmatprep.subr.bf16.mxu0 0
      %1034 = vmatpush1.bf16.msra.mxu0 0
      %1035 = vmatprep.subr.bf16.mxu0 0
      %1036 = vmatpush1.bf16.msra.mxu0 0
      %1037 = vmatprep.subr.bf16.mxu0 0
      %1038 = vmatpush1.bf16.msra.mxu0 0
      %1039 = vmatprep.subr.bf16.mxu0 0
      %1040 = vmatpush1.bf16.msra.mxu0 0
      %1041 = vmatprep.mubr.bf16.mxu0 0
      %1042 = vmatmul.mubr.bf16.gmra.mrb[0].mxu0 %v1007
      %v1043 = vpop.f32.mrb[0].mxu0
      %v1044 = vadd.f32 0.0, %v1043
      %v1045 = vpop.f32.mrb[0].mxu0
      %v1046 = vpop.f32.mrb[0].mxu0
      %v1047 = vadd.f32 0.0, %v1046
      %v1048 = vpop.f32.mrb[0].mxu0
      %1049 = vdwg.mxu0
      %v1050 = vadd.f32 %v548, %v1044
      %v1051 = vadd.f32 %v549, %v1047
      %v1052 = vld [vmem:[%s7] sm:$0x1]
      %v1054 = vlaneseq
      %v1055 = vshrl.u32 %v1054, 7
      %v1056 = vsub.s32 0, %v1055
      %v1057 = vrot.slane %v1052, %v1056
      %v1059 = vadd.f32 %v1050, %v1057
      %v1060 = vadd.f32 %v1051, %v1057
      %v1061 = vmul.f32 %v1059, %v1059
      %v1062 = vmul.f32 %v1060, %v1060
      %v1063 = vsel %vm552, %v1061, 0.0
      %1064 = vadd.xlane.f32.xlu0 %v1063
      %v1065 = vpop.xlane.xlu0 %1064
      %v1066 = vsel %vm552, %v1062, 0.0
      %1067 = vadd.xlane.f32.xlu0 %v1066
      %v1068 = vpop.xlane.xlu0 %1067
      %v1069 = vmul.f32 %v1065, %v559
      %v1070 = vmul.f32 %v1068, %v559
      %v1071 = vadd.f32 %v1069, 1.1920929e-07
      %v1072 = vadd.f32 %v1070, 1.1920929e-07
      %v1073 = vrsqrt.pop %v1071
      %v1074 = vrsqrt.pop %v1072
      %v1075 = vmul.f32 %v1059, %v1073
      %v1076 = vmul.f32 %v1060, %v1074
      %v1077 = vld [vmem:[%s8] sm:$0x1]
      %v1079 = vlaneseq
      %v1080 = vshrl.u32 %v1079, 7
      %v1081 = vsub.s32 0, %v1080
      %v1082 = vrot.slane %v1077, %v1081
      %v1084 = vmul.f32 %v1075, %v1082
      %v1085 = vmul.f32 %v1076, %v1082
      %v1086 = vmax.f32 %v1084, 0.0
      %v1087 = vmax.f32 %v1085, 0.0
      %v1088 = vpack.c.bf16 %v1087, %v1086
      %v1089 = vld [vmem:[%s9] sm:$0xf]
      %v1090 = vld [vmem:[%s9 + $0x4] sm:$0xf]
      %v1091 = vld [vmem:[%s9 + $0x8] sm:$0xf]
      %v1092 = vld [vmem:[%s9 + $0xc] sm:$0xf]
      %v1093 = vld [vmem:[%s10] sm:$0x1]
      %v1095 = vlaneseq
      %v1096 = vshrl.u32 %v1095, 7
      %v1097 = vsub.s32 0, %v1096
      %v1098 = vrot.slane %v1093, %v1097
      %v1104 = vunpack.c.l.b16 %v1089
      %v1105 = vunpack.c.l.b16 %v1090
      %v1106 = vunpack.c.l.b16 %v1091
      %v1107 = vunpack.c.l.b16 %v1092
      %v1108 = vpack.c.b16 %v1105, %v1104
      %v1109 = vpack.c.b16 %v1107, %v1106
      %v1113 = vsel %vm552, %v1088, 0
      %1115 = vmatprep.subr.bf16.mxu0 0
      %1116 = vmatpush1.bf16.msra.mxu0 %v1108
      %1117 = vmatprep.subr.bf16.mxu0 0
      %1118 = vmatpush1.bf16.msra.mxu0 %v1109
      %1119 = vmatprep.subr.bf16.mxu0 0
      %1120 = vmatpush1.bf16.msra.mxu0 0
      %1121 = vmatprep.subr.bf16.mxu0 0
      %1122 = vmatpush1.bf16.msra.mxu0 0
      %1123 = vmatprep.subr.bf16.mxu0 0
      %1124 = vmatpush1.bf16.msra.mxu0 0
      %1125 = vmatprep.subr.bf16.mxu0 0
      %1126 = vmatpush1.bf16.msra.mxu0 0
      %1127 = vmatprep.subr.bf16.mxu0 0
      %1128 = vmatpush1.bf16.msra.mxu0 0
      %1129 = vmatprep.subr.bf16.mxu0 0
      %1130 = vmatpush1.bf16.msra.mxu0 0
      %1131 = vmatprep.subr.bf16.mxu0 0
      %1132 = vmatpush1.bf16.msra.mxu0 0
      %1133 = vmatprep.subr.bf16.mxu0 0
      %1134 = vmatpush1.bf16.msra.mxu0 0
      %1135 = vmatprep.subr.bf16.mxu0 0
      %1136 = vmatpush1.bf16.msra.mxu0 0
      %1137 = vmatprep.subr.bf16.mxu0 0
      %1138 = vmatpush1.bf16.msra.mxu0 0
      %1139 = vmatprep.subr.bf16.mxu0 0
      %1140 = vmatpush1.bf16.msra.mxu0 0
      %1141 = vmatprep.subr.bf16.mxu0 0
      %1142 = vmatpush1.bf16.msra.mxu0 0
      %1143 = vmatprep.subr.bf16.mxu0 0
      %1144 = vmatpush1.bf16.msra.mxu0 0
      %1145 = vmatprep.subr.bf16.mxu0 0
      %1146 = vmatpush1.bf16.msra.mxu0 0
      %1147 = vmatprep.mubr.bf16.mxu0 0
      %1148 = vmatmul.mubr.bf16.gmra.mrb[0].mxu0 %v1113
      %v1149 = vpop.f32.mrb[0].mxu0
      %v1150 = vadd.f32 %v1098, %v1149
      %v1151 = vpop.f32.mrb[0].mxu0
      %v1152 = vpop.f32.mrb[0].mxu0
      %v1153 = vadd.f32 %v1098, %v1152
      %v1154 = vpop.f32.mrb[0].mxu0
      %1155 = vdwg.mxu0
      %v1156 = vmul.f32 %v1150, %v1150
      %v1157 = vmul.f32 %v1153, %v1153
      %1158 = vadd.xlane.f32.xlu0 %v1156
      %v1159 = vpop.xlane.xlu0 %1158
      %1160 = vadd.xlane.f32.xlu0 %v1157
      %v1161 = vpop.xlane.xlu0 %1160
      %v1162 = vrcp.pop 128.0
      %v1163 = vmul.f32 %v1159, %v1162
      %v1164 = vmul.f32 %v1161, %v1162
      %v1165 = vadd.f32 %v1163, 1.1920929e-07
      %v1166 = vadd.f32 %v1164, 1.1920929e-07
      %v1167 = vrsqrt.pop %v1165
      %v1168 = vrsqrt.pop %v1166
      %v1169 = vmul.f32 %v1150, %v1167
      %v1170 = vmul.f32 %v1153, %v1168
      %v1171 = vld [vmem:[%s11] sm:$0x1]
      %v1173 = vlaneseq
      %v1174 = vshrl.u32 %v1173, 7
      %v1175 = vsub.s32 0, %v1174
      %v1176 = vrot.slane %v1171, %v1175
      %v1178 = vmul.f32 %v1169, %v1176
      %v1179 = vmul.f32 %v1170, %v1176
      %v1180 = vmax.f32 %v1178, 0.0
      %v1181 = vmax.f32 %v1179, 0.0
      %v1182 = vpack.c.bf16 %v1181, %v1180
      %v1183 = vld [vmem:[%s12] sm:$0xf]
      %v1184 = vld [vmem:[%s12 + $0x4] sm:$0xf]
      %v1185 = vld [vmem:[%s12 + $0x8] sm:$0xf]
      %v1186 = vld [vmem:[%s12 + $0xc] sm:$0xf]
      %v1187 = vld [vmem:[%s12 + $0x10] sm:$0xf]
      %v1188 = vld [vmem:[%s12 + $0x14] sm:$0xf]
      %v1189 = vld [vmem:[%s12 + $0x18] sm:$0xf]
      %v1190 = vld [vmem:[%s12 + $0x1c] sm:$0xf]
      %v1191 = vld [vmem:[%s12 + $0x20] sm:$0xf]
      %v1192 = vld [vmem:[%s12 + $0x24] sm:$0xf]
      %v1193 = vld [vmem:[%s12 + $0x28] sm:$0xf]
      %v1194 = vld [vmem:[%s12 + $0x2c] sm:$0xf]
      %v1195 = vld [vmem:[%s12 + $0x30] sm:$0xf]
      %v1196 = vld [vmem:[%s12 + $0x34] sm:$0xf]
      %v1197 = vld [vmem:[%s12 + $0x38] sm:$0xf]
      %v1198 = vld [vmem:[%s12 + $0x3c] sm:$0xf]
      %v1199 = vld [vmem:[%s13] sm:$0x1]
      %v1201 = vlaneseq
      %v1202 = vshrl.u32 %v1201, 7
      %v1203 = vsub.s32 0, %v1202
      %v1204 = vrot.slane %v1199, %v1203
      %v1222 = vunpack.c.l.b16 %v1183
      %v1223 = vunpack.c.l.b16 %v1184
      %v1224 = vunpack.c.l.b16 %v1185
      %v1225 = vunpack.c.l.b16 %v1186
      %v1226 = vunpack.c.l.b16 %v1187
      %v1227 = vunpack.c.l.b16 %v1188
      %v1228 = vunpack.c.l.b16 %v1189
      %v1229 = vunpack.c.l.b16 %v1190
      %v1230 = vunpack.c.l.b16 %v1191
      %v1231 = vunpack.c.l.b16 %v1192
      %v1232 = vunpack.c.l.b16 %v1193
      %v1233 = vunpack.c.l.b16 %v1194
      %v1234 = vunpack.c.l.b16 %v1195
      %v1235 = vunpack.c.l.b16 %v1196
      %v1236 = vunpack.c.l.b16 %v1197
      %v1237 = vunpack.c.l.b16 %v1198
      %v1238 = vpack.c.b16 %v1223, %v1222
      %v1239 = vpack.c.b16 %v1225, %v1224
      %v1240 = vpack.c.b16 %v1227, %v1226
      %v1241 = vpack.c.b16 %v1229, %v1228
      %v1242 = vpack.c.b16 %v1231, %v1230
      %v1243 = vpack.c.b16 %v1233, %v1232
      %v1244 = vpack.c.b16 %v1235, %v1234
      %v1245 = vpack.c.b16 %v1237, %v1236
      %1254 = vmatprep.subr.bf16.mxu0 0
      %1255 = vmatpush1.bf16.msra.mxu0 %v1238
      %1256 = vmatprep.subr.bf16.mxu0 0
      %1257 = vmatpush1.bf16.msra.mxu0 %v1239
      %1258 = vmatprep.subr.bf16.mxu0 0
      %1259 = vmatpush1.bf16.msra.mxu0 %v1240
      %1260 = vmatprep.subr.bf16.mxu0 0
      %1261 = vmatpush1.bf16.msra.mxu0 %v1241
      %1262 = vmatprep.subr.bf16.mxu0 0
      %1263 = vmatpush1.bf16.msra.mxu0 %v1242
      %1264 = vmatprep.subr.bf16.mxu0 0
      %1265 = vmatpush1.bf16.msra.mxu0 %v1243
      %1266 = vmatprep.subr.bf16.mxu0 0
      %1267 = vmatpush1.bf16.msra.mxu0 %v1244
      %1268 = vmatprep.subr.bf16.mxu0 0
      %1269 = vmatpush1.bf16.msra.mxu0 %v1245
      %1270 = vmatprep.subr.bf16.mxu0 0
      %1271 = vmatpush1.bf16.msra.mxu0 0
      %1272 = vmatprep.subr.bf16.mxu0 0
      %1273 = vmatpush1.bf16.msra.mxu0 0
      %1274 = vmatprep.subr.bf16.mxu0 0
      %1275 = vmatpush1.bf16.msra.mxu0 0
      %1276 = vmatprep.subr.bf16.mxu0 0
      %1277 = vmatpush1.bf16.msra.mxu0 0
      %1278 = vmatprep.subr.bf16.mxu0 0
      %1279 = vmatpush1.bf16.msra.mxu0 0
      %1280 = vmatprep.subr.bf16.mxu0 0
      %1281 = vmatpush1.bf16.msra.mxu0 0
      %1282 = vmatprep.subr.bf16.mxu0 0
      %1283 = vmatpush1.bf16.msra.mxu0 0
      %1284 = vmatprep.subr.bf16.mxu0 0
      %1285 = vmatpush1.bf16.msra.mxu0 0
      %1286 = vmatprep.mubr.bf16.mxu0 0
      %1287 = vmatmul.mubr.bf16.gmra.mrb[0].mxu0 %v1182
      %v1288 = vpop.f32.mrb[0].mxu0
      %v1289 = vadd.f32 %v1204, %v1288
      %v1290 = vpop.f32.mrb[0].mxu0
      %v1291 = vpop.f32.mrb[0].mxu0
      %v1292 = vadd.f32 %v1204, %v1291
      %v1293 = vpop.f32.mrb[0].mxu0
      %1294 = vdwg.mxu0
      %v1295 = vadd.f32 %v1059, %v1289
      %v1296 = vadd.f32 %v1060, %v1292
      %1297 = vst.msk [vmem:[%s545] sm:$0xff] %vm552, %v1295
      %1298 = vst.msk [vmem:[%s545 + $0x8] sm:$0xff] %vm552, %v1296
      %s1299 = smul.u32 2, %s30
      %p1300 = scmp.lt.s32.totalorder %s29, 1
      %s1301 = scalar_select %p1300, %s29, 1
      %p1302 = scmp.lt.s32.totalorder %s1299, 1
      %s1303 = scalar_select %p1302, %s1299, 1
      %s1304 = smul.addr %s1301, 2
      %s1305 = sadd.s32 %s1303, %s1304
      %s1306 = smul.addr %s1305, 8
      %s1307 = scalar_lea.vmem %s14, %s1306
      // Predicated region
      $region77: #{_lambda_.11} parent=75 // pred_check
        %p1308 = pneg %p368
      $region78: #{_lambda_.11} parent=75 // pred_check_branch
        %1310 = sbr.rel (%p1308) target = $region80
      $region79: #{_lambda_.11} parent=75 // pred_region
        %s1311 = smul.u32 2, %s30
      $region80: #{_lambda_.11} parent=75 // pred_fallthru
        _
    $region76: #{_lambda_.11} parent=5 // pred_fallthru
      _
    %p1312 = scmp.le.s32.totalorder 2, %s20
    // Predicated region
    $region81: #{_lambda_.11} parent=5 // pred_check
      %p1313 = pneg %p1312
    $region82: #{_lambda_.11} parent=5 // pred_check_branch
      %1315 = sbr.rel (%p1313) target = $region84
    $region83: #{_lambda_.11} parent=5 // pred_region
      %s1316 = ssub.s32 %s20, 2
      // Predicated region
      $region85: #{_lambda_.11} parent=83 // pred_check
        %p1317 = pneg %p374
      $region86: #{_lambda_.11} parent=83 // pred_check_branch
        %1319 = sbr.rel (%p1317) target = $region88
      $region87: #{_lambda_.11} parent=83 // pred_region
        %s1320 = smul.u32 2, %s32
        %p1321 = scmp.lt.s32.totalorder %s31, 1
        %s1322 = scalar_select %p1321, %s31, 1
        %p1323 = scmp.lt.s32.totalorder %s1320, 1
        %s1324 = scalar_select %p1323, %s1320, 1
        %s1325 = smul.addr %s1322, 2
        %s1326 = sadd.s32 %s1324, %s1325
        %s1327 = smul.addr %s1326, 8
        %s1328 = scalar_lea.vmem %s14, %s1327
      $region88: #{_lambda_.11} parent=83 // pred_fallthru
        _
    $region84: #{_lambda_.11} parent=5 // pred_fallthru
      _
  $region6: #{_lambda_.11} parent=0 // loop_footer
    %s24 = sadd.s32 1, %s20
  $region7: #{_lambda_.11} parent=0 // loop_footer_branch
    %19 = sbr.rel target = $region3
  $region8: #{_lambda_.11} parent=0 // loop_exit
    _

// kernel: _lambda_.14
$region0: #{_lambda_.14}
  #allocation0 [shape = 'u32[]', space=smem, size = 0x4, offset = 0x4, fixed_abs, tag = 'smem constant byte address 0x4 - core index']
  #allocation1 [shape = 'u32[144,128]{1,0:T(1,128)}', space=vmem, size = 0x12000, scoped, tag = 'internal scratch']
  %s0 = inlined_call_operand.vmem [shape: f32[32,32], index: 0, kind: input, shape index: {}]
  %s1 = inlined_call_operand.vmem [shape: f32[1,32], index: 1, kind: input, shape index: {}]
  %s2 = inlined_call_operand.vmem [shape: bf16[32,8], index: 2, kind: input, shape index: {}]
  %s3 = inlined_call_operand.vmem [shape: bf16[32,8], index: 3, kind: input, shape index: {}]
  %s4 = inlined_call_operand.vmem [shape: f32[32,8], index: 4, kind: output, shape index: {0}]
  %s5 = inlined_call_operand.vmem [shape: f32[32,8], index: 5, kind: output, shape index: {1}]
  %6 = xla_tuple %s4, %s5
  %s7 = sld [smem:[#allocation0]]
  $region34: #{_lambda_.14} parent=0
    _
  %s9 = ssub.s32 1, %s7
  %s10 = scalar_select 0, %s9, %s7
  // Predicated region
  $region2: #{_lambda_.14} parent=0 // pred_check
    _
  $region3: #{_lambda_.14} parent=0 // pred_check_branch
    %12 = sbr.rel (0) target = $region5
  $region4: #{_lambda_.14} parent=0 // pred_region
    _
  $region5: #{_lambda_.14} parent=0 // pred_fallthru
    _
  // Predicated region
  $region6: #{_lambda_.14} parent=0 // pred_check
    _
  $region7: #{_lambda_.14} parent=0 // pred_check_branch
    %14 = sbr.rel (0) target = $region9
  $region8: #{_lambda_.14} parent=0 // pred_region
    _
  $region9: #{_lambda_.14} parent=0 // pred_fallthru
    _
  // Predicated region
  $region10: #{_lambda_.14} parent=0 // pred_check
    _
  $region11: #{_lambda_.14} parent=0 // pred_check_branch
    %16 = sbr.rel (0) target = $region13
  $region12: #{_lambda_.14} parent=0 // pred_region
    _
  $region13: #{_lambda_.14} parent=0 // pred_fallthru
    _
  // Predicated region
  $region14: #{_lambda_.14} parent=0 // pred_check
    _
  $region15: #{_lambda_.14} parent=0 // pred_check_branch
    %18 = sbr.rel (0) target = $region17
  $region16: #{_lambda_.14} parent=0 // pred_region
    _
  $region17: #{_lambda_.14} parent=0 // pred_fallthru
    _
  %v20 = vld [vmem:[%s0] sm:$0xff]
  %v21 = vld [vmem:[%s0 + $0x8] sm:$0xff]
  %v22 = vld [vmem:[%s0 + $0x10] sm:$0xff]
  %v23 = vld [vmem:[%s0 + $0x18] sm:$0xff]
  %v24 = vmul.f32 %v20, %v20
  %v25 = vmul.f32 %v21, %v21
  %v26 = vmul.f32 %v22, %v22
  %v27 = vmul.f32 %v23, %v23
  %vm28 = vcmask 261120
  %v29 = vsel %vm28, %v24, 0.0
  %30 = vadd.xlane.f32.xlu0 %v29
  %v31 = vpop.xlane.xlu0 %30
  %v32 = vsel %vm28, %v25, 0.0
  %33 = vadd.xlane.f32.xlu0 %v32
  %v34 = vpop.xlane.xlu0 %33
  %v35 = vsel %vm28, %v26, 0.0
  %36 = vadd.xlane.f32.xlu0 %v35
  %v37 = vpop.xlane.xlu0 %36
  %v38 = vsel %vm28, %v27, 0.0
  %39 = vadd.xlane.f32.xlu0 %v38
  %v40 = vpop.xlane.xlu0 %39
  %v41 = vrcp.pop 32.0
  %v42 = vmul.f32 %v31, %v41
  %v43 = vmul.f32 %v34, %v41
  %v44 = vmul.f32 %v37, %v41
  %v45 = vmul.f32 %v40, %v41
  %v46 = vadd.f32 %v42, 1.1920929e-07
  %v47 = vadd.f32 %v43, 1.1920929e-07
  %v48 = vadd.f32 %v44, 1.1920929e-07
  %v49 = vadd.f32 %v45, 1.1920929e-07
  %v50 = vrsqrt.pop %v46
  %v51 = vrsqrt.pop %v47
  %v52 = vrsqrt.pop %v48
  %v53 = vrsqrt.pop %v49
  %v54 = vmul.f32 %v20, %v50
  %v55 = vmul.f32 %v21, %v51
  %v56 = vmul.f32 %v22, %v52
  %v57 = vmul.f32 %v23, %v53
  %v58 = vld [vmem:[%s1] sm:$0x1]
  %v60 = vlaneseq
  %v61 = vshrl.u32 %v60, 7
  %v62 = vsub.s32 0, %v61
  %v63 = vrot.slane %v58, %v62
  %v65 = vmul.f32 %v54, %v63
  %v66 = vmul.f32 %v55, %v63
  %v67 = vmul.f32 %v56, %v63
  %v68 = vmul.f32 %v57, %v63
  %v69 = vpack.c.bf16 %v66, %v65
  %v70 = vpack.c.bf16 %v68, %v67
  %v71 = vld [vmem:[%s2] sm:$0xf]
  %v72 = vld [vmem:[%s2 + $0x4] sm:$0xf]
  %v73 = vld [vmem:[%s2 + $0x8] sm:$0xf]
  %v74 = vld [vmem:[%s2 + $0xc] sm:$0xf]
  %v79 = vunpack.c.l.b16 %v71
  %v80 = vunpack.c.l.b16 %v72
  %v81 = vunpack.c.l.b16 %v73
  %v82 = vunpack.c.l.b16 %v74
  %v83 = vpack.c.b16 %v80, %v79
  %v84 = vpack.c.b16 %v82, %v81
  %v88 = vsel %vm28, %v69, 0
  %v91 = vsel %vm28, %v70, 0
  %93 = vmatprep.subr.bf16.mxu0 0
  %94 = vmatpush1.bf16.msra.mxu0 %v83
  %95 = vmatprep.subr.bf16.mxu0 0
  %96 = vmatpush1.bf16.msra.mxu0 %v84
  %97 = vmatprep.subr.bf16.mxu0 0
  %98 = vmatpush1.bf16.msra.mxu0 0
  %99 = vmatprep.subr.bf16.mxu0 0
  %100 = vmatpush1.bf16.msra.mxu0 0
  %101 = vmatprep.subr.bf16.mxu0 0
  %102 = vmatpush1.bf16.msra.mxu0 0
  %103 = vmatprep.subr.bf16.mxu0 0
  %104 = vmatpush1.bf16.msra.mxu0 0
  %105 = vmatprep.subr.bf16.mxu0 0
  %106 = vmatpush1.bf16.msra.mxu0 0
  %107 = vmatprep.subr.bf16.mxu0 0
  %108 = vmatpush1.bf16.msra.mxu0 0
  %109 = vmatprep.subr.bf16.mxu0 0
  %110 = vmatpush1.bf16.msra.mxu0 0
  %111 = vmatprep.subr.bf16.mxu0 0
  %112 = vmatpush1.bf16.msra.mxu0 0
  %113 = vmatprep.subr.bf16.mxu0 0
  %114 = vmatpush1.bf16.msra.mxu0 0
  %115 = vmatprep.subr.bf16.mxu0 0
  %116 = vmatpush1.bf16.msra.mxu0 0
  %117 = vmatprep.subr.bf16.mxu0 0
  %118 = vmatpush1.bf16.msra.mxu0 0
  %119 = vmatprep.subr.bf16.mxu0 0
  %120 = vmatpush1.bf16.msra.mxu0 0
  %121 = vmatprep.subr.bf16.mxu0 0
  %122 = vmatpush1.bf16.msra.mxu0 0
  %123 = vmatprep.subr.bf16.mxu0 0
  %124 = vmatpush1.bf16.msra.mxu0 0
  %125 = vmatprep.mubr.bf16.mxu0 0
  %126 = vmatmul.mubr.bf16.gmra.mrb[0].mxu0 %v88
  %v127 = vpop.f32.mrb[0].mxu0
  %v128 = vadd.f32 0.0, %v127
  %v129 = vpop.f32.mrb[0].mxu0
  %v130 = vpop.f32.mrb[0].mxu0
  %v131 = vadd.f32 0.0, %v130
  %v132 = vpop.f32.mrb[0].mxu0
  %133 = vmatprep.mubr.bf16.mxu0 0
  %134 = vmatmul.mubr.bf16.gmra.mrb[0].mxu0 %v91
  %v135 = vpop.f32.mrb[0].mxu0
  %v136 = vadd.f32 0.0, %v135
  %v137 = vpop.f32.mrb[0].mxu0
  %v138 = vpop.f32.mrb[0].mxu0
  %v139 = vadd.f32 0.0, %v138
  %v140 = vpop.f32.mrb[0].mxu0
  %141 = vdwg.mxu0
  %vm142 = vcmask 64512
  %143 = vst.msk [vmem:[%s4] sm:$0xff] %vm142, %v128
  %144 = vst.msk [vmem:[%s4 + $0x8] sm:$0xff] %vm142, %v131
  %145 = vst.msk [vmem:[%s4 + $0x10] sm:$0xff] %vm142, %v136
  %146 = vst.msk [vmem:[%s4 + $0x18] sm:$0xff] %vm142, %v139
  %v147 = vld [vmem:[%s3] sm:$0xf]
  %v148 = vld [vmem:[%s3 + $0x4] sm:$0xf]
  %v149 = vld [vmem:[%s3 + $0x8] sm:$0xf]
  %v150 = vld [vmem:[%s3 + $0xc] sm:$0xf]
  %v155 = vunpack.c.l.b16 %v147
  %v156 = vunpack.c.l.b16 %v148
  %v157 = vunpack.c.l.b16 %v149
  %v158 = vunpack.c.l.b16 %v150
  %v159 = vpack.c.b16 %v156, %v155
  %v160 = vpack.c.b16 %v158, %v157
  %163 = vmatprep.subr.bf16.mxu0 0
  %164 = vmatpush1.bf16.msra.mxu0 %v159
  %165 = vmatprep.subr.bf16.mxu0 0
  %166 = vmatpush1.bf16.msra.mxu0 %v160
  %167 = vmatprep.subr.bf16.mxu0 0
  %168 = vmatpush1.bf16.msra.mxu0 0
  %169 = vmatprep.subr.bf16.mxu0 0
  %170 = vmatpush1.bf16.msra.mxu0 0
  %171 = vmatprep.subr.bf16.mxu0 0
  %172 = vmatpush1.bf16.msra.mxu0 0
  %173 = vmatprep.subr.bf16.mxu0 0
  %174 = vmatpush1.bf16.msra.mxu0 0
  %175 = vmatprep.subr.bf16.mxu0 0
  %176 = vmatpush1.bf16.msra.mxu0 0
  %177 = vmatprep.subr.bf16.mxu0 0
  %178 = vmatpush1.bf16.msra.mxu0 0
  %179 = vmatprep.subr.bf16.mxu0 0
  %180 = vmatpush1.bf16.msra.mxu0 0
  %181 = vmatprep.subr.bf16.mxu0 0
  %182 = vmatpush1.bf16.msra.mxu0 0
  %183 = vmatprep.subr.bf16.mxu0 0
  %184 = vmatpush1.bf16.msra.mxu0 0
  %185 = vmatprep.subr.bf16.mxu0 0
  %186 = vmatpush1.bf16.msra.mxu0 0
  %187 = vmatprep.subr.bf16.mxu0 0
  %188 = vmatpush1.bf16.msra.mxu0 0
  %189 = vmatprep.subr.bf16.mxu0 0
  %190 = vmatpush1.bf16.msra.mxu0 0
  %191 = vmatprep.subr.bf16.mxu0 0
  %192 = vmatpush1.bf16.msra.mxu0 0
  %193 = vmatprep.subr.bf16.mxu0 0
  %194 = vmatpush1.bf16.msra.mxu0 0
  %195 = vmatprep.mubr.bf16.mxu0 0
  %196 = vmatmul.mubr.bf16.gmra.mrb[0].mxu0 %v88
  %v197 = vpop.f32.mrb[0].mxu0
  %v198 = vadd.f32 0.0, %v197
  %v199 = vpop.f32.mrb[0].mxu0
  %v200 = vpop.f32.mrb[0].mxu0
  %v201 = vadd.f32 0.0, %v200
  %v202 = vpop.f32.mrb[0].mxu0
  %203 = vmatprep.mubr.bf16.mxu0 0
  %204 = vmatmul.mubr.bf16.gmra.mrb[0].mxu0 %v91
  %v205 = vpop.f32.mrb[0].mxu0
  %v206 = vadd.f32 0.0, %v205
  %v207 = vpop.f32.mrb[0].mxu0
  %v208 = vpop.f32.mrb[0].mxu0
  %v209 = vadd.f32 0.0, %v208
  %v210 = vpop.f32.mrb[0].mxu0
  %211 = vdwg.mxu0
  %212 = vst.msk [vmem:[%s5] sm:$0xff] %vm142, %v198
  %213 = vst.msk [vmem:[%s5 + $0x8] sm:$0xff] %vm142, %v201
  %214 = vst.msk [vmem:[%s5 + $0x10] sm:$0xff] %vm142, %v206
  %215 = vst.msk [vmem:[%s5 + $0x18] sm:$0xff] %vm142, %v209
  // Predicated region
  $region18: #{_lambda_.14} parent=0 // pred_check
    _
  $region19: #{_lambda_.14} parent=0 // pred_check_branch
    %217 = sbr.rel (0) target = $region21
  $region20: #{_lambda_.14} parent=0 // pred_region
    _
  $region21: #{_lambda_.14} parent=0 // pred_fallthru
    _
  // Predicated region
  $region22: #{_lambda_.14} parent=0 // pred_check
    _
  $region23: #{_lambda_.14} parent=0 // pred_check_branch
    %219 = sbr.rel (0) target = $region25
  $region24: #{_lambda_.14} parent=0 // pred_region
    _
  $region25: #{_lambda_.14} parent=0 // pred_fallthru
    _
  // Predicated region
  $region26: #{_lambda_.14} parent=0 // pred_check
    _
  $region27: #{_lambda_.14} parent=0 // pred_check_branch
    %221 = sbr.rel (0) target = $region29
  $region28: #{_lambda_.14} parent=0 // pred_region
    _
  $region29: #{_lambda_.14} parent=0 // pred_fallthru
    _
  // Predicated region
  $region30: #{_lambda_.14} parent=0 // pred_check
    _
  $region31: #{_lambda_.14} parent=0 // pred_check_branch
    %223 = sbr.rel (0) target = $region33
  $region32: #{_lambda_.14} parent=0 // pred_region
    _
  $region33: #{_lambda_.14} parent=0 // pred_fallthru
    _

// kernel: _lambda_.15
$region0: #{_lambda_.15}
  #allocation0 [shape = 'u32[]', space=smem, size = 0x4, offset = 0x4, fixed_abs, tag = 'smem constant byte address 0x4 - core index']
  #allocation1 [shape = 'u32[144,128]{1,0:T(1,128)}', space=vmem, size = 0x12000, scoped, tag = 'internal scratch']
  %s0 = inlined_call_operand.vmem [shape: f32[1,5,8], index: 0, kind: input, shape index: {}]
  %s1 = inlined_call_operand.vmem [shape: f32[2,16,8], index: 1, kind: input, shape index: {}]
  %s2 = inlined_call_operand.vmem [shape: f32[2,16,8], index: 2, kind: input, shape index: {}]
  %s3 = inlined_call_operand.vmem [shape: f32[8,8], index: 3, kind: input, shape index: {}]
  %s4 = inlined_call_operand.vmem [shape: f32[1,8], index: 4, kind: input, shape index: {}, may-alias: {4,8}]
  %s5 = inlined_call_operand.vmem [shape: bf16[8,8], index: 5, kind: input, shape index: {}]
  %s6 = inlined_call_operand.vmem [shape: bf16[8,8], index: 6, kind: input, shape index: {}]
  %s7 = inlined_call_operand.vmem [shape: f32[1,8], index: 7, kind: input, shape index: {}, may-alias: {7,13}]
  %s8 = inlined_call_operand.vmem [shape: f32[1,8], index: 8, kind: input, shape index: {}, may-alias: {4,8}]
  %s9 = inlined_call_operand.vmem [shape: bf16[8,32], index: 9, kind: input, shape index: {}]
  %s10 = inlined_call_operand.vmem [shape: f32[1,32], index: 10, kind: input, shape index: {}]
  %s11 = inlined_call_operand.vmem [shape: f32[1,32], index: 11, kind: input, shape index: {}]
  %s12 = inlined_call_operand.vmem [shape: bf16[32,8], index: 12, kind: input, shape index: {}]
  %s13 = inlined_call_operand.vmem [shape: f32[1,8], index: 13, kind: input, shape index: {}, may-alias: {7,13}]
  %s14 = inlined_call_operand.vmem [shape: f32[2,5,8], index: 14, kind: output, shape index: {}]
  %s15 = sld [smem:[#allocation0]]
  $region89: #{_lambda_.15} parent=0
    _
  %s17 = ssub.s32 1, %s15
  %s18 = scalar_select 0, %s17, %s15
  loop: start=0, step=1, limit=4
  $region2: #{_lambda_.15} parent=0 // loop_pre_header
    _
  $region3: #{_lambda_.15} parent=0 // loop_header
    %s20 = sphi 0, %s24
    %p21 = scmp.ge.s32.totalorder %s20, 4
    %s27 = sphi 0, %s39
    %s28 = sphi 0, %s35
    %s29 = sphi 0, %s27
    %s30 = sphi 0, %s28
    %s31 = sphi 0, %s29
    %s32 = sphi 0, %s30
    %s42 = sphi 0, %s44
    %s45 = sphi 0, %s42
    %s46 = sphi 0, %s45
    %s62 = sphi 0, %s46
    %s68 = sphi 0, %s70
    %s71 = sphi 0, %s68
    %s72 = sphi 0, %s71
    %s88 = sphi 0, %s72
    %s94 = sphi 0, %s96
    %s97 = sphi 0, %s94
    %s98 = sphi 0, %s97
    %s114 = sphi 0, %s98
    %s118 = sphi 0, %s118
    %s120 = sphi 0, %s118
    %s121 = sphi 0, %s120
    %s135 = sphi 0, %s121
    %s139 = sphi 0, %s139
    %s141 = sphi 0, %s139
    %s142 = sphi 0, %s141
    %s156 = sphi 0, %s142
    %s160 = sphi 0, %s160
    %s162 = sphi 0, %s160
    %s163 = sphi 0, %s162
    %s177 = sphi 0, %s163
    %s181 = sphi 0, %s181
    %s183 = sphi 0, %s181
    %s184 = sphi 0, %s183
    %s198 = sphi 0, %s184
    %s202 = sphi 0, %s202
    %s204 = sphi 0, %s202
    %s205 = sphi 0, %s204
    %s219 = sphi 0, %s205
    %s223 = sphi 0, %s223
    %s225 = sphi 0, %s223
    %s226 = sphi 0, %s225
    %s240 = sphi 0, %s226
    %s244 = sphi 0, %s244
    %s246 = sphi 0, %s244
    %s247 = sphi 0, %s246
    %s261 = sphi 0, %s247
    %s265 = sphi 0, %s265
    %s267 = sphi 0, %s265
    %s268 = sphi 0, %s267
    %s282 = sphi 0, %s268
    %s286 = sphi 0, %s286
    %s288 = sphi 0, %s286
    %s289 = sphi 0, %s288
    %s303 = sphi 0, %s289
    %s307 = sphi 0, %s307
    %s309 = sphi 0, %s307
    %s310 = sphi 0, %s309
    %s324 = sphi 0, %s310
    %s328 = sphi 0, %s328
    %s330 = sphi 0, %s328
    %s331 = sphi 0, %s330
    %s345 = sphi 0, %s331
    %s353 = sphi 0, %s355
    %s356 = sphi 0, %s353
    %s357 = sphi 0, %s356
    %s373 = sphi 0, %s357
  $region4: #{_lambda_.15} parent=0 // loop_header_branch
    %23 = sbr.rel (%p21) target = $region8
  $region5: #{_lambda_.15} parent=0 // loop_body
    %s25 = ssub.s32 %s20, 1
    %s26 = ssub.s32 %s20, 2
    %s33 = sadd.s32 1, %s28
    %p34 = scmp.ge.s32.totalorder %s33, 1
    %s35 = scalar_select %p34, 0, %s33
    %s36 = sadd.s32 1, %s27
    %s37 = scalar_select %p34, %s36, %s27
    %p38 = scmp.ge.s32.totalorder %s37, 2
    %s39 = scalar_select %p38, 0, %s37
    %s40 = ssub.s32 %s28, %s35
    %p41 = scmp.eq.s32.totalorder %s40, 0
    %s43 = sadd.s32 %s42, 1
    %s44 = scalar_select %p41, %s42, %s43
    %p47 = pneg %p41
    %p48 = scmp.eq.s32.totalorder %s20, 1
    %p49 = por %p47, %p48
    %p50 = scmp.ne.s32.totalorder %s42, %s45
    %p51 = scmp.eq.s32.totalorder %s20, 0
    %p52 = por %p50, %p51
    %p53 = scmp.ne.s32.totalorder %s42, %s45
    %p54 = scmp.eq.s32.totalorder %s25, 1
    %p55 = por %p53, %p54
    %p56 = scmp.ne.s32.totalorder %s45, %s46
    %p57 = scmp.eq.s32.totalorder %s25, 0
    %p58 = por %p56, %p57
    %p59 = scmp.ne.s32.totalorder %s45, %s46
    %p60 = scmp.eq.s32.totalorder %s26, 1
    %p61 = por %p59, %p60
    %p63 = scmp.ne.s32.totalorder %s46, %s62
    %p64 = scmp.eq.s32.totalorder %s26, 0
    %p65 = por %p63, %p64
    %s66 = ssub.s32 %s27, %s39
    %p67 = scmp.eq.s32.totalorder %s66, 0
    %s69 = sadd.s32 %s68, 1
    %s70 = scalar_select %p67, %s68, %s69
    %p73 = pneg %p67
    %p74 = scmp.eq.s32.totalorder %s20, 1
    %p75 = por %p73, %p74
    %p76 = scmp.ne.s32.totalorder %s68, %s71
    %p77 = scmp.eq.s32.totalorder %s20, 0
    %p78 = por %p76, %p77
    %p79 = scmp.ne.s32.totalorder %s68, %s71
    %p80 = scmp.eq.s32.totalorder %s25, 1
    %p81 = por %p79, %p80
    %p82 = scmp.ne.s32.totalorder %s71, %s72
    %p83 = scmp.eq.s32.totalorder %s25, 0
    %p84 = por %p82, %p83
    %p85 = scmp.ne.s32.totalorder %s71, %s72
    %p86 = scmp.eq.s32.totalorder %s26, 1
    %p87 = por %p85, %p86
    %p89 = scmp.ne.s32.totalorder %s72, %s88
    %p90 = scmp.eq.s32.totalorder %s26, 0
    %p91 = por %p89, %p90
    %s92 = ssub.s32 %s27, %s39
    %p93 = scmp.eq.s32.totalorder %s92, 0
    %s95 = sadd.s32 %s94, 1
    %s96 = scalar_select %p93, %s94, %s95
    %p99 = pneg %p93
    %p100 = scmp.eq.s32.totalorder %s20, 1
    %p101 = por %p99, %p100
    %p102 = scmp.ne.s32.totalorder %s94, %s97
    %p103 = scmp.eq.s32.totalorder %s20, 0
    %p104 = por %p102, %p103
    %p105 = scmp.ne.s32.totalorder %s94, %s97
    %p106 = scmp.eq.s32.totalorder %s25, 1
    %p107 = por %p105, %p106
    %p108 = scmp.ne.s32.totalorder %s97, %s98
    %p109 = scmp.eq.s32.totalorder %s25, 0
    %p110 = por %p108, %p109
    %p111 = scmp.ne.s32.totalorder %s97, %s98
    %p112 = scmp.eq.s32.totalorder %s26, 1
    %p113 = por %p111, %p112
    %p115 = scmp.ne.s32.totalorder %s98, %s114
    %p116 = scmp.eq.s32.totalorder %s26, 0
    %p117 = por %p115, %p116
    %s119 = sadd.s32 %s118, 1
    %p122 = scmp.eq.s32.totalorder %s20, 1
    %p123 = scmp.ne.s32.totalorder %s118, %s120
    %p124 = scmp.eq.s32.totalorder %s20, 0
    %p125 = por %p123, %p124
    %p126 = scmp.ne.s32.totalorder %s118, %s120
    %p127 = scmp.eq.s32.totalorder %s25, 1
    %p128 = por %p126, %p127
    %p129 = scmp.ne.s32.totalorder %s120, %s121
    %p130 = scmp.eq.s32.totalorder %s25, 0
    %p131 = por %p129, %p130
    %p132 = scmp.ne.s32.totalorder %s120, %s121
    %p133 = scmp.eq.s32.totalorder %s26, 1
    %p134 = por %p132, %p133
    %p136 = scmp.ne.s32.totalorder %s121, %s135
    %p137 = scmp.eq.s32.totalorder %s26, 0
    %p138 = por %p136, %p137
    %s140 = sadd.s32 %s139, 1
    %p143 = scmp.eq.s32.totalorder %s20, 1
    %p144 = scmp.ne.s32.totalorder %s139, %s141
    %p145 = scmp.eq.s32.totalorder %s20, 0
    %p146 = por %p144, %p145
    %p147 = scmp.ne.s32.totalorder %s139, %s141
    %p148 = scmp.eq.s32.totalorder %s25, 1
    %p149 = por %p147, %p148
    %p150 = scmp.ne.s32.totalorder %s141, %s142
    %p151 = scmp.eq.s32.totalorder %s25, 0
    %p152 = por %p150, %p151
    %p153 = scmp.ne.s32.totalorder %s141, %s142
    %p154 = scmp.eq.s32.totalorder %s26, 1
    %p155 = por %p153, %p154
    %p157 = scmp.ne.s32.totalorder %s142, %s156
    %p158 = scmp.eq.s32.totalorder %s26, 0
    %p159 = por %p157, %p158
    %s161 = sadd.s32 %s160, 1
    %p164 = scmp.eq.s32.totalorder %s20, 1
    %p165 = scmp.ne.s32.totalorder %s160, %s162
    %p166 = scmp.eq.s32.totalorder %s20, 0
    %p167 = por %p165, %p166
    %p168 = scmp.ne.s32.totalorder %s160, %s162
    %p169 = scmp.eq.s32.totalorder %s25, 1
    %p170 = por %p168, %p169
    %p171 = scmp.ne.s32.totalorder %s162, %s163
    %p172 = scmp.eq.s32.totalorder %s25, 0
    %p173 = por %p171, %p172
    %p174 = scmp.ne.s32.totalorder %s162, %s163
    %p175 = scmp.eq.s32.totalorder %s26, 1
    %p176 = por %p174, %p175
    %p178 = scmp.ne.s32.totalorder %s163, %s177
    %p179 = scmp.eq.s32.totalorder %s26, 0
    %p180 = por %p178, %p179
    %s182 = sadd.s32 %s181, 1
    %p185 = scmp.eq.s32.totalorder %s20, 1
    %p186 = scmp.ne.s32.totalorder %s181, %s183
    %p187 = scmp.eq.s32.totalorder %s20, 0
    %p188 = por %p186, %p187
    %p189 = scmp.ne.s32.totalorder %s181, %s183
    %p190 = scmp.eq.s32.totalorder %s25, 1
    %p191 = por %p189, %p190
    %p192 = scmp.ne.s32.totalorder %s183, %s184
    %p193 = scmp.eq.s32.totalorder %s25, 0
    %p194 = por %p192, %p193
    %p195 = scmp.ne.s32.totalorder %s183, %s184
    %p196 = scmp.eq.s32.totalorder %s26, 1
    %p197 = por %p195, %p196
    %p199 = scmp.ne.s32.totalorder %s184, %s198
    %p200 = scmp.eq.s32.totalorder %s26, 0
    %p201 = por %p199, %p200
    %s203 = sadd.s32 %s202, 1
    %p206 = scmp.eq.s32.totalorder %s20, 1
    %p207 = scmp.ne.s32.totalorder %s202, %s204
    %p208 = scmp.eq.s32.totalorder %s20, 0
    %p209 = por %p207, %p208
    %p210 = scmp.ne.s32.totalorder %s202, %s204
    %p211 = scmp.eq.s32.totalorder %s25, 1
    %p212 = por %p210, %p211
    %p213 = scmp.ne.s32.totalorder %s204, %s205
    %p214 = scmp.eq.s32.totalorder %s25, 0
    %p215 = por %p213, %p214
    %p216 = scmp.ne.s32.totalorder %s204, %s205
    %p217 = scmp.eq.s32.totalorder %s26, 1
    %p218 = por %p216, %p217
    %p220 = scmp.ne.s32.totalorder %s205, %s219
    %p221 = scmp.eq.s32.totalorder %s26, 0
    %p222 = por %p220, %p221
    %s224 = sadd.s32 %s223, 1
    %p227 = scmp.eq.s32.totalorder %s20, 1
    %p228 = scmp.ne.s32.totalorder %s223, %s225
    %p229 = scmp.eq.s32.totalorder %s20, 0
    %p230 = por %p228, %p229
    %p231 = scmp.ne.s32.totalorder %s223, %s225
    %p232 = scmp.eq.s32.totalorder %s25, 1
    %p233 = por %p231, %p232
    %p234 = scmp.ne.s32.totalorder %s225, %s226
    %p235 = scmp.eq.s32.totalorder %s25, 0
    %p236 = por %p234, %p235
    %p237 = scmp.ne.s32.totalorder %s225, %s226
    %p238 = scmp.eq.s32.totalorder %s26, 1
    %p239 = por %p237, %p238
    %p241 = scmp.ne.s32.totalorder %s226, %s240
    %p242 = scmp.eq.s32.totalorder %s26, 0
    %p243 = por %p241, %p242
    %s245 = sadd.s32 %s244, 1
    %p248 = scmp.eq.s32.totalorder %s20, 1
    %p249 = scmp.ne.s32.totalorder %s244, %s246
    %p250 = scmp.eq.s32.totalorder %s20, 0
    %p251 = por %p249, %p250
    %p252 = scmp.ne.s32.totalorder %s244, %s246
    %p253 = scmp.eq.s32.totalorder %s25, 1
    %p254 = por %p252, %p253
    %p255 = scmp.ne.s32.totalorder %s246, %s247
    %p256 = scmp.eq.s32.totalorder %s25, 0
    %p257 = por %p255, %p256
    %p258 = scmp.ne.s32.totalorder %s246, %s247
    %p259 = scmp.eq.s32.totalorder %s26, 1
    %p260 = por %p258, %p259
    %p262 = scmp.ne.s32.totalorder %s247, %s261
    %p263 = scmp.eq.s32.totalorder %s26, 0
    %p264 = por %p262, %p263
    %s266 = sadd.s32 %s265, 1
    %p269 = scmp.eq.s32.totalorder %s20, 1
    %p270 = scmp.ne.s32.totalorder %s265, %s267
    %p271 = scmp.eq.s32.totalorder %s20, 0
    %p272 = por %p270, %p271
    %p273 = scmp.ne.s32.totalorder %s265, %s267
    %p274 = scmp.eq.s32.totalorder %s25, 1
    %p275 = por %p273, %p274
    %p276 = scmp.ne.s32.totalorder %s267, %s268
    %p277 = scmp.eq.s32.totalorder %s25, 0
    %p278 = por %p276, %p277
    %p279 = scmp.ne.s32.totalorder %s267, %s268
    %p280 = scmp.eq.s32.totalorder %s26, 1
    %p281 = por %p279, %p280
    %p283 = scmp.ne.s32.totalorder %s268, %s282
    %p284 = scmp.eq.s32.totalorder %s26, 0
    %p285 = por %p283, %p284
    %s287 = sadd.s32 %s286, 1
    %p290 = scmp.eq.s32.totalorder %s20, 1
    %p291 = scmp.ne.s32.totalorder %s286, %s288
    %p292 = scmp.eq.s32.totalorder %s20, 0
    %p293 = por %p291, %p292
    %p294 = scmp.ne.s32.totalorder %s286, %s288
    %p295 = scmp.eq.s32.totalorder %s25, 1
    %p296 = por %p294, %p295
    %p297 = scmp.ne.s32.totalorder %s288, %s289
    %p298 = scmp.eq.s32.totalorder %s25, 0
    %p299 = por %p297, %p298
    %p300 = scmp.ne.s32.totalorder %s288, %s289
    %p301 = scmp.eq.s32.totalorder %s26, 1
    %p302 = por %p300, %p301
    %p304 = scmp.ne.s32.totalorder %s289, %s303
    %p305 = scmp.eq.s32.totalorder %s26, 0
    %p306 = por %p304, %p305
    %s308 = sadd.s32 %s307, 1
    %p311 = scmp.eq.s32.totalorder %s20, 1
    %p312 = scmp.ne.s32.totalorder %s307, %s309
    %p313 = scmp.eq.s32.totalorder %s20, 0
    %p314 = por %p312, %p313
    %p315 = scmp.ne.s32.totalorder %s307, %s309
    %p316 = scmp.eq.s32.totalorder %s25, 1
    %p317 = por %p315, %p316
    %p318 = scmp.ne.s32.totalorder %s309, %s310
    %p319 = scmp.eq.s32.totalorder %s25, 0
    %p320 = por %p318, %p319
    %p321 = scmp.ne.s32.totalorder %s309, %s310
    %p322 = scmp.eq.s32.totalorder %s26, 1
    %p323 = por %p321, %p322
    %p325 = scmp.ne.s32.totalorder %s310, %s324
    %p326 = scmp.eq.s32.totalorder %s26, 0
    %p327 = por %p325, %p326
    %s329 = sadd.s32 %s328, 1
    %p332 = scmp.eq.s32.totalorder %s20, 1
    %p333 = scmp.ne.s32.totalorder %s328, %s330
    %p334 = scmp.eq.s32.totalorder %s20, 0
    %p335 = por %p333, %p334
    %p336 = scmp.ne.s32.totalorder %s328, %s330
    %p337 = scmp.eq.s32.totalorder %s25, 1
    %p338 = por %p336, %p337
    %p339 = scmp.ne.s32.totalorder %s330, %s331
    %p340 = scmp.eq.s32.totalorder %s25, 0
    %p341 = por %p339, %p340
    %p342 = scmp.ne.s32.totalorder %s330, %s331
    %p343 = scmp.eq.s32.totalorder %s26, 1
    %p344 = por %p342, %p343
    %p346 = scmp.ne.s32.totalorder %s331, %s345
    %p347 = scmp.eq.s32.totalorder %s26, 0
    %p348 = por %p346, %p347
    %s349 = ssub.s32 %s27, %s39
    %s350 = ssub.s32 %s28, %s35
    %s351 = sor.u32 %s349, %s350
    %p352 = scmp.eq.s32.totalorder %s351, 0
    %s354 = sadd.s32 %s353, 1
    %s355 = scalar_select %p352, %s353, %s354
    %p358 = pneg %p352
    %p359 = scmp.eq.s32.totalorder %s20, 1
    %p360 = por %p358, %p359
    %p361 = scmp.ne.s32.totalorder %s353, %s356
    %p362 = scmp.eq.s32.totalorder %s20, 0
    %p363 = por %p361, %p362
    %p364 = scmp.ne.s32.totalorder %s353, %s356
    %p365 = scmp.eq.s32.totalorder %s25, 1
    %p366 = por %p364, %p365
    %p367 = scmp.ne.s32.totalorder %s356, %s357
    %p368 = scmp.eq.s32.totalorder %s25, 0
    %p369 = por %p367, %p368
    %p370 = scmp.ne.s32.totalorder %s356, %s357
    %p371 = scmp.eq.s32.totalorder %s26, 1
    %p372 = por %p370, %p371
    %p374 = scmp.ne.s32.totalorder %s357, %s373
    %p375 = scmp.eq.s32.totalorder %s26, 0
    %p376 = por %p374, %p375
    %p377 = scmp.le.s32.totalorder 1, %s20
    %p378 = scmp.lt.s32.totalorder %s20, 3
    %p379 = pnand %p377, %p378
    %p380 = pneg %p379
    // Predicated region
    $region9: #{_lambda_.15} parent=5 // pred_check
      _
    $region10: #{_lambda_.15} parent=5 // pred_check_branch
      %382 = sbr.rel (%p379) target = $region12
    $region11: #{_lambda_.15} parent=5 // pred_region
      %s383 = ssub.s32 %s20, 1
      // Predicated region
      $region13: #{_lambda_.15} parent=11 // pred_check
        %p384 = pneg %p58
      $region14: #{_lambda_.15} parent=11 // pred_check_branch
        %386 = sbr.rel (%p384) target = $region16
      $region15: #{_lambda_.15} parent=11 // pred_region
        %p387 = scmp.lt.s32.totalorder %s30, 0
        %s388 = scalar_select %p387, %s30, 0
        %s389 = smul.addr %s388, 8
        %s390 = scalar_lea.vmem %s0, %s389
      $region16: #{_lambda_.15} parent=11 // pred_fallthru
        _
      // Predicated region
      $region17: #{_lambda_.15} parent=11 // pred_check
        %p391 = pneg %p131
      $region18: #{_lambda_.15} parent=11 // pred_check_branch
        %393 = sbr.rel (%p391) target = $region20
      $region19: #{_lambda_.15} parent=11 // pred_region
        _
      $region20: #{_lambda_.15} parent=11 // pred_fallthru
        _
      // Predicated region
      $region21: #{_lambda_.15} parent=11 // pred_check
        %p394 = pneg %p152
      $region22: #{_lambda_.15} parent=11 // pred_check_branch
        %396 = sbr.rel (%p394) target = $region24
      $region23: #{_lambda_.15} parent=11 // pred_region
        _
      $region24: #{_lambda_.15} parent=11 // pred_fallthru
        _
      // Predicated region
      $region25: #{_lambda_.15} parent=11 // pred_check
        %p397 = pneg %p173
      $region26: #{_lambda_.15} parent=11 // pred_check_branch
        %399 = sbr.rel (%p397) target = $region28
      $region27: #{_lambda_.15} parent=11 // pred_region
        _
      $region28: #{_lambda_.15} parent=11 // pred_fallthru
        _
      // Predicated region
      $region29: #{_lambda_.15} parent=11 // pred_check
        %p400 = pneg %p194
      $region30: #{_lambda_.15} parent=11 // pred_check_branch
        %402 = sbr.rel (%p400) target = $region32
      $region31: #{_lambda_.15} parent=11 // pred_region
        _
      $region32: #{_lambda_.15} parent=11 // pred_fallthru
        _
      // Predicated region
      $region33: #{_lambda_.15} parent=11 // pred_check
        %p403 = pneg %p215
      $region34: #{_lambda_.15} parent=11 // pred_check_branch
        %405 = sbr.rel (%p403) target = $region36
      $region35: #{_lambda_.15} parent=11 // pred_region
        _
      $region36: #{_lambda_.15} parent=11 // pred_fallthru
        _
      // Predicated region
      $region37: #{_lambda_.15} parent=11 // pred_check
        %p406 = pneg %p236
      $region38: #{_lambda_.15} parent=11 // pred_check_branch
        %408 = sbr.rel (%p406) target = $region40
      $region39: #{_lambda_.15} parent=11 // pred_region
        _
      $region40: #{_lambda_.15} parent=11 // pred_fallthru
        _
      // Predicated region
      $region41: #{_lambda_.15} parent=11 // pred_check
        %p409 = pneg %p257
      $region42: #{_lambda_.15} parent=11 // pred_check_branch
        %411 = sbr.rel (%p409) target = $region44
      $region43: #{_lambda_.15} parent=11 // pred_region
        _
      $region44: #{_lambda_.15} parent=11 // pred_fallthru
        _
      // Predicated region
      $region45: #{_lambda_.15} parent=11 // pred_check
        %p412 = pneg %p278
      $region46: #{_lambda_.15} parent=11 // pred_check_branch
        %414 = sbr.rel (%p412) target = $region48
      $region47: #{_lambda_.15} parent=11 // pred_region
        _
      $region48: #{_lambda_.15} parent=11 // pred_fallthru
        _
      // Predicated region
      $region49: #{_lambda_.15} parent=11 // pred_check
        %p415 = pneg %p299
      $region50: #{_lambda_.15} parent=11 // pred_check_branch
        %417 = sbr.rel (%p415) target = $region52
      $region51: #{_lambda_.15} parent=11 // pred_region
        _
      $region52: #{_lambda_.15} parent=11 // pred_fallthru
        _
      // Predicated region
      $region53: #{_lambda_.15} parent=11 // pred_check
        %p418 = pneg %p320
      $region54: #{_lambda_.15} parent=11 // pred_check_branch
        %420 = sbr.rel (%p418) target = $region56
      $region55: #{_lambda_.15} parent=11 // pred_region
        _
      $region56: #{_lambda_.15} parent=11 // pred_fallthru
        _
      // Predicated region
      $region57: #{_lambda_.15} parent=11 // pred_check
        %p421 = pneg %p341
      $region58: #{_lambda_.15} parent=11 // pred_check_branch
        %423 = sbr.rel (%p421) target = $region60
      $region59: #{_lambda_.15} parent=11 // pred_region
        _
      $region60: #{_lambda_.15} parent=11 // pred_fallthru
        _
    $region12: #{_lambda_.15} parent=5 // pred_fallthru
      _
    %p424 = scmp.lt.s32.totalorder %s20, 2
    // Predicated region
    $region61: #{_lambda_.15} parent=5 // pred_check
      %p425 = pneg %p424
    $region62: #{_lambda_.15} parent=5 // pred_check_branch
      %427 = sbr.rel (%p425) target = $region64
    $region63: #{_lambda_.15} parent=5 // pred_region
      // Predicated region
      $region65: #{_lambda_.15} parent=63 // pred_check
        %p428 = pneg %p78
      $region66: #{_lambda_.15} parent=63 // pred_check_branch
        %430 = sbr.rel (%p428) target = $region68
      $region67: #{_lambda_.15} parent=63 // pred_region
        %p431 = scmp.lt.s32.totalorder %s27, 1
        %s432 = scalar_select %p431, %s27, 1
        %s433 = smul.addr %s432, 2
        %s434 = smul.addr %s433, 8
        %s435 = scalar_lea.vmem %s1, %s434
      $region68: #{_lambda_.15} parent=63 // pred_fallthru
        _
      // Predicated region
      $region69: #{_lambda_.15} parent=63 // pred_check
        %p436 = pneg %p104
      $region70: #{_lambda_.15} parent=63 // pred_check_branch
        %438 = sbr.rel (%p436) target = $region72
      $region71: #{_lambda_.15} parent=63 // pred_region
        %p439 = scmp.lt.s32.totalorder %s27, 1
        %s440 = scalar_select %p439, %s27, 1
        %s441 = smul.addr %s440, 2
        %s442 = smul.addr %s441, 8
        %s443 = scalar_lea.vmem %s2, %s442
      $region72: #{_lambda_.15} parent=63 // pred_fallthru
        _
    $region64: #{_lambda_.15} parent=5 // pred_fallthru
      _
    %p444 = scmp.le.s32.totalorder 1, %s20
    %p445 = scmp.lt.s32.totalorder %s20, 3
    %p446 = pnand %p444, %p445
    %p447 = pneg %p446
    // Predicated region
    $region73: #{_lambda_.15} parent=5 // pred_check
      _
    $region74: #{_lambda_.15} parent=5 // pred_check_branch
      %449 = sbr.rel (%p446) target = $region76
    $region75: #{_lambda_.15} parent=5 // pred_region
      %s450 = ssub.s32 %s20, 1
      %p451 = scmp.lt.s32.totalorder %s30, 0
      %s452 = scalar_select %p451, %s30, 0
      %s453 = smul.addr %s452, 8
      %s454 = scalar_lea.vmem %s0, %s453
      %p455 = pneg %p58
      %p456 = pneg %p55
      %p457 = scmp.lt.s32.totalorder %s29, 1
      %s458 = scalar_select %p457, %s29, 1
      %s459 = smul.addr %s458, 2
      %s460 = smul.addr %s459, 8
      %s461 = scalar_lea.vmem %s1, %s460
      %p462 = pneg %p84
      %p463 = pneg %p81
      %p464 = scmp.lt.s32.totalorder %s29, 1
      %s465 = scalar_select %p464, %s29, 1
      %s466 = smul.addr %s465, 2
      %s467 = smul.addr %s466, 8
      %s468 = scalar_lea.vmem %s2, %s467
      %p469 = pneg %p110
      %p470 = pneg %p107
      %p471 = pneg %p131
      %p472 = pneg %p128
      %p473 = pneg %p152
      %p474 = pneg %p149
      %p475 = pneg %p173
      %p476 = pneg %p170
      %p477 = pneg %p194
      %p478 = pneg %p191
      %p479 = pneg %p215
      %p480 = pneg %p212
      %p481 = pneg %p236
      %p482 = pneg %p233
      %p483 = pneg %p257
      %p484 = pneg %p254
      %p485 = pneg %p278
      %p486 = pneg %p275
      %p487 = pneg %p299
      %p488 = pneg %p296
      %p489 = pneg %p320
      %p490 = pneg %p317
      %p491 = pneg %p341
      %p492 = pneg %p338
      %p493 = pneg %p369
      %p494 = pneg %p366
      %p495 = scmp.lt.s32.totalorder %s29, 1
      %s496 = scalar_select %p495, %s29, 1
      %p497 = scmp.lt.s32.totalorder %s30, 0
      %s498 = scalar_select %p497, %s30, 0
      %s499 = sadd.s32 %s498, %s496
      %s500 = smul.addr %s499, 8
      %s501 = scalar_lea.vmem %s14, %s500
      %p502 = scmp.lt.s32.totalorder %s30, 0
      %s503 = scalar_select %p502, %s30, 0
      %s504 = smul.addr %s503, 8
      %s505 = scalar_lea.vmem %s0, %s504
      %p506 = scmp.lt.s32.totalorder %s29, 1
      %s507 = scalar_select %p506, %s29, 1
      %s508 = smul.addr %s507, 2
      %s509 = smul.addr %s508, 8
      %s510 = scalar_lea.vmem %s1, %s509
      %p511 = scmp.lt.s32.totalorder %s29, 1
      %s512 = scalar_select %p511, %s29, 1
      %s513 = smul.addr %s512, 2
      %s514 = smul.addr %s513, 8
      %s515 = scalar_lea.vmem %s2, %s514
      %p516 = scmp.lt.s32.totalorder %s29, 1
      %s517 = scalar_select %p516, %s29, 1
      %p518 = scmp.lt.s32.totalorder %s30, 0
      %s519 = scalar_select %p518, %s30, 0
      %s520 = sadd.s32 %s519, %s517
      %s521 = smul.addr %s520, 8
      %s522 = scalar_lea.vmem %s14, %s521
      %v524 = vld [vmem:[%s505] sm:$0x1f]
      %v525 = vmul.f32 %v524, %v524
      %vm526 = vcmask 61440
      %v527 = vsel %vm526, %v525, 0.0
      %528 = vadd.xlane.f32.xlu0 %v527
      %v529 = vpop.xlane.xlu0 %528
      %v530 = vrcp.pop 8.0
      %v531 = vmul.f32 %v529, %v530
      %v532 = vadd.f32 %v531, 1.1920929e-07
      %v533 = vrsqrt.pop %v532
      %v534 = vmul.f32 %v524, %v533
      %v535 = vld [vmem:[%s4] sm:$0x1]
      %v537 = vlaneseq
      %v538 = vshrl.u32 %v537, 7
      %v539 = vsub.s32 0, %v538
      %v540 = vrot.slane %v535, %v539
      %v542 = vmul.f32 %v534, %v540
      %v543 = vpack.c.bf16 %v542, %v542
      %v544 = vld [vmem:[%s5] sm:$0xf]
      %vm545 = vcmask 64512
      %v547 = vsel %vm545, %v543, 0
      %vm549 = vcmask 1043456
      %v551 = vsel %vm549, %v544, 0
      %553 = vmatprep.subr.bf16.mxu0 0
      %554 = vmatpush1.bf16.msra.mxu0 %v551
      %555 = vmatprep.subr.bf16.mxu0 0
      %556 = vmatpush1.bf16.msra.mxu0 0
      %557 = vmatprep.subr.bf16.mxu0 0
      %558 = vmatpush1.bf16.msra.mxu0 0
      %559 = vmatprep.subr.bf16.mxu0 0
      %560 = vmatpush1.bf16.msra.mxu0 0
      %561 = vmatprep.subr.bf16.mxu0 0
      %562 = vmatpush1.bf16.msra.mxu0 0
      %563 = vmatprep.subr.bf16.mxu0 0
      %564 = vmatpush1.bf16.msra.mxu0 0
      %565 = vmatprep.subr.bf16.mxu0 0
      %566 = vmatpush1.bf16.msra.mxu0 0
      %567 = vmatprep.subr.bf16.mxu0 0
      %568 = vmatpush1.bf16.msra.mxu0 0
      %569 = vmatprep.subr.bf16.mxu0 0
      %570 = vmatpush1.bf16.msra.mxu0 0
      %571 = vmatprep.subr.bf16.mxu0 0
      %572 = vmatpush1.bf16.msra.mxu0 0
      %573 = vmatprep.subr.bf16.mxu0 0
      %574 = vmatpush1.bf16.msra.mxu0 0
      %575 = vmatprep.subr.bf16.mxu0 0
      %576 = vmatpush1.bf16.msra.mxu0 0
      %577 = vmatprep.subr.bf16.mxu0 0
      %578 = vmatpush1.bf16.msra.mxu0 0
      %579 = vmatprep.subr.bf16.mxu0 0
      %580 = vmatpush1.bf16.msra.mxu0 0
      %581 = vmatprep.subr.bf16.mxu0 0
      %582 = vmatpush1.bf16.msra.mxu0 0
      %583 = vmatprep.subr.bf16.mxu0 0
      %584 = vmatpush1.bf16.msra.mxu0 0
      %585 = vmatprep.mubr.bf16.mxu0 0
      %586 = vmatmul.mubr.bf16.gmra.mrb[0].mxu0 %v547
      %v587 = vpop.f32.mrb[0].mxu0
      %v588 = vadd.f32 0.0, %v587
      %v589 = vpop.f32.mrb[0].mxu0
      %v590 = vpop.f32.mrb[0].mxu0
      %v591 = vpop.f32.mrb[0].mxu0
      %592 = vdwg.mxu0
      %v593 = vld [vmem:[%s510] sm:$0xff]
      %v594 = vld [vmem:[%s510 + $0x8] sm:$0xff]
      %v595 = vld [vmem:[%s515] sm:$0xff]
      %v596 = vld [vmem:[%s515 + $0x8] sm:$0xff]
      %v597 = vsel %vm526, %v588, -inf
      %598 = vmax.xlane.f32.xlu0 %v597
      %v599 = vpop.xlane.xlu0 %598
      %v600 = vsub.f32 %v588, %v599
      %v601 = vmul.f32 %v600, 1.442695
      %v602 = vpow.pop %v601
      %v603 = vsel %vm526, %v602, 0.0
      %604 = vadd.xlane.f32.xlu0 %v603
      %v605 = vpop.xlane.xlu0 %604
      %v606 = vrcp.pop %v605
      %v607 = vmul.f32 %v602, %v606
      %v608 = vsel %vm545, %v593, -inf
      %v609 = vsel %vm545, %v594, -inf
      %v610 = vmax.f32 %v608, %v609
      %v611 = vrot.slane %v610, 4
      %v612 = vmax.f32 %v610, %v611
      %v613 = vrot.slane %v612, 2
      %v614 = vmax.f32 %v612, %v613
      %v615 = vrot.slane %v614, 1
      %v616 = vmax.f32 %v614, %v615
      %v617 = vsub.f32 %v593, %v616
      %v618 = vsub.f32 %v594, %v616
      %v619 = vmul.f32 %v617, 1.442695
      %v620 = vpow.pop %v619
      %v621 = vmul.f32 %v618, 1.442695
      %v622 = vpow.pop %v621
      %v623 = vsel %vm545, %v620, 0.0
      %v624 = vsel %vm545, %v622, 0.0
      %v625 = vadd.f32 %v623, %v624
      %v626 = vrot.slane %v625, 4
      %v627 = vadd.f32 %v625, %v626
      %v628 = vrot.slane %v627, 2
      %v629 = vadd.f32 %v627, %v628
      %v630 = vrot.slane %v629, 1
      %v631 = vadd.f32 %v629, %v630
      %v632 = vrcp.pop %v631
      %v633 = vmul.f32 %v620, %v632
      %v634 = vmul.f32 %v622, %v632
      %635 = vxpose.xlu0.b32.start [1/16] %v633, 128
      %636 = vxpose.xlu0.b32.cont [2/16] %v634, 128
      %637 = vxpose.xlu0.b32.cont [3/16] 0.0, 128
      %638 = vxpose.xlu0.b32.cont [4/16] 0.0, 128
      %639 = vxpose.xlu0.b32.cont [5/16] 0.0, 128
      %640 = vxpose.xlu0.b32.cont [6/16] 0.0, 128
      %641 = vxpose.xlu0.b32.cont [7/16] 0.0, 128
      %642 = vxpose.xlu0.b32.cont [8/16] 0.0, 128
      %643 = vxpose.xlu0.b32.cont [9/16] 0.0, 128
      %644 = vxpose.xlu0.b32.cont [10/16] 0.0, 128
      %645 = vxpose.xlu0.b32.cont [11/16] 0.0, 128
      %646 = vxpose.xlu0.b32.cont [12/16] 0.0, 128
      %647 = vxpose.xlu0.b32.cont [13/16] 0.0, 128
      %648 = vxpose.xlu0.b32.cont [14/16] 0.0, 128
      %649 = vxpose.xlu0.b32.cont [15/16] 0.0, 128
      %650 = vxpose.xlu0.b32.end [16/16] 0.0, 128
      %v651 = vpop.trf.xlu0
      %v652 = vpop.trf.xlu0
      %v653 = vpop.trf.xlu0
      %v654 = vpop.trf.xlu0
      %v655 = vpop.trf.xlu0
      %v656 = vpop.trf.xlu0
      %v657 = vpop.trf.xlu0
      %v658 = vpop.trf.xlu0
      %v659 = vpop.trf.xlu0
      %v660 = vpop.trf.xlu0
      %v661 = vpop.trf.xlu0
      %v662 = vpop.trf.xlu0
      %v663 = vpop.trf.xlu0
      %v664 = vpop.trf.xlu0
      %v665 = vpop.trf.xlu0
      %v666 = vpop.trf.xlu0
      %vm667 = vcmask 130048
      %v669 = vsel %vm667, %v651, 0
      %671 = vmatprep.subr.mxu0 0.0
      %672 = vmatpush1.msra.mxu0 %v595
      %673 = vmatprep.subr.mxu0 0.0
      %674 = vmatpush1.msra.mxu0 %v596
      %675 = vmatprep.subr.mxu0 0.0
      %676 = vmatpush1.msra.mxu0 0.0
      %677 = vmatprep.subr.mxu0 0.0
      %678 = vmatpush1.msra.mxu0 0.0
      %679 = vmatprep.subr.mxu0 0.0
      %680 = vmatpush1.msra.mxu0 0.0
      %681 = vmatprep.subr.mxu0 0.0
      %682 = vmatpush1.msra.mxu0 0.0
      %683 = vmatprep.subr.mxu0 0.0
      %684 = vmatpush1.msra.mxu0 0.0
      %685 = vmatprep.subr.mxu0 0.0
      %686 = vmatpush1.msra.mxu0 0.0
      %687 = vmatprep.subr.mxu0 0.0
      %688 = vmatpush1.msra.mxu0 0.0
      %689 = vmatprep.subr.mxu0 0.0
      %690 = vmatpush1.msra.mxu0 0.0
      %691 = vmatprep.subr.mxu0 0.0
      %692 = vmatpush1.msra.mxu0 0.0
      %693 = vmatprep.subr.mxu0 0.0
      %694 = vmatpush1.msra.mxu0 0.0
      %695 = vmatprep.subr.mxu0 0.0
      %696 = vmatpush1.msra.mxu0 0.0
      %697 = vmatprep.subr.mxu0 0.0
      %698 = vmatpush1.msra.mxu0 0.0
      %699 = vmatprep.subr.mxu0 0.0
      %700 = vmatpush1.msra.mxu0 0.0
      %701 = vmatprep.subr.mxu0 0.0
      %702 = vmatpush1.msra.mxu0 0.0
      %703 = vmatprep.subr.mxu0 0.0
      %704 = vmatpush1.msra.mxu0 0.0
      %705 = vmatprep.subr.mxu0 0.0
      %706 = vmatpush1.msra.mxu0 0.0
      %707 = vmatprep.subr.mxu0 0.0
      %708 = vmatpush1.msra.mxu0 0.0
      %709 = vmatprep.subr.mxu0 0.0
      %710 = vmatpush1.msra.mxu0 0.0
      %711 = vmatprep.subr.mxu0 0.0
      %712 = vmatpush1.msra.mxu0 0.0
      %713 = vmatprep.subr.mxu0 0.0
      %714 = vmatpush1.msra.mxu0 0.0
      %715 = vmatprep.subr.mxu0 0.0
      %716 = vmatpush1.msra.mxu0 0.0
      %717 = vmatprep.subr.mxu0 0.0
      %718 = vmatpush1.msra.mxu0 0.0
      %719 = vmatprep.subr.mxu0 0.0
      %720 = vmatpush1.msra.mxu0 0.0
      %721 = vmatprep.subr.mxu0 0.0
      %722 = vmatpush1.msra.mxu0 0.0
      %723 = vmatprep.subr.mxu0 0.0
      %724 = vmatpush1.msra.mxu0 0.0
      %725 = vmatprep.subr.mxu0 0.0
      %726 = vmatpush1.msra.mxu0 0.0
      %727 = vmatprep.subr.mxu0 0.0
      %728 = vmatpush1.msra.mxu0 0.0
      %729 = vmatprep.subr.mxu0 0.0
      %730 = vmatpush1.msra.mxu0 0.0
      %731 = vmatprep.subr.mxu0 0.0
      %732 = vmatpush1.msra.mxu0 0.0
      %733 = vmatprep.subr.mxu0 0.0
      %734 = vmatpush1.msra.mxu0 0.0
      %735 = vmatprep.mubr.f32.mxu0 0.0
      %736 = vmatmul.mubr.f32.gmra.mrb[0].mxu0 %v669
      %v737 = vpop.f32.mrb[0].mxu0
      %v738 = vadd.f32 0.0, %v737
      %v739 = vpop.f32.mrb[0].mxu0
      %740 = vdwg.mxu0
      %v741 = vmul.f32 %v738, 0.35355338
      %v743 = vsel %vm545, %v607, 0
      %745 = vmatprep.subr.mxu0 0.0
      %746 = vmatpush1.msra.mxu0 %v741
      %747 = vmatprep.subr.mxu0 0.0
      %748 = vmatpush1.msra.mxu0 0.0
      %749 = vmatprep.subr.mxu0 0.0
      %750 = vmatpush1.msra.mxu0 0.0
      %751 = vmatprep.subr.mxu0 0.0
      %752 = vmatpush1.msra.mxu0 0.0
      %753 = vmatprep.subr.mxu0 0.0
      %754 = vmatpush1.msra.mxu0 0.0
      %755 = vmatprep.subr.mxu0 0.0
      %756 = vmatpush1.msra.mxu0 0.0
      %757 = vmatprep.subr.mxu0 0.0
      %758 = vmatpush1.msra.mxu0 0.0
      %759 = vmatprep.subr.mxu0 0.0
      %760 = vmatpush1.msra.mxu0 0.0
      %761 = vmatprep.subr.mxu0 0.0
      %762 = vmatpush1.msra.mxu0 0.0
      %763 = vmatprep.subr.mxu0 0.0
      %764 = vmatpush1.msra.mxu0 0.0
      %765 = vmatprep.subr.mxu0 0.0
      %766 = vmatpush1.msra.mxu0 0.0
      %767 = vmatprep.subr.mxu0 0.0
      %768 = vmatpush1.msra.mxu0 0.0
      %769 = vmatprep.subr.mxu0 0.0
      %770 = vmatpush1.msra.mxu0 0.0
      %771 = vmatprep.subr.mxu0 0.0
      %772 = vmatpush1.msra.mxu0 0.0
      %773 = vmatprep.subr.mxu0 0.0
      %774 = vmatpush1.msra.mxu0 0.0
      %775 = vmatprep.subr.mxu0 0.0
      %776 = vmatpush1.msra.mxu0 0.0
      %777 = vmatprep.subr.mxu0 0.0
      %778 = vmatpush1.msra.mxu0 0.0
      %779 = vmatprep.subr.mxu0 0.0
      %780 = vmatpush1.msra.mxu0 0.0
      %781 = vmatprep.subr.mxu0 0.0
      %782 = vmatpush1.msra.mxu0 0.0
      %783 = vmatprep.subr.mxu0 0.0
      %784 = vmatpush1.msra.mxu0 0.0
      %785 = vmatprep.subr.mxu0 0.0
      %786 = vmatpush1.msra.mxu0 0.0
      %787 = vmatprep.subr.mxu0 0.0
      %788 = vmatpush1.msra.mxu0 0.0
      %789 = vmatprep.subr.mxu0 0.0
      %790 = vmatpush1.msra.mxu0 0.0
      %791 = vmatprep.subr.mxu0 0.0
      %792 = vmatpush1.msra.mxu0 0.0
      %793 = vmatprep.subr.mxu0 0.0
      %794 = vmatpush1.msra.mxu0 0.0
      %795 = vmatprep.subr.mxu0 0.0
      %796 = vmatpush1.msra.mxu0 0.0
      %797 = vmatprep.subr.mxu0 0.0
      %798 = vmatpush1.msra.mxu0 0.0
      %799 = vmatprep.subr.mxu0 0.0
      %800 = vmatpush1.msra.mxu0 0.0
      %801 = vmatprep.subr.mxu0 0.0
      %802 = vmatpush1.msra.mxu0 0.0
      %803 = vmatprep.subr.mxu0 0.0
      %804 = vmatpush1.msra.mxu0 0.0
      %805 = vmatprep.subr.mxu0 0.0
      %806 = vmatpush1.msra.mxu0 0.0
      %807 = vmatprep.subr.mxu0 0.0
      %808 = vmatpush1.msra.mxu0 0.0
      %809 = vmatprep.mubr.f32.mxu0 0.0
      %810 = vmatmul.mubr.f32.gmra.mrb[0].mxu0 %v743
      %v811 = vpop.f32.mrb[0].mxu0
      %v812 = vadd.f32 0.0, %v811
      %v813 = vpop.f32.mrb[0].mxu0
      %814 = vdwg.mxu0
      %v815 = vpack.c.bf16 %v812, %v812
      %v816 = vld [vmem:[%s6] sm:$0xf]
      %v818 = vsel %vm545, %v815, 0
      %v821 = vsel %vm549, %v816, 0
      %823 = vmatprep.subr.bf16.mxu0 0
      %824 = vmatpush1.bf16.msra.mxu0 %v821
      %825 = vmatprep.subr.bf16.mxu0 0
      %826 = vmatpush1.bf16.msra.mxu0 0
      %827 = vmatprep.subr.bf16.mxu0 0
      %828 = vmatpush1.bf16.msra.mxu0 0
      %829 = vmatprep.subr.bf16.mxu0 0
      %830 = vmatpush1.bf16.msra.mxu0 0
      %831 = vmatprep.subr.bf16.mxu0 0
      %832 = vmatpush1.bf16.msra.mxu0 0
      %833 = vmatprep.subr.bf16.mxu0 0
      %834 = vmatpush1.bf16.msra.mxu0 0
      %835 = vmatprep.subr.bf16.mxu0 0
      %836 = vmatpush1.bf16.msra.mxu0 0
      %837 = vmatprep.subr.bf16.mxu0 0
      %838 = vmatpush1.bf16.msra.mxu0 0
      %839 = vmatprep.subr.bf16.mxu0 0
      %840 = vmatpush1.bf16.msra.mxu0 0
      %841 = vmatprep.subr.bf16.mxu0 0
      %842 = vmatpush1.bf16.msra.mxu0 0
      %843 = vmatprep.subr.bf16.mxu0 0
      %844 = vmatpush1.bf16.msra.mxu0 0
      %845 = vmatprep.subr.bf16.mxu0 0
      %846 = vmatpush1.bf16.msra.mxu0 0
      %847 = vmatprep.subr.bf16.mxu0 0
      %848 = vmatpush1.bf16.msra.mxu0 0
      %849 = vmatprep.subr.bf16.mxu0 0
      %850 = vmatpush1.bf16.msra.mxu0 0
      %851 = vmatprep.subr.bf16.mxu0 0
      %852 = vmatpush1.bf16.msra.mxu0 0
      %853 = vmatprep.subr.bf16.mxu0 0
      %854 = vmatpush1.bf16.msra.mxu0 0
      %855 = vmatprep.mubr.bf16.mxu0 0
      %856 = vmatmul.mubr.bf16.gmra.mrb[0].mxu0 %v818
      %v857 = vpop.f32.mrb[0].mxu0
      %v858 = vadd.f32 0.0, %v857
      %v859 = vpop.f32.mrb[0].mxu0
      %v860 = vpop.f32.mrb[0].mxu0
      %v861 = vpop.f32.mrb[0].mxu0
      %862 = vdwg.mxu0
      %v863 = vadd.f32 %v524, %v858
      %v864 = vld [vmem:[%s7] sm:$0x1]
      %v866 = vlaneseq
      %v867 = vshrl.u32 %v866, 7
      %v868 = vsub.s32 0, %v867
      %v869 = vrot.slane %v864, %v868
      %v871 = vadd.f32 %v863, %v869
      %v872 = vmul.f32 %v871, %v871
      %v873 = vsel %vm526, %v872, 0.0
      %874 = vadd.xlane.f32.xlu0 %v873
      %v875 = vpop.xlane.xlu0 %874
      %v876 = vmul.f32 %v875, %v530
      %v877 = vadd.f32 %v876, 1.1920929e-07
      %v878 = vrsqrt.pop %v877
      %v879 = vmul.f32 %v871, %v878
      %v880 = vld [vmem:[%s8] sm:$0x1]
      %v882 = vlaneseq
      %v883 = vshrl.u32 %v882, 7
      %v884 = vsub.s32 0, %v883
      %v885 = vrot.slane %v880, %v884
      %v887 = vmul.f32 %v879, %v885
      %v888 = vmax.f32 %v887, 0.0
      %v889 = vpack.c.bf16 %v888, %v888
      %v890 = vld [vmem:[%s9] sm:$0xf]
      %v891 = vld [vmem:[%s10] sm:$0x1]
      %v893 = vlaneseq
      %v894 = vshrl.u32 %v893, 7
      %v895 = vsub.s32 0, %v894
      %v896 = vrot.slane %v891, %v895
      %v899 = vsel %vm545, %v889, 0
      %v902 = vsel %vm549, %v890, 0
      %904 = vmatprep.subr.bf16.mxu0 0
      %905 = vmatpush1.bf16.msra.mxu0 %v902
      %906 = vmatprep.subr.bf16.mxu0 0
      %907 = vmatpush1.bf16.msra.mxu0 0
      %908 = vmatprep.subr.bf16.mxu0 0
      %909 = vmatpush1.bf16.msra.mxu0 0
      %910 = vmatprep.subr.bf16.mxu0 0
      %911 = vmatpush1.bf16.msra.mxu0 0
      %912 = vmatprep.subr.bf16.mxu0 0
      %913 = vmatpush1.bf16.msra.mxu0 0
      %914 = vmatprep.subr.bf16.mxu0 0
      %915 = vmatpush1.bf16.msra.mxu0 0
      %916 = vmatprep.subr.bf16.mxu0 0
      %917 = vmatpush1.bf16.msra.mxu0 0
      %918 = vmatprep.subr.bf16.mxu0 0
      %919 = vmatpush1.bf16.msra.mxu0 0
      %920 = vmatprep.subr.bf16.mxu0 0
      %921 = vmatpush1.bf16.msra.mxu0 0
      %922 = vmatprep.subr.bf16.mxu0 0
      %923 = vmatpush1.bf16.msra.mxu0 0
      %924 = vmatprep.subr.bf16.mxu0 0
      %925 = vmatpush1.bf16.msra.mxu0 0
      %926 = vmatprep.subr.bf16.mxu0 0
      %927 = vmatpush1.bf16.msra.mxu0 0
      %928 = vmatprep.subr.bf16.mxu0 0
      %929 = vmatpush1.bf16.msra.mxu0 0
      %930 = vmatprep.subr.bf16.mxu0 0
      %931 = vmatpush1.bf16.msra.mxu0 0
      %932 = vmatprep.subr.bf16.mxu0 0
      %933 = vmatpush1.bf16.msra.mxu0 0
      %934 = vmatprep.subr.bf16.mxu0 0
      %935 = vmatpush1.bf16.msra.mxu0 0
      %936 = vmatprep.mubr.bf16.mxu0 0
      %937 = vmatmul.mubr.bf16.gmra.mrb[0].mxu0 %v899
      %v938 = vpop.f32.mrb[0].mxu0
      %v939 = vadd.f32 %v896, %v938
      %v940 = vpop.f32.mrb[0].mxu0
      %v941 = vpop.f32.mrb[0].mxu0
      %v942 = vpop.f32.mrb[0].mxu0
      %943 = vdwg.mxu0
      %v944 = vmul.f32 %v939, %v939
      %vm945 = vcmask 258048
      %v946 = vsel %vm945, %v944, 0.0
      %947 = vadd.xlane.f32.xlu0 %v946
      %v948 = vpop.xlane.xlu0 %947
      %v949 = vrcp.pop 32.0
      %v950 = vmul.f32 %v948, %v949
      %v951 = vadd.f32 %v950, 1.1920929e-07
      %v952 = vrsqrt.pop %v951
      %v953 = vmul.f32 %v939, %v952
      %v954 = vld [vmem:[%s11] sm:$0x1]
      %v956 = vlaneseq
      %v957 = vshrl.u32 %v956, 7
      %v958 = vsub.s32 0, %v957
      %v959 = vrot.slane %v954, %v958
      %v961 = vmul.f32 %v953, %v959
      %v962 = vmax.f32 %v961, 0.0
      %v963 = vpack.c.bf16 %v962, %v962
      %v964 = vld [vmem:[%s12] sm:$0xf]
      %v965 = vld [vmem:[%s12 + $0x4] sm:$0xf]
      %v966 = vld [vmem:[%s12 + $0x8] sm:$0xf]
      %v967 = vld [vmem:[%s12 + $0xc] sm:$0xf]
      %v968 = vld [vmem:[%s13] sm:$0x1]
      %v970 = vlaneseq
      %v971 = vshrl.u32 %v970, 7
      %v972 = vsub.s32 0, %v971
      %v973 = vrot.slane %v968, %v972
      %v979 = vunpack.c.l.b16 %v964
      %v980 = vunpack.c.l.b16 %v965
      %v981 = vunpack.c.l.b16 %v966
      %v982 = vunpack.c.l.b16 %v967
      %v983 = vpack.c.b16 %v980, %v979
      %v984 = vpack.c.b16 %v982, %v981
      %vm987 = vcmask 261120
      %v989 = vsel %vm987, %v963, 0
      %991 = vmatprep.subr.bf16.mxu0 0
      %992 = vmatpush1.bf16.msra.mxu0 %v983
      %993 = vmatprep.subr.bf16.mxu0 0
      %994 = vmatpush1.bf16.msra.mxu0 %v984
      %995 = vmatprep.subr.bf16.mxu0 0
      %996 = vmatpush1.bf16.msra.mxu0 0
      %997 = vmatprep.subr.bf16.mxu0 0
      %998 = vmatpush1.bf16.msra.mxu0 0
      %999 = vmatprep.subr.bf16.mxu0 0
      %1000 = vmatpush1.bf16.msra.mxu0 0
      %1001 = vmatprep.subr.bf16.mxu0 0
      %1002 = vmatpush1.bf16.msra.mxu0 0
      %1003 = vmatprep.subr.bf16.mxu0 0
      %1004 = vmatpush1.bf16.msra.mxu0 0
      %1005 = vmatprep.subr.bf16.mxu0 0
      %1006 = vmatpush1.bf16.msra.mxu0 0
      %1007 = vmatprep.subr.bf16.mxu0 0
      %1008 = vmatpush1.bf16.msra.mxu0 0
      %1009 = vmatprep.subr.bf16.mxu0 0
      %1010 = vmatpush1.bf16.msra.mxu0 0
      %1011 = vmatprep.subr.bf16.mxu0 0
      %1012 = vmatpush1.bf16.msra.mxu0 0
      %1013 = vmatprep.subr.bf16.mxu0 0
      %1014 = vmatpush1.bf16.msra.mxu0 0
      %1015 = vmatprep.subr.bf16.mxu0 0
      %1016 = vmatpush1.bf16.msra.mxu0 0
      %1017 = vmatprep.subr.bf16.mxu0 0
      %1018 = vmatpush1.bf16.msra.mxu0 0
      %1019 = vmatprep.subr.bf16.mxu0 0
      %1020 = vmatpush1.bf16.msra.mxu0 0
      %1021 = vmatprep.subr.bf16.mxu0 0
      %1022 = vmatpush1.bf16.msra.mxu0 0
      %1023 = vmatprep.mubr.bf16.mxu0 0
      %1024 = vmatmul.mubr.bf16.gmra.mrb[0].mxu0 %v989
      %v1025 = vpop.f32.mrb[0].mxu0
      %v1026 = vadd.f32 %v973, %v1025
      %v1027 = vpop.f32.mrb[0].mxu0
      %v1028 = vpop.f32.mrb[0].mxu0
      %v1029 = vpop.f32.mrb[0].mxu0
      %1030 = vdwg.mxu0
      %v1031 = vadd.f32 %v871, %v1026
      %1032 = vst.msk [vmem:[%s522] sm:$0x1f] %vm526, %v1031
      %p1033 = scmp.lt.s32.totalorder %s29, 1
      %s1034 = scalar_select %p1033, %s29, 1
      %p1035 = scmp.lt.s32.totalorder %s30, 0
      %s1036 = scalar_select %p1035, %s30, 0
      %s1037 = sadd.s32 %s1036, %s1034
      %s1038 = smul.addr %s1037, 8
      %s1039 = scalar_lea.vmem %s14, %s1038
      // Predicated region
      $region77: #{_lambda_.15} parent=75 // pred_check
        %p1040 = pneg %p366
      $region78: #{_lambda_.15} parent=75 // pred_check_branch
        %1042 = sbr.rel (%p1040) target = $region80
      $region79: #{_lambda_.15} parent=75 // pred_region
        _
      $region80: #{_lambda_.15} parent=75 // pred_fallthru
        _
    $region76: #{_lambda_.15} parent=5 // pred_fallthru
      _
    %p1043 = scmp.le.s32.totalorder 2, %s20
    // Predicated region
    $region81: #{_lambda_.15} parent=5 // pred_check
      %p1044 = pneg %p1043
    $region82: #{_lambda_.15} parent=5 // pred_check_branch
      %1046 = sbr.rel (%p1044) target = $region84
    $region83: #{_lambda_.15} parent=5 // pred_region
      %s1047 = ssub.s32 %s20, 2
      // Predicated region
      $region85: #{_lambda_.15} parent=83 // pred_check
        %p1048 = pneg %p372
      $region86: #{_lambda_.15} parent=83 // pred_check_branch
        %1050 = sbr.rel (%p1048) target = $region88
      $region87: #{_lambda_.15} parent=83 // pred_region
        %p1051 = scmp.lt.s32.totalorder %s31, 1
        %s1052 = scalar_select %p1051, %s31, 1
        %p1053 = scmp.lt.s32.totalorder %s32, 0
        %s1054 = scalar_select %p1053, %s32, 0
        %s1055 = sadd.s32 %s1054, %s1052
        %s1056 = smul.addr %s1055, 8
        %s1057 = scalar_lea.vmem %s14, %s1056
      $region88: #{_lambda_.15} parent=83 // pred_fallthru
        _
    $region84: #{_lambda_.15} parent=5 // pred_fallthru
      _
  $region6: #{_lambda_.15} parent=0 // loop_footer
    %s24 = sadd.s32 1, %s20
  $region7: #{_lambda_.15} parent=0 // loop_footer_branch
    %19 = sbr.rel target = $region3
  $region8: #{_lambda_.15} parent=0 // loop_exit
    _

</llo_original>
